<compile_context>
chip_gen: v7x
topology: tpu7x:2x2x1
jax: 0.10.0
libtpu: 0.0.40
codegen_flags: <defaults>
</compile_context>

<pallas_src>
import math

import jax
import jax.numpy as jnp
from jax.experimental import pallas as pl
from jax.experimental.pallas import tpu as pltpu

# ----------------------- small synthetic config -----------------------------
VOCAB = 100
HIDDEN = 32
LAYERS = 2
HEADS = 4
HEAD_DIM = HIDDEN // HEADS
INTER = 64
MAX_POS = 64
TYPE_VOCAB = 2
LN_EPS = 1e-7      # DeBERTa LayerNorm eps
MASK_BIG = 1e9     # additive mask magnitude (finite; avoids -inf intermediates)


# --------------------------- in-kernel helpers -------------------------------

def _layer_norm(x, g, b):
    mu = jnp.mean(x, axis=-1, keepdims=True)
    var = jnp.mean((x - mu) ** 2, axis=-1, keepdims=True)
    return (x - mu) * jax.lax.rsqrt(var + LN_EPS) * g + b


def _erf(x):
    # Abramowitz & Stegun 7.1.26 rational approximation, |abs err| < 1.5e-7.
    # Uses only exp / mul / add / select so it lowers cleanly in Mosaic.
    a1, a2, a3, a4, a5 = (0.254829592, -0.284496736, 1.421413741,
                          -1.453152027, 1.061405429)
    p = 0.3275911
    sgn = jnp.where(x >= 0.0, 1.0, -1.0)
    ax = jnp.abs(x)
    t = 1.0 / (1.0 + p * ax)
    poly = ((((a5 * t + a4) * t + a3) * t + a2) * t + a1) * t
    return sgn * (1.0 - poly * jnp.exp(-ax * ax))


def _gelu_erf(x):
    # erf-based GELU (matches DeBERTa's intermediate activation).
    return x * 0.5 * (1.0 + _erf(x * 0.7071067811865476))


# ----------------------------- fused Pallas kernel ---------------------------

def _encoder_kernel(emb_ref, mrow_ref, mcol_ref, eg_ref, eb_ref,
                    wqkv_ref, bqkv_ref, wo_ref, bo_ref, g1_ref, b1_ref,
                    wi_ref, bi_ref, wo2_ref, bo2_ref, g2_ref, b2_ref,
                    out_ref):
    """One grid step = one batch element; runs emb-LN + all encoder layers."""
    mrow = mrow_ref[0]                       # [1, S]  key mask
    mcol = mcol_ref[0]                       # [S, 1]  query mask
    key_bias = (mrow - 1.0) * MASK_BIG       # 0 for valid keys, -1e9 for padded
    full_mask = mrow * mcol                  # [S, S]  XSoftmax zeroing mask

    # Embedding MaskedLayerNorm (DeBERTa only masks the embedding LN output).
    x = _layer_norm(emb_ref[0], eg_ref[...], eb_ref[...]) * mcol   # [S, H] f32

    # LAYERS is tiny and static -> unrolled Python loop keeps all weight
    # indexing static.  TODO(synk): for a deep encoder, move layers to a grid
    # axis and stream weight tiles (v7x: 64 MiB VMEM budget).
    for l in range(LAYERS):
        wqkv_l = wqkv_ref[l]                 # [H, 3H] bf16
        bqkv_l = bqkv_ref[l]                 # [1, 3H] f32
        bo_l = bo_ref[l]                     # [1, H]  f32
        wi_l = wi_ref[l]                     # [H, INTER] bf16
        bi_l = bi_ref[l]                     # [1, INTER] f32
        wo2_l = wo2_ref[l]                   # [INTER, H] bf16
        bo2_l = bo2_ref[l]                   # [1, H] f32

        # ---- fused QKV projection (bf16 MXU inputs, f32 accumulation) ----
        qkv = jnp.dot(x.astype(jnp.bfloat16), wqkv_l,
                      preferred_element_type=jnp.float32) + bqkv_l
        qkv = qkv.astype(jnp.bfloat16)       # [S, 3H]; 1/sqrt(dh) already in wq

        # ---- attention: heads unrolled in-kernel; per-head context is
        #      projected through its [HEAD_DIM, H] slice of Wo and accumulated
        #      directly (no scratch buffer / concat needed). ----
        attn_out = jnp.zeros(x.shape, jnp.float32)
        for h in range(HEADS):
            qh = qkv[:, h * HEAD_DIM:(h + 1) * HEAD_DIM]
            kh = qkv[:, HIDDEN + h * HEAD_DIM:HIDDEN + (h + 1) * HEAD_DIM]
            vh = qkv[:, 2 * HIDDEN + h * HEAD_DIM:2 * HIDDEN + (h + 1) * HEAD_DIM]
            s = jax.lax.dot_general(qh, kh, (((1,), (1,)), ((), ())),
                                    preferred_element_type=jnp.float32)
            s = s + key_bias                                   # additive mask
            s_max = jnp.max(s, axis=-1, keepdims=True)
            e = jnp.exp(s - s_max)
            p = e * pl.reciprocal(jnp.sum(e, axis=-1, keepdims=True), approx=True)
            p = p * full_mask                # XSoftmax: zero masked rows/cols
            ctx_h = jnp.dot(p.astype(jnp.bfloat16), vh,
                            preferred_element_type=jnp.float32)
            attn_out = attn_out + jnp.dot(ctx_h.astype(jnp.bfloat16),
                                          wo_ref[l, h],
                                          preferred_element_type=jnp.float32)
        attn_out = attn_out + bo_l

        # ---- post-attention LayerNorm ----
        x = _layer_norm(x + attn_out, g1_ref[l], b1_ref[l])

        # ---- feed-forward (erf GELU) + output LayerNorm ----
        inter = _gelu_erf(jnp.dot(x.astype(jnp.bfloat16), wi_l,
                                  preferred_element_type=jnp.float32) + bi_l)
        ffn = jnp.dot(inter.astype(jnp.bfloat16), wo2_l,
                      preferred_element_type=jnp.float32) + bo2_l
        x = _layer_norm(x + ffn, g2_ref[l], b2_ref[l])

        out_ref[l, 0] = x                    # per-layer encoder output


def deberta_encoder(emb, mask, enc):
    """emb: [B,S,H] f32, mask: [B,S] f32, enc: packed/stacked weights."""
    B, S, H = emb.shape
    mrow = mask[:, None, :]                  # [B, 1, S]
    mcol = mask[:, :, None]                  # [B, S, 1]

    def full(shape):                         # whole-array block, resident across grid
        return pl.BlockSpec(shape, lambda b, _n=len(shape): (0,) * _n)

    return pl.pallas_call(
        _encoder_kernel,
        out_shape=jax.ShapeDtypeStruct((LAYERS, B, S, H), jnp.float32),
        grid=(B,),
        in_specs=[
            pl.BlockSpec((1, S, H), lambda b: (b, 0, 0)),     # embeddings
            pl.BlockSpec((1, 1, S), lambda b: (b, 0, 0)),     # mask (row/key view)
            pl.BlockSpec((1, S, 1), lambda b: (b, 0, 0)),     # mask (col/query view)
            full((1, H)), full((1, H)),                       # emb LN gamma/beta
            full((LAYERS, H, 3 * H)), full((LAYERS, 1, 3 * H)),           # fused QKV
            full((LAYERS, HEADS, HEAD_DIM, H)), full((LAYERS, 1, H)),     # attn out proj
            full((LAYERS, 1, H)), full((LAYERS, 1, H)),                   # LN1
            full((LAYERS, H, INTER)), full((LAYERS, 1, INTER)),           # FFN in
            full((LAYERS, INTER, H)), full((LAYERS, 1, H)),               # FFN out
            full((LAYERS, 1, H)), full((LAYERS, 1, H)),                   # LN2
        ],
        out_specs=pl.BlockSpec((LAYERS, 1, S, H), lambda b: (0, b, 0, 0)),
        compiler_params=pltpu.CompilerParams(
            dimension_semantics=("parallel",)),               # megacore on v7x
    )(emb, mrow, mcol, enc["emb_ln_g"], enc["emb_ln_b"],
      enc["wqkv"], enc["bqkv"], enc["wo"], enc["bo"], enc["ln1_g"], enc["ln1_b"],
      enc["wi"], enc["bi"], enc["wo2"], enc["bo2"], enc["ln2_g"], enc["ln2_b"])


# --------------------------- parameter init / packing ------------------------

def init_params(key):
    def normal(k, shape):
        return 0.02 * jax.random.normal(k, shape, dtype=jnp.float32)

    keys = iter(jax.random.split(key, 8 + 8 * LAYERS))
    params = {
        "word_emb": normal(next(keys), (VOCAB, HIDDEN)),
        "pos_emb": normal(next(keys), (MAX_POS, HIDDEN)),
        "type_emb": normal(next(keys), (TYPE_VOCAB, HIDDEN)),
        "emb_ln_g": jnp.ones((1, HIDDEN), jnp.float32),
        "emb_ln_b": jnp.zeros((1, HIDDEN), jnp.float32),
        "layers": [],
    }
    for _ in range(LAYERS):
        layer = {
            "wq": normal(next(keys), (HIDDEN, HIDDEN)), "bq": jnp.zeros((HIDDEN,), jnp.float32),
            "wk": normal(next(keys), (HIDDEN, HIDDEN)), "bk": jnp.zeros((HIDDEN,), jnp.float32),
            "wv": normal(next(keys), (HIDDEN, HIDDEN)), "bv": jnp.zeros((HIDDEN,), jnp.float32),
            "wo": normal(next(keys), (HIDDEN, HIDDEN)), "bo": jnp.zeros((HIDDEN,), jnp.float32),
            "ln1_g": jnp.ones((1, HIDDEN), jnp.float32), "ln1_b": jnp.zeros((1, HIDDEN), jnp.float32),
            "wi": normal(next(keys), (HIDDEN, INTER)), "bi": jnp.zeros((INTER,), jnp.float32),
            "wo2": normal(next(keys), (INTER, HIDDEN)), "bo2": jnp.zeros((HIDDEN,), jnp.float32),
            "ln2_g": jnp.ones((1, HIDDEN), jnp.float32), "ln2_b": jnp.zeros((1, HIDDEN), jnp.float32),
        }
        params["layers"].append(layer)
    return params


def pack_params(params):
    """Stack per-layer weights, fuse QKV, fold attention scale, cast to bf16."""
    scale = 1.0 / math.sqrt(HEAD_DIM)

    def stack(key):
        return jnp.stack([lyr[key] for lyr in params["layers"]])

    wqkv = jnp.concatenate([stack("wq") * scale, stack("wk"), stack("wv")], axis=-1)
    bqkv = jnp.concatenate([stack("bq") * scale, stack("bk"), stack("bv")], axis=-1)
    # Wo reshaped per-head: [L, H, H] -> [L, HEADS, HEAD_DIM, H] so the kernel
    # never slices a bf16 array across a packed sublane tile.
    wo = stack("wo").reshape(LAYERS, HEADS, HEAD_DIM, HIDDEN)
    return {
        "emb_ln_g": params["emb_ln_g"], "emb_ln_b": params["emb_ln_b"],
        "wqkv": wqkv.astype(jnp.bfloat16), "bqkv": bqkv[:, None, :],
        "wo": wo.astype(jnp.bfloat16), "bo": stack("bo")[:, None, :],
        "ln1_g": stack("ln1_g"), "ln1_b": stack("ln1_b"),
        "wi": stack("wi").astype(jnp.bfloat16), "bi": stack("bi")[:, None, :],
        "wo2": stack("wo2").astype(jnp.bfloat16), "bo2": stack("bo2")[:, None, :],
        "ln2_g": stack("ln2_g"), "ln2_b": stack("ln2_b"),
    }


# ------------------------------- forward -------------------------------------

def deberta_forward(params, enc_packed, input_ids, attention_mask=None,
                    token_type_ids=None, position_ids=None,
                    output_all_encoded_layers=True):
    B, S = input_ids.shape
    if attention_mask is None:
        attention_mask = jnp.ones_like(input_ids)
    if token_type_ids is None:
        token_type_ids = jnp.zeros_like(input_ids)
    if position_ids is None:
        position_ids = jnp.arange(S, dtype=jnp.int32)[None, :]

    # Embedding gathers stay in plain JAX (no Pallas win for tiny gathers).
    emb = (params["word_emb"][input_ids]
           + params["pos_emb"][position_ids]
           + params["type_emb"][token_type_ids]).astype(jnp.float32)
    mask = attention_mask.astype(jnp.float32)

    stacked = deberta_encoder(emb, mask, enc_packed)      # [LAYERS, B, S, H]
    encoded_layers = [stacked[l] for l in range(LAYERS)]
    if not output_all_encoded_layers:
        encoded_layers = encoded_layers[-1:]
    return encoded_layers


# ----------------------- pure-JAX reference (f32) -----------------------------

def reference_forward(params, input_ids, attention_mask, token_type_ids):
    B, S = input_ids.shape
    position_ids = jnp.arange(S)[None, :]
    emb = (params["word_emb"][input_ids] + params["pos_emb"][position_ids]
           + params["type_emb"][token_type_ids]).astype(jnp.float32)
    am = attention_mask.astype(jnp.float32)

    def ln(x, g, b):
        mu = x.mean(-1, keepdims=True)
        var = ((x - mu) ** 2).mean(-1, keepdims=True)
        return (x - mu) / jnp.sqrt(var + LN_EPS) * g + b

    x = ln(emb, params["emb_ln_g"], params["emb_ln_b"]) * am[:, :, None]
    ext = am[:, None, :] * am[:, :, None]                 # [B, S, S]
    outs = []
    for p in params["layers"]:
        q = x @ p["wq"] + p["bq"]
        k = x @ p["wk"] + p["bk"]
        v = x @ p["wv"] + p["bv"]

        def heads(t):
            return t.reshape(B, S, HEADS, HEAD_DIM).transpose(0, 2, 1, 3)

        qh, kh, vh = heads(q), heads(k), heads(v)
        s = jnp.einsum("bhqd,bhkd->bhqk", qh, kh) / math.sqrt(HEAD_DIM)
        s = jnp.where(ext[:, None] > 0, s, jnp.finfo(jnp.float32).min)
        pr = jax.nn.softmax(s, axis=-1)
        pr = jnp.where(ext[:, None] > 0, pr, 0.0)
        ctx = jnp.einsum("bhqk,bhkd->bhqd", pr, vh)
        ctx = ctx.transpose(0, 2, 1, 3).reshape(B, S, HIDDEN)
        attn_out = ctx @ p["wo"] + p["bo"]
        x = ln(x + attn_out, p["ln1_g"], p["ln1_b"])
        inter = x @ p["wi"] + p["bi"]
        inter = 0.5 * inter * (1.0 + jax.scipy.special.erf(inter / math.sqrt(2.0)))
        ffn = inter @ p["wo2"] + p["bo2"]
        x = ln(x + ffn, p["ln2_g"], p["ln2_b"])
        outs.append(x)
    return outs


# --------------------------------- main ---------------------------------------

if __name__ == "__main__":
    key = jax.random.PRNGKey(0)
    pkey, dkey = jax.random.split(key)
    params = init_params(pkey)
    enc_packed = pack_params(params)

    B, S = 2, 8
    input_ids = jax.random.randint(dkey, (B, S), 0, VOCAB, dtype=jnp.int32)
    attention_mask = jnp.array([[1, 1, 1, 1, 1, 1, 1, 1],
                                [1, 1, 1, 1, 1, 1, 0, 0]], dtype=jnp.int32)
    token_type_ids = jnp.zeros((B, S), dtype=jnp.int32)

    encoded_layers = deberta_forward(params, enc_packed, input_ids,
                                     attention_mask=attention_mask,
                                     token_type_ids=token_type_ids,
                                     output_all_encoded_layers=True)
    jax.block_until_ready(encoded_layers)
    assert len(encoded_layers) == LAYERS
    assert encoded_layers[-1].shape == (B, S, HIDDEN)
    assert all(bool(jnp.all(jnp.isfinite(a))) for a in encoded_layers)

    # Sanity check against a pure-JAX f32 reference (bf16 matmuls + approx
    # reciprocal introduce small, bounded drift).
    ref = reference_forward(params, input_ids, attention_mask, token_type_ids)
    max_diff = max(float(jnp.max(jnp.abs(a - b)))
                   for a, b in zip(encoded_layers, ref))
    assert max_diff < 0.1, f"max diff vs reference: {max_diff}"

    print("KERNEL_OK")
</pallas_src>

<mosaic_0001>
module attributes {stable_mosaic.version = 11 : i64} {
  func.func @_encoder_kernel(%arg0: i32, %arg1: memref<1x8x32xf32, #tpu.memory_space<vmem>>, %arg2: memref<1x1x8xf32, #tpu.memory_space<vmem>>, %arg3: memref<1x8x1xf32, #tpu.memory_space<vmem>>, %arg4: memref<1x32xf32, #tpu.memory_space<vmem>>, %arg5: memref<1x32xf32, #tpu.memory_space<vmem>>, %arg6: memref<2x32x96xbf16, #tpu.memory_space<vmem>>, %arg7: memref<2x1x96xf32, #tpu.memory_space<vmem>>, %arg8: memref<2x4x8x32xbf16, #tpu.memory_space<vmem>>, %arg9: memref<2x1x32xf32, #tpu.memory_space<vmem>>, %arg10: memref<2x1x32xf32, #tpu.memory_space<vmem>>, %arg11: memref<2x1x32xf32, #tpu.memory_space<vmem>>, %arg12: memref<2x32x64xbf16, #tpu.memory_space<vmem>>, %arg13: memref<2x1x64xf32, #tpu.memory_space<vmem>>, %arg14: memref<2x64x32xbf16, #tpu.memory_space<vmem>>, %arg15: memref<2x1x32xf32, #tpu.memory_space<vmem>>, %arg16: memref<2x1x32xf32, #tpu.memory_space<vmem>>, %arg17: memref<2x1x32xf32, #tpu.memory_space<vmem>>, %arg18: memref<2x1x8x32xf32, #tpu.memory_space<vmem>>) attributes {dimension_semantics = [#tpu.dimension_semantics<parallel>], iteration_bounds = array<i64: 2>, scalar_prefetch = 0 : i64, scratch_operands = 0 : i64, tpu.core_type = #tpu.core_type<tc>, window_params = [{transform_indices = @transform_0, window_bounds = array<i64: 1, 8, 32>}, {transform_indices = @transform_1, window_bounds = array<i64: 1, 1, 8>}, {transform_indices = @transform_2, window_bounds = array<i64: 1, 8, 1>}, {pipeline_mode = #tpu.pipeline_mode<synchronous>, transform_indices = @transform_3, window_bounds = array<i64: 1, 32>}, {pipeline_mode = #tpu.pipeline_mode<synchronous>, transform_indices = @transform_4, window_bounds = array<i64: 1, 32>}, {pipeline_mode = #tpu.pipeline_mode<synchronous>, transform_indices = @transform_5, window_bounds = array<i64: 2, 32, 96>}, {pipeline_mode = #tpu.pipeline_mode<synchronous>, transform_indices = @transform_6, window_bounds = array<i64: 2, 1, 96>}, {pipeline_mode = #tpu.pipeline_mode<synchronous>, transform_indices = @transform_7, window_bounds = array<i64: 2, 4, 8, 32>}, {pipeline_mode = #tpu.pipeline_mode<synchronous>, transform_indices = @transform_8, window_bounds = array<i64: 2, 1, 32>}, {pipeline_mode = #tpu.pipeline_mode<synchronous>, transform_indices = @transform_9, window_bounds = array<i64: 2, 1, 32>}, {pipeline_mode = #tpu.pipeline_mode<synchronous>, transform_indices = @transform_10, window_bounds = array<i64: 2, 1, 32>}, {pipeline_mode = #tpu.pipeline_mode<synchronous>, transform_indices = @transform_11, window_bounds = array<i64: 2, 32, 64>}, {pipeline_mode = #tpu.pipeline_mode<synchronous>, transform_indices = @transform_12, window_bounds = array<i64: 2, 1, 64>}, {pipeline_mode = #tpu.pipeline_mode<synchronous>, transform_indices = @transform_13, window_bounds = array<i64: 2, 64, 32>}, {pipeline_mode = #tpu.pipeline_mode<synchronous>, transform_indices = @transform_14, window_bounds = array<i64: 2, 1, 32>}, {pipeline_mode = #tpu.pipeline_mode<synchronous>, transform_indices = @transform_15, window_bounds = array<i64: 2, 1, 32>}, {pipeline_mode = #tpu.pipeline_mode<synchronous>, transform_indices = @transform_16, window_bounds = array<i64: 2, 1, 32>}, {transform_indices = @transform_17, window_bounds = array<i64: 2, 1, 8, 32>}]} {
    %c0 = arith.constant 0 : index
    %c0_0 = arith.constant 0 : index
    %c0_1 = arith.constant 0 : index
    %0 = vector.load %arg2[%c0, %c0_0, %c0_1] : memref<1x1x8xf32, #tpu.memory_space<vmem>>, vector<1x1x8xf32>
    %1 = vector.shape_cast %0 : vector<1x1x8xf32> to vector<1x8xf32>
    %c0_2 = arith.constant 0 : index
    %c0_3 = arith.constant 0 : index
    %c0_4 = arith.constant 0 : index
    %2 = vector.load %arg3[%c0_2, %c0_3, %c0_4] : memref<1x8x1xf32, #tpu.memory_space<vmem>>, vector<1x8x1xf32>
    %3 = vector.shape_cast %2 : vector<1x8x1xf32> to vector<8x1xf32>
    %cst = arith.constant 1.000000e+00 : f32
    %4 = vector.broadcast %cst : f32 to vector<1x8xf32>
    %5 = arith.subf %1, %4 : vector<1x8xf32>
    %cst_5 = arith.constant 1.000000e+09 : f32
    %6 = vector.broadcast %cst_5 : f32 to vector<1x8xf32>
    %7 = arith.mulf %5, %6 : vector<1x8xf32>
    %8 = vector.broadcast %1 : vector<1x8xf32> to vector<8x8xf32>
    %9 = vector.broadcast %3 : vector<8x1xf32> to vector<8x8xf32>
    %10 = arith.mulf %8, %9 : vector<8x8xf32>
    %c0_6 = arith.constant 0 : index
    %c0_7 = arith.constant 0 : index
    %c0_8 = arith.constant 0 : index
    %11 = vector.load %arg1[%c0_6, %c0_7, %c0_8] : memref<1x8x32xf32, #tpu.memory_space<vmem>>, vector<1x8x32xf32>
    %12 = vector.shape_cast %11 : vector<1x8x32xf32> to vector<8x32xf32>
    %c0_9 = arith.constant 0 : index
    %c0_10 = arith.constant 0 : index
    %13 = vector.load %arg4[%c0_9, %c0_10] : memref<1x32xf32, #tpu.memory_space<vmem>>, vector<1x32xf32>
    %c0_11 = arith.constant 0 : index
    %c0_12 = arith.constant 0 : index
    %14 = vector.load %arg5[%c0_11, %c0_12] : memref<1x32xf32, #tpu.memory_space<vmem>>, vector<1x32xf32>
    %cst_13 = arith.constant dense<0.000000e+00> : vector<8xf32>
    %15 = vector.multi_reduction <add>, %12, %cst_13 [1] : vector<8x32xf32> to vector<8xf32>
    %16 = vector.shape_cast %15 : vector<8xf32> to vector<8x1xf32>
    %cst_14 = arith.constant 3.200000e+01 : f32
    %17 = vector.broadcast %cst_14 : f32 to vector<8x1xf32>
    %18 = arith.divf %16, %17 : vector<8x1xf32>
    %19 = vector.broadcast %18 : vector<8x1xf32> to vector<8x32xf32>
    %20 = arith.subf %12, %19 : vector<8x32xf32>
    %21 = arith.mulf %20, %20 : vector<8x32xf32>
    %cst_15 = arith.constant dense<0.000000e+00> : vector<8xf32>
    %22 = vector.multi_reduction <add>, %21, %cst_15 [1] : vector<8x32xf32> to vector<8xf32>
    %23 = vector.shape_cast %22 : vector<8xf32> to vector<8x1xf32>
    %cst_16 = arith.constant 3.200000e+01 : f32
    %24 = vector.broadcast %cst_16 : f32 to vector<8x1xf32>
    %25 = arith.divf %23, %24 : vector<8x1xf32>
    %26 = vector.broadcast %18 : vector<8x1xf32> to vector<8x32xf32>
    %27 = arith.subf %12, %26 : vector<8x32xf32>
    %cst_17 = arith.constant 1.000000e-07 : f32
    %28 = vector.broadcast %cst_17 : f32 to vector<8x1xf32>
    %29 = arith.addf %25, %28 : vector<8x1xf32>
    %30 = math.rsqrt %29 : vector<8x1xf32>
    %31 = vector.broadcast %30 : vector<8x1xf32> to vector<8x32xf32>
    %32 = arith.mulf %27, %31 : vector<8x32xf32>
    %33 = vector.broadcast %13 : vector<1x32xf32> to vector<8x32xf32>
    %34 = arith.mulf %32, %33 : vector<8x32xf32>
    %35 = vector.broadcast %14 : vector<1x32xf32> to vector<8x32xf32>
    %36 = arith.addf %34, %35 : vector<8x32xf32>
    %37 = vector.broadcast %3 : vector<8x1xf32> to vector<8x32xf32>
    %38 = arith.mulf %36, %37 : vector<8x32xf32>
    %c0_18 = arith.constant 0 : index
    %c0_19 = arith.constant 0 : index
    %c0_20 = arith.constant 0 : index
    %39 = vector.load %arg6[%c0_18, %c0_19, %c0_20] : memref<2x32x96xbf16, #tpu.memory_space<vmem>>, vector<1x32x96xbf16>
    %40 = vector.shape_cast %39 : vector<1x32x96xbf16> to vector<32x96xbf16>
    %c0_21 = arith.constant 0 : index
    %c0_22 = arith.constant 0 : index
    %c0_23 = arith.constant 0 : index
    %41 = vector.load %arg7[%c0_21, %c0_22, %c0_23] : memref<2x1x96xf32, #tpu.memory_space<vmem>>, vector<1x1x96xf32>
    %42 = vector.shape_cast %41 : vector<1x1x96xf32> to vector<1x96xf32>
    %c0_24 = arith.constant 0 : index
    %c0_25 = arith.constant 0 : index
    %c0_26 = arith.constant 0 : index
    %43 = vector.load %arg9[%c0_24, %c0_25, %c0_26] : memref<2x1x32xf32, #tpu.memory_space<vmem>>, vector<1x1x32xf32>
    %44 = vector.shape_cast %43 : vector<1x1x32xf32> to vector<1x32xf32>
    %c0_27 = arith.constant 0 : index
    %c0_28 = arith.constant 0 : index
    %c0_29 = arith.constant 0 : index
    %45 = vector.load %arg12[%c0_27, %c0_28, %c0_29] : memref<2x32x64xbf16, #tpu.memory_space<vmem>>, vector<1x32x64xbf16>
    %46 = vector.shape_cast %45 : vector<1x32x64xbf16> to vector<32x64xbf16>
    %c0_30 = arith.constant 0 : index
    %c0_31 = arith.constant 0 : index
    %c0_32 = arith.constant 0 : index
    %47 = vector.load %arg13[%c0_30, %c0_31, %c0_32] : memref<2x1x64xf32, #tpu.memory_space<vmem>>, vector<1x1x64xf32>
    %48 = vector.shape_cast %47 : vector<1x1x64xf32> to vector<1x64xf32>
    %c0_33 = arith.constant 0 : index
    %c0_34 = arith.constant 0 : index
    %c0_35 = arith.constant 0 : index
    %49 = vector.load %arg14[%c0_33, %c0_34, %c0_35] : memref<2x64x32xbf16, #tpu.memory_space<vmem>>, vector<1x64x32xbf16>
    %50 = vector.shape_cast %49 : vector<1x64x32xbf16> to vector<64x32xbf16>
    %c0_36 = arith.constant 0 : index
    %c0_37 = arith.constant 0 : index
    %c0_38 = arith.constant 0 : index
    %51 = vector.load %arg15[%c0_36, %c0_37, %c0_38] : memref<2x1x32xf32, #tpu.memory_space<vmem>>, vector<1x1x32xf32>
    %52 = vector.shape_cast %51 : vector<1x1x32xf32> to vector<1x32xf32>
    %53 = arith.truncf %38 : vector<8x32xf32> to vector<8x32xbf16>
    %cst_39 = arith.constant dense<0.000000e+00> : vector<8x96xf32>
    %54 = tpu.matmul %53, %40, %cst_39 {dimension_numbers = #tpu.dot_dimension_numbers<[1], [0], [0], [1], [0, 0, 1, 1], [], []>} : vector<8x32xbf16>, vector<32x96xbf16>, vector<8x96xf32> -> vector<8x96xf32>
    %55 = vector.broadcast %42 : vector<1x96xf32> to vector<8x96xf32>
    %56 = arith.addf %54, %55 : vector<8x96xf32>
    %57 = arith.truncf %56 : vector<8x96xf32> to vector<8x96xbf16>
    %cst_40 = arith.constant 0.000000e+00 : f32
    %58 = vector.broadcast %cst_40 : f32 to vector<8x32xf32>
    %59 = vector.extract_strided_slice %57 {offsets = [0, 0], sizes = [8, 8], strides = [1, 1]} : vector<8x96xbf16> to vector<8x8xbf16>
    %60 = vector.extract_strided_slice %57 {offsets = [0, 32], sizes = [8, 8], strides = [1, 1]} : vector<8x96xbf16> to vector<8x8xbf16>
    %61 = vector.extract_strided_slice %57 {offsets = [0, 64], sizes = [8, 8], strides = [1, 1]} : vector<8x96xbf16> to vector<8x8xbf16>
    %cst_41 = arith.constant dense<0.000000e+00> : vector<8x8xf32>
    %62 = tpu.matmul %59, %60, %cst_41 {dimension_numbers = #tpu.dot_dimension_numbers<[1], [1], [0], [0], [0, 0, 1, 0], [], []>} : vector<8x8xbf16>, vector<8x8xbf16>, vector<8x8xf32> -> vector<8x8xf32>
    %63 = vector.broadcast %7 : vector<1x8xf32> to vector<8x8xf32>
    %64 = arith.addf %62, %63 : vector<8x8xf32>
    %cst_42 = arith.constant dense<0xFF800000> : vector<8xf32>
    %65 = vector.multi_reduction <maximumf>, %64, %cst_42 [1] : vector<8x8xf32> to vector<8xf32>
    %66 = vector.shape_cast %65 : vector<8xf32> to vector<8x1xf32>
    %67 = vector.broadcast %66 : vector<8x1xf32> to vector<8x8xf32>
    %68 = arith.subf %64, %67 : vector<8x8xf32>
    %69 = math.exp %68 : vector<8x8xf32>
    %cst_43 = arith.constant dense<0.000000e+00> : vector<8xf32>
    %70 = vector.multi_reduction <add>, %69, %cst_43 [1] : vector<8x8xf32> to vector<8xf32>
    %71 = vector.shape_cast %70 : vector<8xf32> to vector<8x1xf32>
    %72 = tpu.reciprocal %71 {approx = true} : vector<8x1xf32> -> vector<8x1xf32>
    %73 = vector.broadcast %72 : vector<8x1xf32> to vector<8x8xf32>
    %74 = arith.mulf %69, %73 : vector<8x8xf32>
    %75 = arith.mulf %74, %10 : vector<8x8xf32>
    %76 = arith.truncf %75 : vector<8x8xf32> to vector<8x8xbf16>
    %cst_44 = arith.constant dense<0.000000e+00> : vector<8x8xf32>
    %77 = tpu.matmul %76, %61, %cst_44 {dimension_numbers = #tpu.dot_dimension_numbers<[1], [0], [0], [1], [0, 0, 1, 1], [], []>} : vector<8x8xbf16>, vector<8x8xbf16>, vector<8x8xf32> -> vector<8x8xf32>
    %78 = arith.truncf %77 : vector<8x8xf32> to vector<8x8xbf16>
    %c0_45 = arith.constant 0 : index
    %c0_46 = arith.constant 0 : index
    %c0_47 = arith.constant 0 : index
    %c0_48 = arith.constant 0 : index
    %79 = vector.load %arg8[%c0_45, %c0_46, %c0_47, %c0_48] : memref<2x4x8x32xbf16, #tpu.memory_space<vmem>>, vector<1x1x8x32xbf16>
    %80 = vector.shape_cast %79 : vector<1x1x8x32xbf16> to vector<8x32xbf16>
    %cst_49 = arith.constant dense<0.000000e+00> : vector<8x32xf32>
    %81 = tpu.matmul %78, %80, %cst_49 {dimension_numbers = #tpu.dot_dimension_numbers<[1], [0], [0], [1], [0, 0, 1, 1], [], []>} : vector<8x8xbf16>, vector<8x32xbf16>, vector<8x32xf32> -> vector<8x32xf32>
    %82 = arith.addf %58, %81 : vector<8x32xf32>
    %83 = vector.extract_strided_slice %57 {offsets = [0, 8], sizes = [8, 8], strides = [1, 1]} : vector<8x96xbf16> to vector<8x8xbf16>
    %84 = vector.extract_strided_slice %57 {offsets = [0, 40], sizes = [8, 8], strides = [1, 1]} : vector<8x96xbf16> to vector<8x8xbf16>
    %85 = vector.extract_strided_slice %57 {offsets = [0, 72], sizes = [8, 8], strides = [1, 1]} : vector<8x96xbf16> to vector<8x8xbf16>
    %cst_50 = arith.constant dense<0.000000e+00> : vector<8x8xf32>
    %86 = tpu.matmul %83, %84, %cst_50 {dimension_numbers = #tpu.dot_dimension_numbers<[1], [1], [0], [0], [0, 0, 1, 0], [], []>} : vector<8x8xbf16>, vector<8x8xbf16>, vector<8x8xf32> -> vector<8x8xf32>
    %87 = vector.broadcast %7 : vector<1x8xf32> to vector<8x8xf32>
    %88 = arith.addf %86, %87 : vector<8x8xf32>
    %cst_51 = arith.constant dense<0xFF800000> : vector<8xf32>
    %89 = vector.multi_reduction <maximumf>, %88, %cst_51 [1] : vector<8x8xf32> to vector<8xf32>
    %90 = vector.shape_cast %89 : vector<8xf32> to vector<8x1xf32>
    %91 = vector.broadcast %90 : vector<8x1xf32> to vector<8x8xf32>
    %92 = arith.subf %88, %91 : vector<8x8xf32>
    %93 = math.exp %92 : vector<8x8xf32>
    %cst_52 = arith.constant dense<0.000000e+00> : vector<8xf32>
    %94 = vector.multi_reduction <add>, %93, %cst_52 [1] : vector<8x8xf32> to vector<8xf32>
    %95 = vector.shape_cast %94 : vector<8xf32> to vector<8x1xf32>
    %96 = tpu.reciprocal %95 {approx = true} : vector<8x1xf32> -> vector<8x1xf32>
    %97 = vector.broadcast %96 : vector<8x1xf32> to vector<8x8xf32>
    %98 = arith.mulf %93, %97 : vector<8x8xf32>
    %99 = arith.mulf %98, %10 : vector<8x8xf32>
    %100 = arith.truncf %99 : vector<8x8xf32> to vector<8x8xbf16>
    %cst_53 = arith.constant dense<0.000000e+00> : vector<8x8xf32>
    %101 = tpu.matmul %100, %85, %cst_53 {dimension_numbers = #tpu.dot_dimension_numbers<[1], [0], [0], [1], [0, 0, 1, 1], [], []>} : vector<8x8xbf16>, vector<8x8xbf16>, vector<8x8xf32> -> vector<8x8xf32>
    %102 = arith.truncf %101 : vector<8x8xf32> to vector<8x8xbf16>
    %c0_54 = arith.constant 0 : index
    %c1 = arith.constant 1 : index
    %c0_55 = arith.constant 0 : index
    %c0_56 = arith.constant 0 : index
    %103 = vector.load %arg8[%c0_54, %c1, %c0_55, %c0_56] : memref<2x4x8x32xbf16, #tpu.memory_space<vmem>>, vector<1x1x8x32xbf16>
    %104 = vector.shape_cast %103 : vector<1x1x8x32xbf16> to vector<8x32xbf16>
    %cst_57 = arith.constant dense<0.000000e+00> : vector<8x32xf32>
    %105 = tpu.matmul %102, %104, %cst_57 {dimension_numbers = #tpu.dot_dimension_numbers<[1], [0], [0], [1], [0, 0, 1, 1], [], []>} : vector<8x8xbf16>, vector<8x32xbf16>, vector<8x32xf32> -> vector<8x32xf32>
    %106 = arith.addf %82, %105 : vector<8x32xf32>
    %107 = vector.extract_strided_slice %57 {offsets = [0, 16], sizes = [8, 8], strides = [1, 1]} : vector<8x96xbf16> to vector<8x8xbf16>
    %108 = vector.extract_strided_slice %57 {offsets = [0, 48], sizes = [8, 8], strides = [1, 1]} : vector<8x96xbf16> to vector<8x8xbf16>
    %109 = vector.extract_strided_slice %57 {offsets = [0, 80], sizes = [8, 8], strides = [1, 1]} : vector<8x96xbf16> to vector<8x8xbf16>
    %cst_58 = arith.constant dense<0.000000e+00> : vector<8x8xf32>
    %110 = tpu.matmul %107, %108, %cst_58 {dimension_numbers = #tpu.dot_dimension_numbers<[1], [1], [0], [0], [0, 0, 1, 0], [], []>} : vector<8x8xbf16>, vector<8x8xbf16>, vector<8x8xf32> -> vector<8x8xf32>
    %111 = vector.broadcast %7 : vector<1x8xf32> to vector<8x8xf32>
    %112 = arith.addf %110, %111 : vector<8x8xf32>
    %cst_59 = arith.constant dense<0xFF800000> : vector<8xf32>
    %113 = vector.multi_reduction <maximumf>, %112, %cst_59 [1] : vector<8x8xf32> to vector<8xf32>
    %114 = vector.shape_cast %113 : vector<8xf32> to vector<8x1xf32>
    %115 = vector.broadcast %114 : vector<8x1xf32> to vector<8x8xf32>
    %116 = arith.subf %112, %115 : vector<8x8xf32>
    %117 = math.exp %116 : vector<8x8xf32>
    %cst_60 = arith.constant dense<0.000000e+00> : vector<8xf32>
    %118 = vector.multi_reduction <add>, %117, %cst_60 [1] : vector<8x8xf32> to vector<8xf32>
    %119 = vector.shape_cast %118 : vector<8xf32> to vector<8x1xf32>
    %120 = tpu.reciprocal %119 {approx = true} : vector<8x1xf32> -> vector<8x1xf32>
    %121 = vector.broadcast %120 : vector<8x1xf32> to vector<8x8xf32>
    %122 = arith.mulf %117, %121 : vector<8x8xf32>
    %123 = arith.mulf %122, %10 : vector<8x8xf32>
    %124 = arith.truncf %123 : vector<8x8xf32> to vector<8x8xbf16>
    %cst_61 = arith.constant dense<0.000000e+00> : vector<8x8xf32>
    %125 = tpu.matmul %124, %109, %cst_61 {dimension_numbers = #tpu.dot_dimension_numbers<[1], [0], [0], [1], [0, 0, 1, 1], [], []>} : vector<8x8xbf16>, vector<8x8xbf16>, vector<8x8xf32> -> vector<8x8xf32>
    %126 = arith.truncf %125 : vector<8x8xf32> to vector<8x8xbf16>
    %c0_62 = arith.constant 0 : index
    %c2 = arith.constant 2 : index
    %c0_63 = arith.constant 0 : index
    %c0_64 = arith.constant 0 : index
    %127 = vector.load %arg8[%c0_62, %c2, %c0_63, %c0_64] : memref<2x4x8x32xbf16, #tpu.memory_space<vmem>>, vector<1x1x8x32xbf16>
    %128 = vector.shape_cast %127 : vector<1x1x8x32xbf16> to vector<8x32xbf16>
    %cst_65 = arith.constant dense<0.000000e+00> : vector<8x32xf32>
    %129 = tpu.matmul %126, %128, %cst_65 {dimension_numbers = #tpu.dot_dimension_numbers<[1], [0], [0], [1], [0, 0, 1, 1], [], []>} : vector<8x8xbf16>, vector<8x32xbf16>, vector<8x32xf32> -> vector<8x32xf32>
    %130 = arith.addf %106, %129 : vector<8x32xf32>
    %131 = vector.extract_strided_slice %57 {offsets = [0, 24], sizes = [8, 8], strides = [1, 1]} : vector<8x96xbf16> to vector<8x8xbf16>
    %132 = vector.extract_strided_slice %57 {offsets = [0, 56], sizes = [8, 8], strides = [1, 1]} : vector<8x96xbf16> to vector<8x8xbf16>
    %133 = vector.extract_strided_slice %57 {offsets = [0, 88], sizes = [8, 8], strides = [1, 1]} : vector<8x96xbf16> to vector<8x8xbf16>
    %cst_66 = arith.constant dense<0.000000e+00> : vector<8x8xf32>
    %134 = tpu.matmul %131, %132, %cst_66 {dimension_numbers = #tpu.dot_dimension_numbers<[1], [1], [0], [0], [0, 0, 1, 0], [], []>} : vector<8x8xbf16>, vector<8x8xbf16>, vector<8x8xf32> -> vector<8x8xf32>
    %135 = vector.broadcast %7 : vector<1x8xf32> to vector<8x8xf32>
    %136 = arith.addf %134, %135 : vector<8x8xf32>
    %cst_67 = arith.constant dense<0xFF800000> : vector<8xf32>
    %137 = vector.multi_reduction <maximumf>, %136, %cst_67 [1] : vector<8x8xf32> to vector<8xf32>
    %138 = vector.shape_cast %137 : vector<8xf32> to vector<8x1xf32>
    %139 = vector.broadcast %138 : vector<8x1xf32> to vector<8x8xf32>
    %140 = arith.subf %136, %139 : vector<8x8xf32>
    %141 = math.exp %140 : vector<8x8xf32>
    %cst_68 = arith.constant dense<0.000000e+00> : vector<8xf32>
    %142 = vector.multi_reduction <add>, %141, %cst_68 [1] : vector<8x8xf32> to vector<8xf32>
    %143 = vector.shape_cast %142 : vector<8xf32> to vector<8x1xf32>
    %144 = tpu.reciprocal %143 {approx = true} : vector<8x1xf32> -> vector<8x1xf32>
    %145 = vector.broadcast %144 : vector<8x1xf32> to vector<8x8xf32>
    %146 = arith.mulf %141, %145 : vector<8x8xf32>
    %147 = arith.mulf %146, %10 : vector<8x8xf32>
    %148 = arith.truncf %147 : vector<8x8xf32> to vector<8x8xbf16>
    %cst_69 = arith.constant dense<0.000000e+00> : vector<8x8xf32>
    %149 = tpu.matmul %148, %133, %cst_69 {dimension_numbers = #tpu.dot_dimension_numbers<[1], [0], [0], [1], [0, 0, 1, 1], [], []>} : vector<8x8xbf16>, vector<8x8xbf16>, vector<8x8xf32> -> vector<8x8xf32>
    %150 = arith.truncf %149 : vector<8x8xf32> to vector<8x8xbf16>
    %c0_70 = arith.constant 0 : index
    %c3 = arith.constant 3 : index
    %c0_71 = arith.constant 0 : index
    %c0_72 = arith.constant 0 : index
    %151 = vector.load %arg8[%c0_70, %c3, %c0_71, %c0_72] : memref<2x4x8x32xbf16, #tpu.memory_space<vmem>>, vector<1x1x8x32xbf16>
    %152 = vector.shape_cast %151 : vector<1x1x8x32xbf16> to vector<8x32xbf16>
    %cst_73 = arith.constant dense<0.000000e+00> : vector<8x32xf32>
    %153 = tpu.matmul %150, %152, %cst_73 {dimension_numbers = #tpu.dot_dimension_numbers<[1], [0], [0], [1], [0, 0, 1, 1], [], []>} : vector<8x8xbf16>, vector<8x32xbf16>, vector<8x32xf32> -> vector<8x32xf32>
    %154 = arith.addf %130, %153 : vector<8x32xf32>
    %155 = vector.broadcast %44 : vector<1x32xf32> to vector<8x32xf32>
    %156 = arith.addf %154, %155 : vector<8x32xf32>
    %157 = arith.addf %38, %156 : vector<8x32xf32>
    %c0_74 = arith.constant 0 : index
    %c0_75 = arith.constant 0 : index
    %c0_76 = arith.constant 0 : index
    %158 = vector.load %arg10[%c0_74, %c0_75, %c0_76] : memref<2x1x32xf32, #tpu.memory_space<vmem>>, vector<1x1x32xf32>
    %159 = vector.shape_cast %158 : vector<1x1x32xf32> to vector<1x32xf32>
    %c0_77 = arith.constant 0 : index
    %c0_78 = arith.constant 0 : index
    %c0_79 = arith.constant 0 : index
    %160 = vector.load %arg11[%c0_77, %c0_78, %c0_79] : memref<2x1x32xf32, #tpu.memory_space<vmem>>, vector<1x1x32xf32>
    %161 = vector.shape_cast %160 : vector<1x1x32xf32> to vector<1x32xf32>
    %cst_80 = arith.constant dense<0.000000e+00> : vector<8xf32>
    %162 = vector.multi_reduction <add>, %157, %cst_80 [1] : vector<8x32xf32> to vector<8xf32>
    %163 = vector.shape_cast %162 : vector<8xf32> to vector<8x1xf32>
    %cst_81 = arith.constant 3.200000e+01 : f32
    %164 = vector.broadcast %cst_81 : f32 to vector<8x1xf32>
    %165 = arith.divf %163, %164 : vector<8x1xf32>
    %166 = vector.broadcast %165 : vector<8x1xf32> to vector<8x32xf32>
    %167 = arith.subf %157, %166 : vector<8x32xf32>
    %168 = arith.mulf %167, %167 : vector<8x32xf32>
    %cst_82 = arith.constant dense<0.000000e+00> : vector<8xf32>
    %169 = vector.multi_reduction <add>, %168, %cst_82 [1] : vector<8x32xf32> to vector<8xf32>
    %170 = vector.shape_cast %169 : vector<8xf32> to vector<8x1xf32>
    %cst_83 = arith.constant 3.200000e+01 : f32
    %171 = vector.broadcast %cst_83 : f32 to vector<8x1xf32>
    %172 = arith.divf %170, %171 : vector<8x1xf32>
    %173 = vector.broadcast %165 : vector<8x1xf32> to vector<8x32xf32>
    %174 = arith.subf %157, %173 : vector<8x32xf32>
    %cst_84 = arith.constant 1.000000e-07 : f32
    %175 = vector.broadcast %cst_84 : f32 to vector<8x1xf32>
    %176 = arith.addf %172, %175 : vector<8x1xf32>
    %177 = math.rsqrt %176 : vector<8x1xf32>
    %178 = vector.broadcast %177 : vector<8x1xf32> to vector<8x32xf32>
    %179 = arith.mulf %174, %178 : vector<8x32xf32>
    %180 = vector.broadcast %159 : vector<1x32xf32> to vector<8x32xf32>
    %181 = arith.mulf %179, %180 : vector<8x32xf32>
    %182 = vector.broadcast %161 : vector<1x32xf32> to vector<8x32xf32>
    %183 = arith.addf %181, %182 : vector<8x32xf32>
    %184 = arith.truncf %183 : vector<8x32xf32> to vector<8x32xbf16>
    %cst_85 = arith.constant dense<0.000000e+00> : vector<8x64xf32>
    %185 = tpu.matmul %184, %46, %cst_85 {dimension_numbers = #tpu.dot_dimension_numbers<[1], [0], [0], [1], [0, 0, 1, 1], [], []>} : vector<8x32xbf16>, vector<32x64xbf16>, vector<8x64xf32> -> vector<8x64xf32>
    %186 = vector.broadcast %48 : vector<1x64xf32> to vector<8x64xf32>
    %187 = arith.addf %185, %186 : vector<8x64xf32>
    %cst_86 = arith.constant 5.000000e-01 : f32
    %188 = vector.broadcast %cst_86 : f32 to vector<8x64xf32>
    %189 = arith.mulf %187, %188 : vector<8x64xf32>
    %cst_87 = arith.constant 0.707106769 : f32
    %190 = vector.broadcast %cst_87 : f32 to vector<8x64xf32>
    %191 = arith.mulf %187, %190 : vector<8x64xf32>
    %cst_88 = arith.constant 0.000000e+00 : f32
    %192 = vector.broadcast %cst_88 : f32 to vector<8x64xf32>
    %193 = arith.cmpf oge, %191, %192 : vector<8x64xf32>
    %cst_89 = arith.constant 1.000000e+00 : f32
    %cst_90 = arith.constant -1.000000e+00 : f32
    %194 = vector.broadcast %cst_89 : f32 to vector<8x64xf32>
    %195 = vector.broadcast %cst_90 : f32 to vector<8x64xf32>
    %196 = arith.select %193, %194, %195 : vector<8x64xi1>, vector<8x64xf32>
    %197 = math.absf %191 : vector<8x64xf32>
    %cst_91 = arith.constant 0.327591091 : f32
    %198 = vector.broadcast %cst_91 : f32 to vector<8x64xf32>
    %199 = arith.mulf %198, %197 : vector<8x64xf32>
    %cst_92 = arith.constant 1.000000e+00 : f32
    %200 = vector.broadcast %cst_92 : f32 to vector<8x64xf32>
    %201 = arith.addf %200, %199 : vector<8x64xf32>
    %cst_93 = arith.constant 1.000000e+00 : f32
    %202 = vector.broadcast %cst_93 : f32 to vector<8x64xf32>
    %203 = arith.divf %202, %201 : vector<8x64xf32>
    %cst_94 = arith.constant 1.06140542 : f32
    %204 = vector.broadcast %cst_94 : f32 to vector<8x64xf32>
    %205 = arith.mulf %204, %203 : vector<8x64xf32>
    %cst_95 = arith.constant -1.45315206 : f32
    %206 = vector.broadcast %cst_95 : f32 to vector<8x64xf32>
    %207 = arith.addf %205, %206 : vector<8x64xf32>
    %208 = arith.mulf %207, %203 : vector<8x64xf32>
    %cst_96 = arith.constant 1.42141378 : f32
    %209 = vector.broadcast %cst_96 : f32 to vector<8x64xf32>
    %210 = arith.addf %208, %209 : vector<8x64xf32>
    %211 = arith.mulf %210, %203 : vector<8x64xf32>
    %cst_97 = arith.constant -0.284496725 : f32
    %212 = vector.broadcast %cst_97 : f32 to vector<8x64xf32>
    %213 = arith.addf %211, %212 : vector<8x64xf32>
    %214 = arith.mulf %213, %203 : vector<8x64xf32>
    %cst_98 = arith.constant 0.254829586 : f32
    %215 = vector.broadcast %cst_98 : f32 to vector<8x64xf32>
    %216 = arith.addf %214, %215 : vector<8x64xf32>
    %217 = arith.mulf %216, %203 : vector<8x64xf32>
    %cst_99 = arith.constant 0.000000e+00 : f32
    %218 = vector.broadcast %cst_99 : f32 to vector<8x64xf32>
    %219 = arith.subf %218, %197 : vector<8x64xf32>
    %220 = arith.mulf %219, %197 : vector<8x64xf32>
    %221 = math.exp %220 : vector<8x64xf32>
    %222 = arith.mulf %217, %221 : vector<8x64xf32>
    %cst_100 = arith.constant 1.000000e+00 : f32
    %223 = vector.broadcast %cst_100 : f32 to vector<8x64xf32>
    %224 = arith.subf %223, %222 : vector<8x64xf32>
    %225 = arith.mulf %196, %224 : vector<8x64xf32>
    %cst_101 = arith.constant 1.000000e+00 : f32
    %226 = vector.broadcast %cst_101 : f32 to vector<8x64xf32>
    %227 = arith.addf %226, %225 : vector<8x64xf32>
    %228 = arith.mulf %189, %227 : vector<8x64xf32>
    %229 = arith.truncf %228 : vector<8x64xf32> to vector<8x64xbf16>
    %cst_102 = arith.constant dense<0.000000e+00> : vector<8x32xf32>
    %230 = tpu.matmul %229, %50, %cst_102 {dimension_numbers = #tpu.dot_dimension_numbers<[1], [0], [0], [1], [0, 0, 1, 1], [], []>} : vector<8x64xbf16>, vector<64x32xbf16>, vector<8x32xf32> -> vector<8x32xf32>
    %231 = vector.broadcast %52 : vector<1x32xf32> to vector<8x32xf32>
    %232 = arith.addf %230, %231 : vector<8x32xf32>
    %233 = arith.addf %183, %232 : vector<8x32xf32>
    %c0_103 = arith.constant 0 : index
    %c0_104 = arith.constant 0 : index
    %c0_105 = arith.constant 0 : index
    %234 = vector.load %arg16[%c0_103, %c0_104, %c0_105] : memref<2x1x32xf32, #tpu.memory_space<vmem>>, vector<1x1x32xf32>
    %235 = vector.shape_cast %234 : vector<1x1x32xf32> to vector<1x32xf32>
    %c0_106 = arith.constant 0 : index
    %c0_107 = arith.constant 0 : index
    %c0_108 = arith.constant 0 : index
    %236 = vector.load %arg17[%c0_106, %c0_107, %c0_108] : memref<2x1x32xf32, #tpu.memory_space<vmem>>, vector<1x1x32xf32>
    %237 = vector.shape_cast %236 : vector<1x1x32xf32> to vector<1x32xf32>
    %cst_109 = arith.constant dense<0.000000e+00> : vector<8xf32>
    %238 = vector.multi_reduction <add>, %233, %cst_109 [1] : vector<8x32xf32> to vector<8xf32>
    %239 = vector.shape_cast %238 : vector<8xf32> to vector<8x1xf32>
    %cst_110 = arith.constant 3.200000e+01 : f32
    %240 = vector.broadcast %cst_110 : f32 to vector<8x1xf32>
    %241 = arith.divf %239, %240 : vector<8x1xf32>
    %242 = vector.broadcast %241 : vector<8x1xf32> to vector<8x32xf32>
    %243 = arith.subf %233, %242 : vector<8x32xf32>
    %244 = arith.mulf %243, %243 : vector<8x32xf32>
    %cst_111 = arith.constant dense<0.000000e+00> : vector<8xf32>
    %245 = vector.multi_reduction <add>, %244, %cst_111 [1] : vector<8x32xf32> to vector<8xf32>
    %246 = vector.shape_cast %245 : vector<8xf32> to vector<8x1xf32>
    %cst_112 = arith.constant 3.200000e+01 : f32
    %247 = vector.broadcast %cst_112 : f32 to vector<8x1xf32>
    %248 = arith.divf %246, %247 : vector<8x1xf32>
    %249 = vector.broadcast %241 : vector<8x1xf32> to vector<8x32xf32>
    %250 = arith.subf %233, %249 : vector<8x32xf32>
    %cst_113 = arith.constant 1.000000e-07 : f32
    %251 = vector.broadcast %cst_113 : f32 to vector<8x1xf32>
    %252 = arith.addf %248, %251 : vector<8x1xf32>
    %253 = math.rsqrt %252 : vector<8x1xf32>
    %254 = vector.broadcast %253 : vector<8x1xf32> to vector<8x32xf32>
    %255 = arith.mulf %250, %254 : vector<8x32xf32>
    %256 = vector.broadcast %235 : vector<1x32xf32> to vector<8x32xf32>
    %257 = arith.mulf %255, %256 : vector<8x32xf32>
    %258 = vector.broadcast %237 : vector<1x32xf32> to vector<8x32xf32>
    %259 = arith.addf %257, %258 : vector<8x32xf32>
    %c0_114 = arith.constant 0 : index
    %c0_115 = arith.constant 0 : index
    %c0_116 = arith.constant 0 : index
    %c0_117 = arith.constant 0 : index
    %260 = vector.load %arg18[%c0_114, %c0_115, %c0_116, %c0_117] : memref<2x1x8x32xf32, #tpu.memory_space<vmem>>, vector<1x1x8x32xf32>
    %261 = vector.shape_cast %260 : vector<1x1x8x32xf32> to vector<8x32xf32>
    %262 = vector.shape_cast %259 : vector<8x32xf32> to vector<1x1x8x32xf32>
    tpu.vector_store %arg18[%c0_114, %c0_115, %c0_116, %c0_117], %262 {strides = array<i32>} : memref<2x1x8x32xf32, #tpu.memory_space<vmem>>, vector<1x1x8x32xf32>,
    %c1_118 = arith.constant 1 : index
    %c0_119 = arith.constant 0 : index
    %c0_120 = arith.constant 0 : index
    %263 = vector.load %arg6[%c1_118, %c0_119, %c0_120] : memref<2x32x96xbf16, #tpu.memory_space<vmem>>, vector<1x32x96xbf16>
    %264 = vector.shape_cast %263 : vector<1x32x96xbf16> to vector<32x96xbf16>
    %c1_121 = arith.constant 1 : index
    %c0_122 = arith.constant 0 : index
    %c0_123 = arith.constant 0 : index
    %265 = vector.load %arg7[%c1_121, %c0_122, %c0_123] : memref<2x1x96xf32, #tpu.memory_space<vmem>>, vector<1x1x96xf32>
    %266 = vector.shape_cast %265 : vector<1x1x96xf32> to vector<1x96xf32>
    %c1_124 = arith.constant 1 : index
    %c0_125 = arith.constant 0 : index
    %c0_126 = arith.constant 0 : index
    %267 = vector.load %arg9[%c1_124, %c0_125, %c0_126] : memref<2x1x32xf32, #tpu.memory_space<vmem>>, vector<1x1x32xf32>
    %268 = vector.shape_cast %267 : vector<1x1x32xf32> to vector<1x32xf32>
    %c1_127 = arith.constant 1 : index
    %c0_128 = arith.constant 0 : index
    %c0_129 = arith.constant 0 : index
    %269 = vector.load %arg12[%c1_127, %c0_128, %c0_129] : memref<2x32x64xbf16, #tpu.memory_space<vmem>>, vector<1x32x64xbf16>
    %270 = vector.shape_cast %269 : vector<1x32x64xbf16> to vector<32x64xbf16>
    %c1_130 = arith.constant 1 : index
    %c0_131 = arith.constant 0 : index
    %c0_132 = arith.constant 0 : index
    %271 = vector.load %arg13[%c1_130, %c0_131, %c0_132] : memref<2x1x64xf32, #tpu.memory_space<vmem>>, vector<1x1x64xf32>
    %272 = vector.shape_cast %271 : vector<1x1x64xf32> to vector<1x64xf32>
    %c1_133 = arith.constant 1 : index
    %c0_134 = arith.constant 0 : index
    %c0_135 = arith.constant 0 : index
    %273 = vector.load %arg14[%c1_133, %c0_134, %c0_135] : memref<2x64x32xbf16, #tpu.memory_space<vmem>>, vector<1x64x32xbf16>
    %274 = vector.shape_cast %273 : vector<1x64x32xbf16> to vector<64x32xbf16>
    %c1_136 = arith.constant 1 : index
    %c0_137 = arith.constant 0 : index
    %c0_138 = arith.constant 0 : index
    %275 = vector.load %arg15[%c1_136, %c0_137, %c0_138] : memref<2x1x32xf32, #tpu.memory_space<vmem>>, vector<1x1x32xf32>
    %276 = vector.shape_cast %275 : vector<1x1x32xf32> to vector<1x32xf32>
    %277 = arith.truncf %259 : vector<8x32xf32> to vector<8x32xbf16>
    %cst_139 = arith.constant dense<0.000000e+00> : vector<8x96xf32>
    %278 = tpu.matmul %277, %264, %cst_139 {dimension_numbers = #tpu.dot_dimension_numbers<[1], [0], [0], [1], [0, 0, 1, 1], [], []>} : vector<8x32xbf16>, vector<32x96xbf16>, vector<8x96xf32> -> vector<8x96xf32>
    %279 = vector.broadcast %266 : vector<1x96xf32> to vector<8x96xf32>
    %280 = arith.addf %278, %279 : vector<8x96xf32>
    %281 = arith.truncf %280 : vector<8x96xf32> to vector<8x96xbf16>
    %cst_140 = arith.constant 0.000000e+00 : f32
    %282 = vector.broadcast %cst_140 : f32 to vector<8x32xf32>
    %283 = vector.extract_strided_slice %281 {offsets = [0, 0], sizes = [8, 8], strides = [1, 1]} : vector<8x96xbf16> to vector<8x8xbf16>
    %284 = vector.extract_strided_slice %281 {offsets = [0, 32], sizes = [8, 8], strides = [1, 1]} : vector<8x96xbf16> to vector<8x8xbf16>
    %285 = vector.extract_strided_slice %281 {offsets = [0, 64], sizes = [8, 8], strides = [1, 1]} : vector<8x96xbf16> to vector<8x8xbf16>
    %cst_141 = arith.constant dense<0.000000e+00> : vector<8x8xf32>
    %286 = tpu.matmul %283, %284, %cst_141 {dimension_numbers = #tpu.dot_dimension_numbers<[1], [1], [0], [0], [0, 0, 1, 0], [], []>} : vector<8x8xbf16>, vector<8x8xbf16>, vector<8x8xf32> -> vector<8x8xf32>
    %287 = vector.broadcast %7 : vector<1x8xf32> to vector<8x8xf32>
    %288 = arith.addf %286, %287 : vector<8x8xf32>
    %cst_142 = arith.constant dense<0xFF800000> : vector<8xf32>
    %289 = vector.multi_reduction <maximumf>, %288, %cst_142 [1] : vector<8x8xf32> to vector<8xf32>
    %290 = vector.shape_cast %289 : vector<8xf32> to vector<8x1xf32>
    %291 = vector.broadcast %290 : vector<8x1xf32> to vector<8x8xf32>
    %292 = arith.subf %288, %291 : vector<8x8xf32>
    %293 = math.exp %292 : vector<8x8xf32>
    %cst_143 = arith.constant dense<0.000000e+00> : vector<8xf32>
    %294 = vector.multi_reduction <add>, %293, %cst_143 [1] : vector<8x8xf32> to vector<8xf32>
    %295 = vector.shape_cast %294 : vector<8xf32> to vector<8x1xf32>
    %296 = tpu.reciprocal %295 {approx = true} : vector<8x1xf32> -> vector<8x1xf32>
    %297 = vector.broadcast %296 : vector<8x1xf32> to vector<8x8xf32>
    %298 = arith.mulf %293, %297 : vector<8x8xf32>
    %299 = arith.mulf %298, %10 : vector<8x8xf32>
    %300 = arith.truncf %299 : vector<8x8xf32> to vector<8x8xbf16>
    %cst_144 = arith.constant dense<0.000000e+00> : vector<8x8xf32>
    %301 = tpu.matmul %300, %285, %cst_144 {dimension_numbers = #tpu.dot_dimension_numbers<[1], [0], [0], [1], [0, 0, 1, 1], [], []>} : vector<8x8xbf16>, vector<8x8xbf16>, vector<8x8xf32> -> vector<8x8xf32>
    %302 = arith.truncf %301 : vector<8x8xf32> to vector<8x8xbf16>
    %c1_145 = arith.constant 1 : index
    %c0_146 = arith.constant 0 : index
    %c0_147 = arith.constant 0 : index
    %c0_148 = arith.constant 0 : index
    %303 = vector.load %arg8[%c1_145, %c0_146, %c0_147, %c0_148] : memref<2x4x8x32xbf16, #tpu.memory_space<vmem>>, vector<1x1x8x32xbf16>
    %304 = vector.shape_cast %303 : vector<1x1x8x32xbf16> to vector<8x32xbf16>
    %cst_149 = arith.constant dense<0.000000e+00> : vector<8x32xf32>
    %305 = tpu.matmul %302, %304, %cst_149 {dimension_numbers = #tpu.dot_dimension_numbers<[1], [0], [0], [1], [0, 0, 1, 1], [], []>} : vector<8x8xbf16>, vector<8x32xbf16>, vector<8x32xf32> -> vector<8x32xf32>
    %306 = arith.addf %282, %305 : vector<8x32xf32>
    %307 = vector.extract_strided_slice %281 {offsets = [0, 8], sizes = [8, 8], strides = [1, 1]} : vector<8x96xbf16> to vector<8x8xbf16>
    %308 = vector.extract_strided_slice %281 {offsets = [0, 40], sizes = [8, 8], strides = [1, 1]} : vector<8x96xbf16> to vector<8x8xbf16>
    %309 = vector.extract_strided_slice %281 {offsets = [0, 72], sizes = [8, 8], strides = [1, 1]} : vector<8x96xbf16> to vector<8x8xbf16>
    %cst_150 = arith.constant dense<0.000000e+00> : vector<8x8xf32>
    %310 = tpu.matmul %307, %308, %cst_150 {dimension_numbers = #tpu.dot_dimension_numbers<[1], [1], [0], [0], [0, 0, 1, 0], [], []>} : vector<8x8xbf16>, vector<8x8xbf16>, vector<8x8xf32> -> vector<8x8xf32>
    %311 = vector.broadcast %7 : vector<1x8xf32> to vector<8x8xf32>
    %312 = arith.addf %310, %311 : vector<8x8xf32>
    %cst_151 = arith.constant dense<0xFF800000> : vector<8xf32>
    %313 = vector.multi_reduction <maximumf>, %312, %cst_151 [1] : vector<8x8xf32> to vector<8xf32>
    %314 = vector.shape_cast %313 : vector<8xf32> to vector<8x1xf32>
    %315 = vector.broadcast %314 : vector<8x1xf32> to vector<8x8xf32>
    %316 = arith.subf %312, %315 : vector<8x8xf32>
    %317 = math.exp %316 : vector<8x8xf32>
    %cst_152 = arith.constant dense<0.000000e+00> : vector<8xf32>
    %318 = vector.multi_reduction <add>, %317, %cst_152 [1] : vector<8x8xf32> to vector<8xf32>
    %319 = vector.shape_cast %318 : vector<8xf32> to vector<8x1xf32>
    %320 = tpu.reciprocal %319 {approx = true} : vector<8x1xf32> -> vector<8x1xf32>
    %321 = vector.broadcast %320 : vector<8x1xf32> to vector<8x8xf32>
    %322 = arith.mulf %317, %321 : vector<8x8xf32>
    %323 = arith.mulf %322, %10 : vector<8x8xf32>
    %324 = arith.truncf %323 : vector<8x8xf32> to vector<8x8xbf16>
    %cst_153 = arith.constant dense<0.000000e+00> : vector<8x8xf32>
    %325 = tpu.matmul %324, %309, %cst_153 {dimension_numbers = #tpu.dot_dimension_numbers<[1], [0], [0], [1], [0, 0, 1, 1], [], []>} : vector<8x8xbf16>, vector<8x8xbf16>, vector<8x8xf32> -> vector<8x8xf32>
    %326 = arith.truncf %325 : vector<8x8xf32> to vector<8x8xbf16>
    %c1_154 = arith.constant 1 : index
    %c1_155 = arith.constant 1 : index
    %c0_156 = arith.constant 0 : index
    %c0_157 = arith.constant 0 : index
    %327 = vector.load %arg8[%c1_154, %c1_155, %c0_156, %c0_157] : memref<2x4x8x32xbf16, #tpu.memory_space<vmem>>, vector<1x1x8x32xbf16>
    %328 = vector.shape_cast %327 : vector<1x1x8x32xbf16> to vector<8x32xbf16>
    %cst_158 = arith.constant dense<0.000000e+00> : vector<8x32xf32>
    %329 = tpu.matmul %326, %328, %cst_158 {dimension_numbers = #tpu.dot_dimension_numbers<[1], [0], [0], [1], [0, 0, 1, 1], [], []>} : vector<8x8xbf16>, vector<8x32xbf16>, vector<8x32xf32> -> vector<8x32xf32>
    %330 = arith.addf %306, %329 : vector<8x32xf32>
    %331 = vector.extract_strided_slice %281 {offsets = [0, 16], sizes = [8, 8], strides = [1, 1]} : vector<8x96xbf16> to vector<8x8xbf16>
    %332 = vector.extract_strided_slice %281 {offsets = [0, 48], sizes = [8, 8], strides = [1, 1]} : vector<8x96xbf16> to vector<8x8xbf16>
    %333 = vector.extract_strided_slice %281 {offsets = [0, 80], sizes = [8, 8], strides = [1, 1]} : vector<8x96xbf16> to vector<8x8xbf16>
    %cst_159 = arith.constant dense<0.000000e+00> : vector<8x8xf32>
    %334 = tpu.matmul %331, %332, %cst_159 {dimension_numbers = #tpu.dot_dimension_numbers<[1], [1], [0], [0], [0, 0, 1, 0], [], []>} : vector<8x8xbf16>, vector<8x8xbf16>, vector<8x8xf32> -> vector<8x8xf32>
    %335 = vector.broadcast %7 : vector<1x8xf32> to vector<8x8xf32>
    %336 = arith.addf %334, %335 : vector<8x8xf32>
    %cst_160 = arith.constant dense<0xFF800000> : vector<8xf32>
    %337 = vector.multi_reduction <maximumf>, %336, %cst_160 [1] : vector<8x8xf32> to vector<8xf32>
    %338 = vector.shape_cast %337 : vector<8xf32> to vector<8x1xf32>
    %339 = vector.broadcast %338 : vector<8x1xf32> to vector<8x8xf32>
    %340 = arith.subf %336, %339 : vector<8x8xf32>
    %341 = math.exp %340 : vector<8x8xf32>
    %cst_161 = arith.constant dense<0.000000e+00> : vector<8xf32>
    %342 = vector.multi_reduction <add>, %341, %cst_161 [1] : vector<8x8xf32> to vector<8xf32>
    %343 = vector.shape_cast %342 : vector<8xf32> to vector<8x1xf32>
    %344 = tpu.reciprocal %343 {approx = true} : vector<8x1xf32> -> vector<8x1xf32>
    %345 = vector.broadcast %344 : vector<8x1xf32> to vector<8x8xf32>
    %346 = arith.mulf %341, %345 : vector<8x8xf32>
    %347 = arith.mulf %346, %10 : vector<8x8xf32>
    %348 = arith.truncf %347 : vector<8x8xf32> to vector<8x8xbf16>
    %cst_162 = arith.constant dense<0.000000e+00> : vector<8x8xf32>
    %349 = tpu.matmul %348, %333, %cst_162 {dimension_numbers = #tpu.dot_dimension_numbers<[1], [0], [0], [1], [0, 0, 1, 1], [], []>} : vector<8x8xbf16>, vector<8x8xbf16>, vector<8x8xf32> -> vector<8x8xf32>
    %350 = arith.truncf %349 : vector<8x8xf32> to vector<8x8xbf16>
    %c1_163 = arith.constant 1 : index
    %c2_164 = arith.constant 2 : index
    %c0_165 = arith.constant 0 : index
    %c0_166 = arith.constant 0 : index
    %351 = vector.load %arg8[%c1_163, %c2_164, %c0_165, %c0_166] : memref<2x4x8x32xbf16, #tpu.memory_space<vmem>>, vector<1x1x8x32xbf16>
    %352 = vector.shape_cast %351 : vector<1x1x8x32xbf16> to vector<8x32xbf16>
    %cst_167 = arith.constant dense<0.000000e+00> : vector<8x32xf32>
    %353 = tpu.matmul %350, %352, %cst_167 {dimension_numbers = #tpu.dot_dimension_numbers<[1], [0], [0], [1], [0, 0, 1, 1], [], []>} : vector<8x8xbf16>, vector<8x32xbf16>, vector<8x32xf32> -> vector<8x32xf32>
    %354 = arith.addf %330, %353 : vector<8x32xf32>
    %355 = vector.extract_strided_slice %281 {offsets = [0, 24], sizes = [8, 8], strides = [1, 1]} : vector<8x96xbf16> to vector<8x8xbf16>
    %356 = vector.extract_strided_slice %281 {offsets = [0, 56], sizes = [8, 8], strides = [1, 1]} : vector<8x96xbf16> to vector<8x8xbf16>
    %357 = vector.extract_strided_slice %281 {offsets = [0, 88], sizes = [8, 8], strides = [1, 1]} : vector<8x96xbf16> to vector<8x8xbf16>
    %cst_168 = arith.constant dense<0.000000e+00> : vector<8x8xf32>
    %358 = tpu.matmul %355, %356, %cst_168 {dimension_numbers = #tpu.dot_dimension_numbers<[1], [1], [0], [0], [0, 0, 1, 0], [], []>} : vector<8x8xbf16>, vector<8x8xbf16>, vector<8x8xf32> -> vector<8x8xf32>
    %359 = vector.broadcast %7 : vector<1x8xf32> to vector<8x8xf32>
    %360 = arith.addf %358, %359 : vector<8x8xf32>
    %cst_169 = arith.constant dense<0xFF800000> : vector<8xf32>
    %361 = vector.multi_reduction <maximumf>, %360, %cst_169 [1] : vector<8x8xf32> to vector<8xf32>
    %362 = vector.shape_cast %361 : vector<8xf32> to vector<8x1xf32>
    %363 = vector.broadcast %362 : vector<8x1xf32> to vector<8x8xf32>
    %364 = arith.subf %360, %363 : vector<8x8xf32>
    %365 = math.exp %364 : vector<8x8xf32>
    %cst_170 = arith.constant dense<0.000000e+00> : vector<8xf32>
    %366 = vector.multi_reduction <add>, %365, %cst_170 [1] : vector<8x8xf32> to vector<8xf32>
    %367 = vector.shape_cast %366 : vector<8xf32> to vector<8x1xf32>
    %368 = tpu.reciprocal %367 {approx = true} : vector<8x1xf32> -> vector<8x1xf32>
    %369 = vector.broadcast %368 : vector<8x1xf32> to vector<8x8xf32>
    %370 = arith.mulf %365, %369 : vector<8x8xf32>
    %371 = arith.mulf %370, %10 : vector<8x8xf32>
    %372 = arith.truncf %371 : vector<8x8xf32> to vector<8x8xbf16>
    %cst_171 = arith.constant dense<0.000000e+00> : vector<8x8xf32>
    %373 = tpu.matmul %372, %357, %cst_171 {dimension_numbers = #tpu.dot_dimension_numbers<[1], [0], [0], [1], [0, 0, 1, 1], [], []>} : vector<8x8xbf16>, vector<8x8xbf16>, vector<8x8xf32> -> vector<8x8xf32>
    %374 = arith.truncf %373 : vector<8x8xf32> to vector<8x8xbf16>
    %c1_172 = arith.constant 1 : index
    %c3_173 = arith.constant 3 : index
    %c0_174 = arith.constant 0 : index
    %c0_175 = arith.constant 0 : index
    %375 = vector.load %arg8[%c1_172, %c3_173, %c0_174, %c0_175] : memref<2x4x8x32xbf16, #tpu.memory_space<vmem>>, vector<1x1x8x32xbf16>
    %376 = vector.shape_cast %375 : vector<1x1x8x32xbf16> to vector<8x32xbf16>
    %cst_176 = arith.constant dense<0.000000e+00> : vector<8x32xf32>
    %377 = tpu.matmul %374, %376, %cst_176 {dimension_numbers = #tpu.dot_dimension_numbers<[1], [0], [0], [1], [0, 0, 1, 1], [], []>} : vector<8x8xbf16>, vector<8x32xbf16>, vector<8x32xf32> -> vector<8x32xf32>
    %378 = arith.addf %354, %377 : vector<8x32xf32>
    %379 = vector.broadcast %268 : vector<1x32xf32> to vector<8x32xf32>
    %380 = arith.addf %378, %379 : vector<8x32xf32>
    %381 = arith.addf %259, %380 : vector<8x32xf32>
    %c1_177 = arith.constant 1 : index
    %c0_178 = arith.constant 0 : index
    %c0_179 = arith.constant 0 : index
    %382 = vector.load %arg10[%c1_177, %c0_178, %c0_179] : memref<2x1x32xf32, #tpu.memory_space<vmem>>, vector<1x1x32xf32>
    %383 = vector.shape_cast %382 : vector<1x1x32xf32> to vector<1x32xf32>
    %c1_180 = arith.constant 1 : index
    %c0_181 = arith.constant 0 : index
    %c0_182 = arith.constant 0 : index
    %384 = vector.load %arg11[%c1_180, %c0_181, %c0_182] : memref<2x1x32xf32, #tpu.memory_space<vmem>>, vector<1x1x32xf32>
    %385 = vector.shape_cast %384 : vector<1x1x32xf32> to vector<1x32xf32>
    %cst_183 = arith.constant dense<0.000000e+00> : vector<8xf32>
    %386 = vector.multi_reduction <add>, %381, %cst_183 [1] : vector<8x32xf32> to vector<8xf32>
    %387 = vector.shape_cast %386 : vector<8xf32> to vector<8x1xf32>
    %cst_184 = arith.constant 3.200000e+01 : f32
    %388 = vector.broadcast %cst_184 : f32 to vector<8x1xf32>
    %389 = arith.divf %387, %388 : vector<8x1xf32>
    %390 = vector.broadcast %389 : vector<8x1xf32> to vector<8x32xf32>
    %391 = arith.subf %381, %390 : vector<8x32xf32>
    %392 = arith.mulf %391, %391 : vector<8x32xf32>
    %cst_185 = arith.constant dense<0.000000e+00> : vector<8xf32>
    %393 = vector.multi_reduction <add>, %392, %cst_185 [1] : vector<8x32xf32> to vector<8xf32>
    %394 = vector.shape_cast %393 : vector<8xf32> to vector<8x1xf32>
    %cst_186 = arith.constant 3.200000e+01 : f32
    %395 = vector.broadcast %cst_186 : f32 to vector<8x1xf32>
    %396 = arith.divf %394, %395 : vector<8x1xf32>
    %397 = vector.broadcast %389 : vector<8x1xf32> to vector<8x32xf32>
    %398 = arith.subf %381, %397 : vector<8x32xf32>
    %cst_187 = arith.constant 1.000000e-07 : f32
    %399 = vector.broadcast %cst_187 : f32 to vector<8x1xf32>
    %400 = arith.addf %396, %399 : vector<8x1xf32>
    %401 = math.rsqrt %400 : vector<8x1xf32>
    %402 = vector.broadcast %401 : vector<8x1xf32> to vector<8x32xf32>
    %403 = arith.mulf %398, %402 : vector<8x32xf32>
    %404 = vector.broadcast %383 : vector<1x32xf32> to vector<8x32xf32>
    %405 = arith.mulf %403, %404 : vector<8x32xf32>
    %406 = vector.broadcast %385 : vector<1x32xf32> to vector<8x32xf32>
    %407 = arith.addf %405, %406 : vector<8x32xf32>
    %408 = arith.truncf %407 : vector<8x32xf32> to vector<8x32xbf16>
    %cst_188 = arith.constant dense<0.000000e+00> : vector<8x64xf32>
    %409 = tpu.matmul %408, %270, %cst_188 {dimension_numbers = #tpu.dot_dimension_numbers<[1], [0], [0], [1], [0, 0, 1, 1], [], []>} : vector<8x32xbf16>, vector<32x64xbf16>, vector<8x64xf32> -> vector<8x64xf32>
    %410 = vector.broadcast %272 : vector<1x64xf32> to vector<8x64xf32>
    %411 = arith.addf %409, %410 : vector<8x64xf32>
    %cst_189 = arith.constant 5.000000e-01 : f32
    %412 = vector.broadcast %cst_189 : f32 to vector<8x64xf32>
    %413 = arith.mulf %411, %412 : vector<8x64xf32>
    %cst_190 = arith.constant 0.707106769 : f32
    %414 = vector.broadcast %cst_190 : f32 to vector<8x64xf32>
    %415 = arith.mulf %411, %414 : vector<8x64xf32>
    %cst_191 = arith.constant 0.000000e+00 : f32
    %416 = vector.broadcast %cst_191 : f32 to vector<8x64xf32>
    %417 = arith.cmpf oge, %415, %416 : vector<8x64xf32>
    %cst_192 = arith.constant 1.000000e+00 : f32
    %cst_193 = arith.constant -1.000000e+00 : f32
    %418 = vector.broadcast %cst_192 : f32 to vector<8x64xf32>
    %419 = vector.broadcast %cst_193 : f32 to vector<8x64xf32>
    %420 = arith.select %417, %418, %419 : vector<8x64xi1>, vector<8x64xf32>
    %421 = math.absf %415 : vector<8x64xf32>
    %cst_194 = arith.constant 0.327591091 : f32
    %422 = vector.broadcast %cst_194 : f32 to vector<8x64xf32>
    %423 = arith.mulf %422, %421 : vector<8x64xf32>
    %cst_195 = arith.constant 1.000000e+00 : f32
    %424 = vector.broadcast %cst_195 : f32 to vector<8x64xf32>
    %425 = arith.addf %424, %423 : vector<8x64xf32>
    %cst_196 = arith.constant 1.000000e+00 : f32
    %426 = vector.broadcast %cst_196 : f32 to vector<8x64xf32>
    %427 = arith.divf %426, %425 : vector<8x64xf32>
    %cst_197 = arith.constant 1.06140542 : f32
    %428 = vector.broadcast %cst_197 : f32 to vector<8x64xf32>
    %429 = arith.mulf %428, %427 : vector<8x64xf32>
    %cst_198 = arith.constant -1.45315206 : f32
    %430 = vector.broadcast %cst_198 : f32 to vector<8x64xf32>
    %431 = arith.addf %429, %430 : vector<8x64xf32>
    %432 = arith.mulf %431, %427 : vector<8x64xf32>
    %cst_199 = arith.constant 1.42141378 : f32
    %433 = vector.broadcast %cst_199 : f32 to vector<8x64xf32>
    %434 = arith.addf %432, %433 : vector<8x64xf32>
    %435 = arith.mulf %434, %427 : vector<8x64xf32>
    %cst_200 = arith.constant -0.284496725 : f32
    %436 = vector.broadcast %cst_200 : f32 to vector<8x64xf32>
    %437 = arith.addf %435, %436 : vector<8x64xf32>
    %438 = arith.mulf %437, %427 : vector<8x64xf32>
    %cst_201 = arith.constant 0.254829586 : f32
    %439 = vector.broadcast %cst_201 : f32 to vector<8x64xf32>
    %440 = arith.addf %438, %439 : vector<8x64xf32>
    %441 = arith.mulf %440, %427 : vector<8x64xf32>
    %cst_202 = arith.constant 0.000000e+00 : f32
    %442 = vector.broadcast %cst_202 : f32 to vector<8x64xf32>
    %443 = arith.subf %442, %421 : vector<8x64xf32>
    %444 = arith.mulf %443, %421 : vector<8x64xf32>
    %445 = math.exp %444 : vector<8x64xf32>
    %446 = arith.mulf %441, %445 : vector<8x64xf32>
    %cst_203 = arith.constant 1.000000e+00 : f32
    %447 = vector.broadcast %cst_203 : f32 to vector<8x64xf32>
    %448 = arith.subf %447, %446 : vector<8x64xf32>
    %449 = arith.mulf %420, %448 : vector<8x64xf32>
    %cst_204 = arith.constant 1.000000e+00 : f32
    %450 = vector.broadcast %cst_204 : f32 to vector<8x64xf32>
    %451 = arith.addf %450, %449 : vector<8x64xf32>
    %452 = arith.mulf %413, %451 : vector<8x64xf32>
    %453 = arith.truncf %452 : vector<8x64xf32> to vector<8x64xbf16>
    %cst_205 = arith.constant dense<0.000000e+00> : vector<8x32xf32>
    %454 = tpu.matmul %453, %274, %cst_205 {dimension_numbers = #tpu.dot_dimension_numbers<[1], [0], [0], [1], [0, 0, 1, 1], [], []>} : vector<8x64xbf16>, vector<64x32xbf16>, vector<8x32xf32> -> vector<8x32xf32>
    %455 = vector.broadcast %276 : vector<1x32xf32> to vector<8x32xf32>
    %456 = arith.addf %454, %455 : vector<8x32xf32>
    %457 = arith.addf %407, %456 : vector<8x32xf32>
    %c1_206 = arith.constant 1 : index
    %c0_207 = arith.constant 0 : index
    %c0_208 = arith.constant 0 : index
    %458 = vector.load %arg16[%c1_206, %c0_207, %c0_208] : memref<2x1x32xf32, #tpu.memory_space<vmem>>, vector<1x1x32xf32>
    %459 = vector.shape_cast %458 : vector<1x1x32xf32> to vector<1x32xf32>
    %c1_209 = arith.constant 1 : index
    %c0_210 = arith.constant 0 : index
    %c0_211 = arith.constant 0 : index
    %460 = vector.load %arg17[%c1_209, %c0_210, %c0_211] : memref<2x1x32xf32, #tpu.memory_space<vmem>>, vector<1x1x32xf32>
    %461 = vector.shape_cast %460 : vector<1x1x32xf32> to vector<1x32xf32>
    %cst_212 = arith.constant dense<0.000000e+00> : vector<8xf32>
    %462 = vector.multi_reduction <add>, %457, %cst_212 [1] : vector<8x32xf32> to vector<8xf32>
    %463 = vector.shape_cast %462 : vector<8xf32> to vector<8x1xf32>
    %cst_213 = arith.constant 3.200000e+01 : f32
    %464 = vector.broadcast %cst_213 : f32 to vector<8x1xf32>
    %465 = arith.divf %463, %464 : vector<8x1xf32>
    %466 = vector.broadcast %465 : vector<8x1xf32> to vector<8x32xf32>
    %467 = arith.subf %457, %466 : vector<8x32xf32>
    %468 = arith.mulf %467, %467 : vector<8x32xf32>
    %cst_214 = arith.constant dense<0.000000e+00> : vector<8xf32>
    %469 = vector.multi_reduction <add>, %468, %cst_214 [1] : vector<8x32xf32> to vector<8xf32>
    %470 = vector.shape_cast %469 : vector<8xf32> to vector<8x1xf32>
    %cst_215 = arith.constant 3.200000e+01 : f32
    %471 = vector.broadcast %cst_215 : f32 to vector<8x1xf32>
    %472 = arith.divf %470, %471 : vector<8x1xf32>
    %473 = vector.broadcast %465 : vector<8x1xf32> to vector<8x32xf32>
    %474 = arith.subf %457, %473 : vector<8x32xf32>
    %cst_216 = arith.constant 1.000000e-07 : f32
    %475 = vector.broadcast %cst_216 : f32 to vector<8x1xf32>
    %476 = arith.addf %472, %475 : vector<8x1xf32>
    %477 = math.rsqrt %476 : vector<8x1xf32>
    %478 = vector.broadcast %477 : vector<8x1xf32> to vector<8x32xf32>
    %479 = arith.mulf %474, %478 : vector<8x32xf32>
    %480 = vector.broadcast %459 : vector<1x32xf32> to vector<8x32xf32>
    %481 = arith.mulf %479, %480 : vector<8x32xf32>
    %482 = vector.broadcast %461 : vector<1x32xf32> to vector<8x32xf32>
    %483 = arith.addf %481, %482 : vector<8x32xf32>
    %c1_217 = arith.constant 1 : index
    %c0_218 = arith.constant 0 : index
    %c0_219 = arith.constant 0 : index
    %c0_220 = arith.constant 0 : index
    %484 = vector.load %arg18[%c1_217, %c0_218, %c0_219, %c0_220] : memref<2x1x8x32xf32, #tpu.memory_space<vmem>>, vector<1x1x8x32xf32>
    %485 = vector.shape_cast %484 : vector<1x1x8x32xf32> to vector<8x32xf32>
    %486 = vector.shape_cast %483 : vector<8x32xf32> to vector<1x1x8x32xf32>
    tpu.vector_store %arg18[%c1_217, %c0_218, %c0_219, %c0_220], %486 {strides = array<i32>} : memref<2x1x8x32xf32, #tpu.memory_space<vmem>>, vector<1x1x8x32xf32>,
    return
  }
  func.func @transform_0(%arg0: i32) -> (i32, i32, i32) {
    %c0_i32 = arith.constant 0 : i32
    %c0_i32_0 = arith.constant 0 : i32
    %c0_i32_1 = arith.constant 0 : i32
    return %arg0, %c0_i32, %c0_i32_0 : i32, i32, i32
  }
  func.func @transform_1(%arg0: i32) -> (i32, i32, i32) {
    %c0_i32 = arith.constant 0 : i32
    %c0_i32_0 = arith.constant 0 : i32
    %c0_i32_1 = arith.constant 0 : i32
    return %arg0, %c0_i32, %c0_i32_0 : i32, i32, i32
  }
  func.func @transform_2(%arg0: i32) -> (i32, i32, i32) {
    %c0_i32 = arith.constant 0 : i32
    %c0_i32_0 = arith.constant 0 : i32
    %c0_i32_1 = arith.constant 0 : i32
    return %arg0, %c0_i32, %c0_i32_0 : i32, i32, i32
  }
  func.func @transform_3(%arg0: i32) -> (i32, i32) {
    %c0_i32 = arith.constant 0 : i32
    %c0_i32_0 = arith.constant 0 : i32
    %c0_i32_1 = arith.constant 0 : i32
    return %c0_i32, %c0_i32_0 : i32, i32
  }
  func.func @transform_4(%arg0: i32) -> (i32, i32) {
    %c0_i32 = arith.constant 0 : i32
    %c0_i32_0 = arith.constant 0 : i32
    %c0_i32_1 = arith.constant 0 : i32
    return %c0_i32, %c0_i32_0 : i32, i32
  }
  func.func @transform_5(%arg0: i32) -> (i32, i32, i32) {
    %c0_i32 = arith.constant 0 : i32
    %c0_i32_0 = arith.constant 0 : i32
    %c0_i32_1 = arith.constant 0 : i32
    %c0_i32_2 = arith.constant 0 : i32
    return %c0_i32, %c0_i32_0, %c0_i32_1 : i32, i32, i32
  }
  func.func @transform_6(%arg0: i32) -> (i32, i32, i32) {
    %c0_i32 = arith.constant 0 : i32
    %c0_i32_0 = arith.constant 0 : i32
    %c0_i32_1 = arith.constant 0 : i32
    %c0_i32_2 = arith.constant 0 : i32
    return %c0_i32, %c0_i32_0, %c0_i32_1 : i32, i32, i32
  }
  func.func @transform_7(%arg0: i32) -> (i32, i32, i32, i32) {
    %c0_i32 = arith.constant 0 : i32
    %c0_i32_0 = arith.constant 0 : i32
    %c0_i32_1 = arith.constant 0 : i32
    %c0_i32_2 = arith.constant 0 : i32
    %c0_i32_3 = arith.constant 0 : i32
    return %c0_i32, %c0_i32_0, %c0_i32_1, %c0_i32_2 : i32, i32, i32, i32
  }
  func.func @transform_8(%arg0: i32) -> (i32, i32, i32) {
    %c0_i32 = arith.constant 0 : i32
    %c0_i32_0 = arith.constant 0 : i32
    %c0_i32_1 = arith.constant 0 : i32
    %c0_i32_2 = arith.constant 0 : i32
    return %c0_i32, %c0_i32_0, %c0_i32_1 : i32, i32, i32
  }
  func.func @transform_9(%arg0: i32) -> (i32, i32, i32) {
    %c0_i32 = arith.constant 0 : i32
    %c0_i32_0 = arith.constant 0 : i32
    %c0_i32_1 = arith.constant 0 : i32
    %c0_i32_2 = arith.constant 0 : i32
    return %c0_i32, %c0_i32_0, %c0_i32_1 : i32, i32, i32
  }
  func.func @transform_10(%arg0: i32) -> (i32, i32, i32) {
    %c0_i32 = arith.constant 0 : i32
    %c0_i32_0 = arith.constant 0 : i32
    %c0_i32_1 = arith.constant 0 : i32
    %c0_i32_2 = arith.constant 0 : i32
    return %c0_i32, %c0_i32_0, %c0_i32_1 : i32, i32, i32
  }
  func.func @transform_11(%arg0: i32) -> (i32, i32, i32) {
    %c0_i32 = arith.constant 0 : i32
    %c0_i32_0 = arith.constant 0 : i32
    %c0_i32_1 = arith.constant 0 : i32
    %c0_i32_2 = arith.constant 0 : i32
    return %c0_i32, %c0_i32_0, %c0_i32_1 : i32, i32, i32
  }
  func.func @transform_12(%arg0: i32) -> (i32, i32, i32) {
    %c0_i32 = arith.constant 0 : i32
    %c0_i32_0 = arith.constant 0 : i32
    %c0_i32_1 = arith.constant 0 : i32
    %c0_i32_2 = arith.constant 0 : i32
    return %c0_i32, %c0_i32_0, %c0_i32_1 : i32, i32, i32
  }
  func.func @transform_13(%arg0: i32) -> (i32, i32, i32) {
    %c0_i32 = arith.constant 0 : i32
    %c0_i32_0 = arith.constant 0 : i32
    %c0_i32_1 = arith.constant 0 : i32
    %c0_i32_2 = arith.constant 0 : i32
    return %c0_i32, %c0_i32_0, %c0_i32_1 : i32, i32, i32
  }
  func.func @transform_14(%arg0: i32) -> (i32, i32, i32) {
    %c0_i32 = arith.constant 0 : i32
    %c0_i32_0 = arith.constant 0 : i32
    %c0_i32_1 = arith.constant 0 : i32
    %c0_i32_2 = arith.constant 0 : i32
    return %c0_i32, %c0_i32_0, %c0_i32_1 : i32, i32, i32
  }
  func.func @transform_15(%arg0: i32) -> (i32, i32, i32) {
    %c0_i32 = arith.constant 0 : i32
    %c0_i32_0 = arith.constant 0 : i32
    %c0_i32_1 = arith.constant 0 : i32
    %c0_i32_2 = arith.constant 0 : i32
    return %c0_i32, %c0_i32_0, %c0_i32_1 : i32, i32, i32
  }
  func.func @transform_16(%arg0: i32) -> (i32, i32, i32) {
    %c0_i32 = arith.constant 0 : i32
    %c0_i32_0 = arith.constant 0 : i32
    %c0_i32_1 = arith.constant 0 : i32
    %c0_i32_2 = arith.constant 0 : i32
    return %c0_i32, %c0_i32_0, %c0_i32_1 : i32, i32, i32
  }
  func.func @transform_17(%arg0: i32) -> (i32, i32, i32, i32) {
    %c0_i32 = arith.constant 0 : i32
    %c0_i32_0 = arith.constant 0 : i32
    %c0_i32_1 = arith.constant 0 : i32
    %c0_i32_2 = arith.constant 0 : i32
    return %c0_i32, %arg0, %c0_i32_0, %c0_i32_1 : i32, i32, i32, i32
  }
}

</mosaic_0001>

<llo_original>
// kernel: tpu_custom_call.1
$region0: #{tpu_custom_call.1}
  #allocation0 [shape = 'u32[]', space=smem, size = 0x4, offset = 0x4, fixed_abs, tag = 'smem constant byte address 0x4 - core index']
  #allocation1 [shape = 'u32[144,128]{1,0:T(1,128)}', space=vmem, size = 0x12000, scoped, tag = 'internal scratch']
  %s0 = inlined_call_operand.vmem [shape: f32[2,8,32], index: 0, kind: input, shape index: {}]
  %s1 = inlined_call_operand.vmem [shape: f32[2,1,8], index: 1, kind: input, shape index: {}]
  %s2 = inlined_call_operand.vmem [shape: f32[2,8,1], index: 2, kind: input, shape index: {}]
  %s3 = inlined_call_operand.vmem [shape: f32[1,32], index: 3, kind: input, shape index: {}]
  %s4 = inlined_call_operand.hbm [shape: f32[1,32], index: 4, kind: input, shape index: {}]
  %s5 = inlined_call_operand.vmem [shape: bf16[2,32,96], index: 5, kind: input, shape index: {}]
  %s6 = inlined_call_operand.vmem [shape: f32[2,1,96], index: 6, kind: input, shape index: {}]
  %s7 = inlined_call_operand.vmem [shape: bf16[2,4,8,32], index: 7, kind: input, shape index: {}]
  %s8 = inlined_call_operand.vmem [shape: f32[2,1,32], index: 8, kind: input, shape index: {}]
  %s9 = inlined_call_operand.vmem [shape: f32[2,1,32], index: 9, kind: input, shape index: {}]
  %s10 = inlined_call_operand.vmem [shape: f32[2,1,32], index: 10, kind: input, shape index: {}]
  %s11 = inlined_call_operand.vmem [shape: bf16[2,32,64], index: 11, kind: input, shape index: {}]
  %s12 = inlined_call_operand.vmem [shape: f32[2,1,64], index: 12, kind: input, shape index: {}]
  %s13 = inlined_call_operand.vmem [shape: bf16[2,64,32], index: 13, kind: input, shape index: {}]
  %s14 = inlined_call_operand.vmem [shape: f32[2,1,32], index: 14, kind: input, shape index: {}]
  %s15 = inlined_call_operand.vmem [shape: f32[2,1,32], index: 15, kind: input, shape index: {}]
  %s16 = inlined_call_operand.vmem [shape: f32[2,1,32], index: 16, kind: input, shape index: {}]
  %s17 = inlined_call_operand.hbm [shape: f32[2,2,8,32], index: 17, kind: output, shape index: {}]
  %s18 = sld [smem:[#allocation0]]
  $region105: #{tpu_custom_call.1} parent=0
    _
  %s20 = ssub.s32 1, %s18
  %s21 = scalar_select 0, %s20, %s18
  $region1: #{tpu_custom_call.1} parent=0
    #allocation2 [shape = 'u8[512]{0}', space=vmem, size = 0x400, scoped, tag = 'input window, operand 4, single buffered']
    #allocation3 [shape = 's32[2]{0}', space=sflag, size = 0x8, scoped, tag = 'scoped memory for tpu_custom_call.1']
    #allocation4 [shape = 's32[2]{0}', space=sflag, size = 0x8, scoped, tag = 'scoped memory for tpu_custom_call.1']
    #allocation5 [shape = 'u8[16384]{0}', space=vmem, size = 0x4000, scoped, tag = 'output window, operand 0']
    %22 = vsyncpa [#allocation3], 0
    %23 = vsyncpa [#allocation4], 0
    %s24 = scalar_lea.sflag [#allocation4], 1
    %25 = vsyncpa %s24, 0
    loop: start=0, step=1, limit=4
    $region2: #{tpu_custom_call.1} parent=1 // loop_pre_header
      _
    $region3: #{tpu_custom_call.1} parent=1 // loop_header
      %s27 = sphi 0, %s31
      %p28 = scmp.ge.s32.totalorder %s27, 4
      %s37 = sphi 0, %s39
      %s40 = sphi 0, %s37
      %s41 = sphi 0, %s40
      %s57 = sphi 0, %s41
      %s63 = sphi 0, %s65
      %s66 = sphi 0, %s63
      %s67 = sphi 0, %s66
      %s83 = sphi 0, %s67
      %s89 = sphi 0, %s91
      %s92 = sphi 0, %s89
      %s93 = sphi 0, %s92
      %s109 = sphi 0, %s93
      %s113 = sphi 0, %s113
      %s115 = sphi 0, %s113
      %s116 = sphi 0, %s115
      %s130 = sphi 0, %s116
      %s134 = sphi 0, %s134
      %s136 = sphi 0, %s134
      %s137 = sphi 0, %s136
      %s151 = sphi 0, %s137
      %s155 = sphi 0, %s155
      %s157 = sphi 0, %s155
      %s158 = sphi 0, %s157
      %s172 = sphi 0, %s158
      %s176 = sphi 0, %s176
      %s178 = sphi 0, %s176
      %s179 = sphi 0, %s178
      %s193 = sphi 0, %s179
      %s197 = sphi 0, %s197
      %s199 = sphi 0, %s197
      %s200 = sphi 0, %s199
      %s214 = sphi 0, %s200
      %s218 = sphi 0, %s218
      %s220 = sphi 0, %s218
      %s221 = sphi 0, %s220
      %s235 = sphi 0, %s221
      %s239 = sphi 0, %s239
      %s241 = sphi 0, %s239
      %s242 = sphi 0, %s241
      %s256 = sphi 0, %s242
      %s260 = sphi 0, %s260
      %s262 = sphi 0, %s260
      %s263 = sphi 0, %s262
      %s277 = sphi 0, %s263
      %s281 = sphi 0, %s281
      %s283 = sphi 0, %s281
      %s284 = sphi 0, %s283
      %s298 = sphi 0, %s284
      %s302 = sphi 0, %s302
      %s304 = sphi 0, %s302
      %s305 = sphi 0, %s304
      %s319 = sphi 0, %s305
      %s323 = sphi 0, %s323
      %s325 = sphi 0, %s323
      %s326 = sphi 0, %s325
      %s340 = sphi 0, %s326
      %s344 = sphi 0, %s344
      %s346 = sphi 0, %s344
      %s347 = sphi 0, %s346
      %s361 = sphi 0, %s347
      %s365 = sphi 0, %s365
      %s367 = sphi 0, %s365
      %s368 = sphi 0, %s367
      %s382 = sphi 0, %s368
      %s386 = sphi 0, %s386
      %s388 = sphi 0, %s386
      %s389 = sphi 0, %s388
      %s403 = sphi 0, %s389
      %s409 = sphi 0, %s411
      %s412 = sphi 0, %s409
      %s413 = sphi 0, %s412
      %s429 = sphi 0, %s413
    $region4: #{tpu_custom_call.1} parent=1 // loop_header_branch
      %30 = sbr.rel (%p28) target = $region8
    $region5: #{tpu_custom_call.1} parent=1 // loop_body
      %s32 = ssub.s32 %s27, 1
      %s33 = ssub.s32 %s27, 2
      %s34 = sadd.s32 %s27, 1
      %s35 = ssub.s32 %s27, %s34
      %p36 = scmp.eq.s32.totalorder %s35, 0
      %s38 = sadd.s32 %s37, 1
      %s39 = scalar_select %p36, %s37, %s38
      %p42 = pneg %p36
      %p43 = scmp.eq.s32.totalorder %s27, 1
      %p44 = por %p42, %p43
      %p45 = scmp.ne.s32.totalorder %s37, %s40
      %p46 = scmp.eq.s32.totalorder %s27, 0
      %p47 = por %p45, %p46
      %p48 = scmp.ne.s32.totalorder %s37, %s40
      %p49 = scmp.eq.s32.totalorder %s32, 1
      %p50 = por %p48, %p49
      %p51 = scmp.ne.s32.totalorder %s40, %s41
      %p52 = scmp.eq.s32.totalorder %s32, 0
      %p53 = por %p51, %p52
      %p54 = scmp.ne.s32.totalorder %s40, %s41
      %p55 = scmp.eq.s32.totalorder %s33, 1
      %p56 = por %p54, %p55
      %p58 = scmp.ne.s32.totalorder %s41, %s57
      %p59 = scmp.eq.s32.totalorder %s33, 0
      %p60 = por %p58, %p59
      %s61 = ssub.s32 %s27, %s34
      %p62 = scmp.eq.s32.totalorder %s61, 0
      %s64 = sadd.s32 %s63, 1
      %s65 = scalar_select %p62, %s63, %s64
      %p68 = pneg %p62
      %p69 = scmp.eq.s32.totalorder %s27, 1
      %p70 = por %p68, %p69
      %p71 = scmp.ne.s32.totalorder %s63, %s66
      %p72 = scmp.eq.s32.totalorder %s27, 0
      %p73 = por %p71, %p72
      %p74 = scmp.ne.s32.totalorder %s63, %s66
      %p75 = scmp.eq.s32.totalorder %s32, 1
      %p76 = por %p74, %p75
      %p77 = scmp.ne.s32.totalorder %s66, %s67
      %p78 = scmp.eq.s32.totalorder %s32, 0
      %p79 = por %p77, %p78
      %p80 = scmp.ne.s32.totalorder %s66, %s67
      %p81 = scmp.eq.s32.totalorder %s33, 1
      %p82 = por %p80, %p81
      %p84 = scmp.ne.s32.totalorder %s67, %s83
      %p85 = scmp.eq.s32.totalorder %s33, 0
      %p86 = por %p84, %p85
      %s87 = ssub.s32 %s27, %s34
      %p88 = scmp.eq.s32.totalorder %s87, 0
      %s90 = sadd.s32 %s89, 1
      %s91 = scalar_select %p88, %s89, %s90
      %p94 = pneg %p88
      %p95 = scmp.eq.s32.totalorder %s27, 1
      %p96 = por %p94, %p95
      %p97 = scmp.ne.s32.totalorder %s89, %s92
      %p98 = scmp.eq.s32.totalorder %s27, 0
      %p99 = por %p97, %p98
      %p100 = scmp.ne.s32.totalorder %s89, %s92
      %p101 = scmp.eq.s32.totalorder %s32, 1
      %p102 = por %p100, %p101
      %p103 = scmp.ne.s32.totalorder %s92, %s93
      %p104 = scmp.eq.s32.totalorder %s32, 0
      %p105 = por %p103, %p104
      %p106 = scmp.ne.s32.totalorder %s92, %s93
      %p107 = scmp.eq.s32.totalorder %s33, 1
      %p108 = por %p106, %p107
      %p110 = scmp.ne.s32.totalorder %s93, %s109
      %p111 = scmp.eq.s32.totalorder %s33, 0
      %p112 = por %p110, %p111
      %s114 = sadd.s32 %s113, 1
      %p117 = scmp.eq.s32.totalorder %s27, 1
      %p118 = scmp.ne.s32.totalorder %s113, %s115
      %p119 = scmp.eq.s32.totalorder %s27, 0
      %p120 = por %p118, %p119
      %p121 = scmp.ne.s32.totalorder %s113, %s115
      %p122 = scmp.eq.s32.totalorder %s32, 1
      %p123 = por %p121, %p122
      %p124 = scmp.ne.s32.totalorder %s115, %s116
      %p125 = scmp.eq.s32.totalorder %s32, 0
      %p126 = por %p124, %p125
      %p127 = scmp.ne.s32.totalorder %s115, %s116
      %p128 = scmp.eq.s32.totalorder %s33, 1
      %p129 = por %p127, %p128
      %p131 = scmp.ne.s32.totalorder %s116, %s130
      %p132 = scmp.eq.s32.totalorder %s33, 0
      %p133 = por %p131, %p132
      %s135 = sadd.s32 %s134, 1
      %p138 = scmp.eq.s32.totalorder %s27, 1
      %p139 = scmp.ne.s32.totalorder %s134, %s136
      %p140 = scmp.eq.s32.totalorder %s27, 0
      %p141 = por %p139, %p140
      %p142 = scmp.ne.s32.totalorder %s134, %s136
      %p143 = scmp.eq.s32.totalorder %s32, 1
      %p144 = por %p142, %p143
      %p145 = scmp.ne.s32.totalorder %s136, %s137
      %p146 = scmp.eq.s32.totalorder %s32, 0
      %p147 = por %p145, %p146
      %p148 = scmp.ne.s32.totalorder %s136, %s137
      %p149 = scmp.eq.s32.totalorder %s33, 1
      %p150 = por %p148, %p149
      %p152 = scmp.ne.s32.totalorder %s137, %s151
      %p153 = scmp.eq.s32.totalorder %s33, 0
      %p154 = por %p152, %p153
      %s156 = sadd.s32 %s155, 1
      %p159 = scmp.eq.s32.totalorder %s27, 1
      %p160 = scmp.ne.s32.totalorder %s155, %s157
      %p161 = scmp.eq.s32.totalorder %s27, 0
      %p162 = por %p160, %p161
      %p163 = scmp.ne.s32.totalorder %s155, %s157
      %p164 = scmp.eq.s32.totalorder %s32, 1
      %p165 = por %p163, %p164
      %p166 = scmp.ne.s32.totalorder %s157, %s158
      %p167 = scmp.eq.s32.totalorder %s32, 0
      %p168 = por %p166, %p167
      %p169 = scmp.ne.s32.totalorder %s157, %s158
      %p170 = scmp.eq.s32.totalorder %s33, 1
      %p171 = por %p169, %p170
      %p173 = scmp.ne.s32.totalorder %s158, %s172
      %p174 = scmp.eq.s32.totalorder %s33, 0
      %p175 = por %p173, %p174
      %s177 = sadd.s32 %s176, 1
      %p180 = scmp.eq.s32.totalorder %s27, 1
      %p181 = scmp.ne.s32.totalorder %s176, %s178
      %p182 = scmp.eq.s32.totalorder %s27, 0
      %p183 = por %p181, %p182
      %p184 = scmp.ne.s32.totalorder %s176, %s178
      %p185 = scmp.eq.s32.totalorder %s32, 1
      %p186 = por %p184, %p185
      %p187 = scmp.ne.s32.totalorder %s178, %s179
      %p188 = scmp.eq.s32.totalorder %s32, 0
      %p189 = por %p187, %p188
      %p190 = scmp.ne.s32.totalorder %s178, %s179
      %p191 = scmp.eq.s32.totalorder %s33, 1
      %p192 = por %p190, %p191
      %p194 = scmp.ne.s32.totalorder %s179, %s193
      %p195 = scmp.eq.s32.totalorder %s33, 0
      %p196 = por %p194, %p195
      %s198 = sadd.s32 %s197, 1
      %p201 = scmp.eq.s32.totalorder %s27, 1
      %p202 = scmp.ne.s32.totalorder %s197, %s199
      %p203 = scmp.eq.s32.totalorder %s27, 0
      %p204 = por %p202, %p203
      %p205 = scmp.ne.s32.totalorder %s197, %s199
      %p206 = scmp.eq.s32.totalorder %s32, 1
      %p207 = por %p205, %p206
      %p208 = scmp.ne.s32.totalorder %s199, %s200
      %p209 = scmp.eq.s32.totalorder %s32, 0
      %p210 = por %p208, %p209
      %p211 = scmp.ne.s32.totalorder %s199, %s200
      %p212 = scmp.eq.s32.totalorder %s33, 1
      %p213 = por %p211, %p212
      %p215 = scmp.ne.s32.totalorder %s200, %s214
      %p216 = scmp.eq.s32.totalorder %s33, 0
      %p217 = por %p215, %p216
      %s219 = sadd.s32 %s218, 1
      %p222 = scmp.eq.s32.totalorder %s27, 1
      %p223 = scmp.ne.s32.totalorder %s218, %s220
      %p224 = scmp.eq.s32.totalorder %s27, 0
      %p225 = por %p223, %p224
      %p226 = scmp.ne.s32.totalorder %s218, %s220
      %p227 = scmp.eq.s32.totalorder %s32, 1
      %p228 = por %p226, %p227
      %p229 = scmp.ne.s32.totalorder %s220, %s221
      %p230 = scmp.eq.s32.totalorder %s32, 0
      %p231 = por %p229, %p230
      %p232 = scmp.ne.s32.totalorder %s220, %s221
      %p233 = scmp.eq.s32.totalorder %s33, 1
      %p234 = por %p232, %p233
      %p236 = scmp.ne.s32.totalorder %s221, %s235
      %p237 = scmp.eq.s32.totalorder %s33, 0
      %p238 = por %p236, %p237
      %s240 = sadd.s32 %s239, 1
      %p243 = scmp.eq.s32.totalorder %s27, 1
      %p244 = scmp.ne.s32.totalorder %s239, %s241
      %p245 = scmp.eq.s32.totalorder %s27, 0
      %p246 = por %p244, %p245
      %p247 = scmp.ne.s32.totalorder %s239, %s241
      %p248 = scmp.eq.s32.totalorder %s32, 1
      %p249 = por %p247, %p248
      %p250 = scmp.ne.s32.totalorder %s241, %s242
      %p251 = scmp.eq.s32.totalorder %s32, 0
      %p252 = por %p250, %p251
      %p253 = scmp.ne.s32.totalorder %s241, %s242
      %p254 = scmp.eq.s32.totalorder %s33, 1
      %p255 = por %p253, %p254
      %p257 = scmp.ne.s32.totalorder %s242, %s256
      %p258 = scmp.eq.s32.totalorder %s33, 0
      %p259 = por %p257, %p258
      %s261 = sadd.s32 %s260, 1
      %p264 = scmp.eq.s32.totalorder %s27, 1
      %p265 = scmp.ne.s32.totalorder %s260, %s262
      %p266 = scmp.eq.s32.totalorder %s27, 0
      %p267 = por %p265, %p266
      %p268 = scmp.ne.s32.totalorder %s260, %s262
      %p269 = scmp.eq.s32.totalorder %s32, 1
      %p270 = por %p268, %p269
      %p271 = scmp.ne.s32.totalorder %s262, %s263
      %p272 = scmp.eq.s32.totalorder %s32, 0
      %p273 = por %p271, %p272
      %p274 = scmp.ne.s32.totalorder %s262, %s263
      %p275 = scmp.eq.s32.totalorder %s33, 1
      %p276 = por %p274, %p275
      %p278 = scmp.ne.s32.totalorder %s263, %s277
      %p279 = scmp.eq.s32.totalorder %s33, 0
      %p280 = por %p278, %p279
      %s282 = sadd.s32 %s281, 1
      %p285 = scmp.eq.s32.totalorder %s27, 1
      %p286 = scmp.ne.s32.totalorder %s281, %s283
      %p287 = scmp.eq.s32.totalorder %s27, 0
      %p288 = por %p286, %p287
      %p289 = scmp.ne.s32.totalorder %s281, %s283
      %p290 = scmp.eq.s32.totalorder %s32, 1
      %p291 = por %p289, %p290
      %p292 = scmp.ne.s32.totalorder %s283, %s284
      %p293 = scmp.eq.s32.totalorder %s32, 0
      %p294 = por %p292, %p293
      %p295 = scmp.ne.s32.totalorder %s283, %s284
      %p296 = scmp.eq.s32.totalorder %s33, 1
      %p297 = por %p295, %p296
      %p299 = scmp.ne.s32.totalorder %s284, %s298
      %p300 = scmp.eq.s32.totalorder %s33, 0
      %p301 = por %p299, %p300
      %s303 = sadd.s32 %s302, 1
      %p306 = scmp.eq.s32.totalorder %s27, 1
      %p307 = scmp.ne.s32.totalorder %s302, %s304
      %p308 = scmp.eq.s32.totalorder %s27, 0
      %p309 = por %p307, %p308
      %p310 = scmp.ne.s32.totalorder %s302, %s304
      %p311 = scmp.eq.s32.totalorder %s32, 1
      %p312 = por %p310, %p311
      %p313 = scmp.ne.s32.totalorder %s304, %s305
      %p314 = scmp.eq.s32.totalorder %s32, 0
      %p315 = por %p313, %p314
      %p316 = scmp.ne.s32.totalorder %s304, %s305
      %p317 = scmp.eq.s32.totalorder %s33, 1
      %p318 = por %p316, %p317
      %p320 = scmp.ne.s32.totalorder %s305, %s319
      %p321 = scmp.eq.s32.totalorder %s33, 0
      %p322 = por %p320, %p321
      %s324 = sadd.s32 %s323, 1
      %p327 = scmp.eq.s32.totalorder %s27, 1
      %p328 = scmp.ne.s32.totalorder %s323, %s325
      %p329 = scmp.eq.s32.totalorder %s27, 0
      %p330 = por %p328, %p329
      %p331 = scmp.ne.s32.totalorder %s323, %s325
      %p332 = scmp.eq.s32.totalorder %s32, 1
      %p333 = por %p331, %p332
      %p334 = scmp.ne.s32.totalorder %s325, %s326
      %p335 = scmp.eq.s32.totalorder %s32, 0
      %p336 = por %p334, %p335
      %p337 = scmp.ne.s32.totalorder %s325, %s326
      %p338 = scmp.eq.s32.totalorder %s33, 1
      %p339 = por %p337, %p338
      %p341 = scmp.ne.s32.totalorder %s326, %s340
      %p342 = scmp.eq.s32.totalorder %s33, 0
      %p343 = por %p341, %p342
      %s345 = sadd.s32 %s344, 1
      %p348 = scmp.eq.s32.totalorder %s27, 1
      %p349 = scmp.ne.s32.totalorder %s344, %s346
      %p350 = scmp.eq.s32.totalorder %s27, 0
      %p351 = por %p349, %p350
      %p352 = scmp.ne.s32.totalorder %s344, %s346
      %p353 = scmp.eq.s32.totalorder %s32, 1
      %p354 = por %p352, %p353
      %p355 = scmp.ne.s32.totalorder %s346, %s347
      %p356 = scmp.eq.s32.totalorder %s32, 0
      %p357 = por %p355, %p356
      %p358 = scmp.ne.s32.totalorder %s346, %s347
      %p359 = scmp.eq.s32.totalorder %s33, 1
      %p360 = por %p358, %p359
      %p362 = scmp.ne.s32.totalorder %s347, %s361
      %p363 = scmp.eq.s32.totalorder %s33, 0
      %p364 = por %p362, %p363
      %s366 = sadd.s32 %s365, 1
      %p369 = scmp.eq.s32.totalorder %s27, 1
      %p370 = scmp.ne.s32.totalorder %s365, %s367
      %p371 = scmp.eq.s32.totalorder %s27, 0
      %p372 = por %p370, %p371
      %p373 = scmp.ne.s32.totalorder %s365, %s367
      %p374 = scmp.eq.s32.totalorder %s32, 1
      %p375 = por %p373, %p374
      %p376 = scmp.ne.s32.totalorder %s367, %s368
      %p377 = scmp.eq.s32.totalorder %s32, 0
      %p378 = por %p376, %p377
      %p379 = scmp.ne.s32.totalorder %s367, %s368
      %p380 = scmp.eq.s32.totalorder %s33, 1
      %p381 = por %p379, %p380
      %p383 = scmp.ne.s32.totalorder %s368, %s382
      %p384 = scmp.eq.s32.totalorder %s33, 0
      %p385 = por %p383, %p384
      %s387 = sadd.s32 %s386, 1
      %p390 = scmp.eq.s32.totalorder %s27, 1
      %p391 = scmp.ne.s32.totalorder %s386, %s388
      %p392 = scmp.eq.s32.totalorder %s27, 0
      %p393 = por %p391, %p392
      %p394 = scmp.ne.s32.totalorder %s386, %s388
      %p395 = scmp.eq.s32.totalorder %s32, 1
      %p396 = por %p394, %p395
      %p397 = scmp.ne.s32.totalorder %s388, %s389
      %p398 = scmp.eq.s32.totalorder %s32, 0
      %p399 = por %p397, %p398
      %p400 = scmp.ne.s32.totalorder %s388, %s389
      %p401 = scmp.eq.s32.totalorder %s33, 1
      %p402 = por %p400, %p401
      %p404 = scmp.ne.s32.totalorder %s389, %s403
      %p405 = scmp.eq.s32.totalorder %s33, 0
      %p406 = por %p404, %p405
      %s407 = ssub.s32 %s27, %s34
      %p408 = scmp.eq.s32.totalorder %s407, 0
      %s410 = sadd.s32 %s409, 1
      %s411 = scalar_select %p408, %s409, %s410
      %p414 = pneg %p408
      %p415 = scmp.eq.s32.totalorder %s27, 1
      %p416 = por %p414, %p415
      %p417 = scmp.ne.s32.totalorder %s409, %s412
      %p418 = scmp.eq.s32.totalorder %s27, 0
      %p419 = por %p417, %p418
      %p420 = scmp.ne.s32.totalorder %s409, %s412
      %p421 = scmp.eq.s32.totalorder %s32, 1
      %p422 = por %p420, %p421
      %p423 = scmp.ne.s32.totalorder %s412, %s413
      %p424 = scmp.eq.s32.totalorder %s32, 0
      %p425 = por %p423, %p424
      %p426 = scmp.ne.s32.totalorder %s412, %s413
      %p427 = scmp.eq.s32.totalorder %s33, 1
      %p428 = por %p426, %p427
      %p430 = scmp.ne.s32.totalorder %s413, %s429
      %p431 = scmp.eq.s32.totalorder %s33, 0
      %p432 = por %p430, %p431
      %p433 = scmp.le.s32.totalorder 1, %s27
      %p434 = scmp.lt.s32.totalorder %s27, 3
      %p435 = pnand %p433, %p434
      %p436 = pneg %p435
      // Predicated region
      $region9: #{tpu_custom_call.1} parent=5 // pred_check
        _
      $region10: #{tpu_custom_call.1} parent=5 // pred_check_branch
        %438 = sbr.rel (%p435) target = $region12
      $region11: #{tpu_custom_call.1} parent=5 // pred_region
        %s439 = ssub.s32 %s27, 1
        // Predicated region
        $region13: #{tpu_custom_call.1} parent=11 // pred_check
          %p440 = pneg %p126
        $region14: #{tpu_custom_call.1} parent=11 // pred_check_branch
          %442 = sbr.rel (%p440) target = $region16
        $region15: #{tpu_custom_call.1} parent=11 // pred_region
          _
        $region16: #{tpu_custom_call.1} parent=11 // pred_fallthru
          _
        // Predicated region
        $region17: #{tpu_custom_call.1} parent=11 // pred_check
          %p443 = pneg %p147
        $region18: #{tpu_custom_call.1} parent=11 // pred_check_branch
          %445 = sbr.rel (%p443) target = $region20
        $region19: #{tpu_custom_call.1} parent=11 // pred_region
          %s447 = ssub.s32 16, 16
          %448 = vsyncadd [#allocation3], %s447
          %s450 = sshll.u32 [#allocation2], 4
          %s451 = int_to_ptr.vmem [resolvable:$true] %s450
          %453 = dma.hbm_to_vmem [thread:$0]  %s4, 16, %s451, [#allocation3]
        $region20: #{tpu_custom_call.1} parent=11 // pred_fallthru
          _
        // Predicated region
        $region21: #{tpu_custom_call.1} parent=11 // pred_check
          %p454 = pneg %p168
        $region22: #{tpu_custom_call.1} parent=11 // pred_check_branch
          %456 = sbr.rel (%p454) target = $region24
        $region23: #{tpu_custom_call.1} parent=11 // pred_region
          _
        $region24: #{tpu_custom_call.1} parent=11 // pred_fallthru
          _
        // Predicated region
        $region25: #{tpu_custom_call.1} parent=11 // pred_check
          %p457 = pneg %p189
        $region26: #{tpu_custom_call.1} parent=11 // pred_check_branch
          %459 = sbr.rel (%p457) target = $region28
        $region27: #{tpu_custom_call.1} parent=11 // pred_region
          _
        $region28: #{tpu_custom_call.1} parent=11 // pred_fallthru
          _
        // Predicated region
        $region29: #{tpu_custom_call.1} parent=11 // pred_check
          %p460 = pneg %p210
        $region30: #{tpu_custom_call.1} parent=11 // pred_check_branch
          %462 = sbr.rel (%p460) target = $region32
        $region31: #{tpu_custom_call.1} parent=11 // pred_region
          _
        $region32: #{tpu_custom_call.1} parent=11 // pred_fallthru
          _
        // Predicated region
        $region33: #{tpu_custom_call.1} parent=11 // pred_check
          %p463 = pneg %p231
        $region34: #{tpu_custom_call.1} parent=11 // pred_check_branch
          %465 = sbr.rel (%p463) target = $region36
        $region35: #{tpu_custom_call.1} parent=11 // pred_region
          _
        $region36: #{tpu_custom_call.1} parent=11 // pred_fallthru
          _
        // Predicated region
        $region37: #{tpu_custom_call.1} parent=11 // pred_check
          %p466 = pneg %p252
        $region38: #{tpu_custom_call.1} parent=11 // pred_check_branch
          %468 = sbr.rel (%p466) target = $region40
        $region39: #{tpu_custom_call.1} parent=11 // pred_region
          _
        $region40: #{tpu_custom_call.1} parent=11 // pred_fallthru
          _
        // Predicated region
        $region41: #{tpu_custom_call.1} parent=11 // pred_check
          %p469 = pneg %p273
        $region42: #{tpu_custom_call.1} parent=11 // pred_check_branch
          %471 = sbr.rel (%p469) target = $region44
        $region43: #{tpu_custom_call.1} parent=11 // pred_region
          _
        $region44: #{tpu_custom_call.1} parent=11 // pred_fallthru
          _
        // Predicated region
        $region45: #{tpu_custom_call.1} parent=11 // pred_check
          %p472 = pneg %p294
        $region46: #{tpu_custom_call.1} parent=11 // pred_check_branch
          %474 = sbr.rel (%p472) target = $region48
        $region47: #{tpu_custom_call.1} parent=11 // pred_region
          _
        $region48: #{tpu_custom_call.1} parent=11 // pred_fallthru
          _
        // Predicated region
        $region49: #{tpu_custom_call.1} parent=11 // pred_check
          %p475 = pneg %p315
        $region50: #{tpu_custom_call.1} parent=11 // pred_check_branch
          %477 = sbr.rel (%p475) target = $region52
        $region51: #{tpu_custom_call.1} parent=11 // pred_region
          _
        $region52: #{tpu_custom_call.1} parent=11 // pred_fallthru
          _
        // Predicated region
        $region53: #{tpu_custom_call.1} parent=11 // pred_check
          %p478 = pneg %p336
        $region54: #{tpu_custom_call.1} parent=11 // pred_check_branch
          %480 = sbr.rel (%p478) target = $region56
        $region55: #{tpu_custom_call.1} parent=11 // pred_region
          _
        $region56: #{tpu_custom_call.1} parent=11 // pred_fallthru
          _
        // Predicated region
        $region57: #{tpu_custom_call.1} parent=11 // pred_check
          %p481 = pneg %p357
        $region58: #{tpu_custom_call.1} parent=11 // pred_check_branch
          %483 = sbr.rel (%p481) target = $region60
        $region59: #{tpu_custom_call.1} parent=11 // pred_region
          _
        $region60: #{tpu_custom_call.1} parent=11 // pred_fallthru
          _
        // Predicated region
        $region61: #{tpu_custom_call.1} parent=11 // pred_check
          %p484 = pneg %p378
        $region62: #{tpu_custom_call.1} parent=11 // pred_check_branch
          %486 = sbr.rel (%p484) target = $region64
        $region63: #{tpu_custom_call.1} parent=11 // pred_region
          _
        $region64: #{tpu_custom_call.1} parent=11 // pred_fallthru
          _
        // Predicated region
        $region65: #{tpu_custom_call.1} parent=11 // pred_check
          %p487 = pneg %p399
        $region66: #{tpu_custom_call.1} parent=11 // pred_check_branch
          %489 = sbr.rel (%p487) target = $region68
        $region67: #{tpu_custom_call.1} parent=11 // pred_region
          _
        $region68: #{tpu_custom_call.1} parent=11 // pred_fallthru
          _
      $region12: #{tpu_custom_call.1} parent=5 // pred_fallthru
        _
      %p490 = scmp.lt.s32.totalorder %s27, 2
      // Predicated region
      $region69: #{tpu_custom_call.1} parent=5 // pred_check
        %p491 = pneg %p490
      $region70: #{tpu_custom_call.1} parent=5 // pred_check_branch
        %493 = sbr.rel (%p491) target = $region72
      $region71: #{tpu_custom_call.1} parent=5 // pred_region
        // Predicated region
        $region73: #{tpu_custom_call.1} parent=71 // pred_check
          %p494 = pneg %p47
        $region74: #{tpu_custom_call.1} parent=71 // pred_check_branch
          %496 = sbr.rel (%p494) target = $region76
        $region75: #{tpu_custom_call.1} parent=71 // pred_region
          %p497 = scmp.lt.s32.totalorder %s27, 1
          %s498 = scalar_select %p497, %s27, 1
          %s499 = smul.addr %s498, 8
          %s500 = scalar_lea.vmem %s0, %s499
        $region76: #{tpu_custom_call.1} parent=71 // pred_fallthru
          _
        // Predicated region
        $region77: #{tpu_custom_call.1} parent=71 // pred_check
          %p501 = pneg %p73
        $region78: #{tpu_custom_call.1} parent=71 // pred_check_branch
          %503 = sbr.rel (%p501) target = $region80
        $region79: #{tpu_custom_call.1} parent=71 // pred_region
          %p504 = scmp.lt.s32.totalorder %s27, 1
          %s505 = scalar_select %p504, %s27, 1
          %s506 = scalar_lea.vmem %s1, %s505
        $region80: #{tpu_custom_call.1} parent=71 // pred_fallthru
          _
        // Predicated region
        $region81: #{tpu_custom_call.1} parent=71 // pred_check
          %p507 = pneg %p99
        $region82: #{tpu_custom_call.1} parent=71 // pred_check_branch
          %509 = sbr.rel (%p507) target = $region84
        $region83: #{tpu_custom_call.1} parent=71 // pred_region
          %p510 = scmp.lt.s32.totalorder %s27, 1
          %s511 = scalar_select %p510, %s27, 1
          %s512 = smul.addr %s511, 8
          %s513 = scalar_lea.vmem %s2, %s512
        $region84: #{tpu_custom_call.1} parent=71 // pred_fallthru
          _
      $region72: #{tpu_custom_call.1} parent=5 // pred_fallthru
        _
      %p514 = scmp.le.s32.totalorder 1, %s27
      %p515 = scmp.lt.s32.totalorder %s27, 3
      %p516 = pnand %p514, %p515
      %p517 = pneg %p516
      // Predicated region
      $region85: #{tpu_custom_call.1} parent=5 // pred_check
        _
      $region86: #{tpu_custom_call.1} parent=5 // pred_check_branch
        %519 = sbr.rel (%p516) target = $region88
      $region87: #{tpu_custom_call.1} parent=5 // pred_region
        %s520 = ssub.s32 %s27, 1
        // Predicated region
        $region89: #{tpu_custom_call.1} parent=87 // pred_check
          %p521 = pneg %p147
        $region90: #{tpu_custom_call.1} parent=87 // pred_check_branch
          %523 = sbr.rel (%p521) target = $region92
        $region91: #{tpu_custom_call.1} parent=87 // pred_region
          %524 = dma.done [#allocation3], 16
        $region92: #{tpu_custom_call.1} parent=87 // pred_fallthru
          _
        %p525 = scmp.lt.s32.totalorder %s32, 1
        %s526 = scalar_select %p525, %s32, 1
        %s527 = smul.addr %s526, 8
        %s528 = scalar_lea.vmem %s0, %s527
        %p529 = pneg %p53
        %p530 = pneg %p50
        %p531 = scmp.lt.s32.totalorder %s32, 1
        %s532 = scalar_select %p531, %s32, 1
        %s533 = scalar_lea.vmem %s1, %s532
        %p534 = pneg %p79
        %p535 = pneg %p76
        %p536 = scmp.lt.s32.totalorder %s32, 1
        %s537 = scalar_select %p536, %s32, 1
        %s538 = smul.addr %s537, 8
        %s539 = scalar_lea.vmem %s2, %s538
        %p540 = pneg %p105
        %p541 = pneg %p102
        %p542 = pneg %p126
        %p543 = pneg %p123
        %p544 = pneg %p147
        %p545 = pneg %p144
        %p546 = pneg %p168
        %p547 = pneg %p165
        %p548 = pneg %p189
        %p549 = pneg %p186
        %p550 = pneg %p210
        %p551 = pneg %p207
        %p552 = pneg %p231
        %p553 = pneg %p228
        %p554 = pneg %p252
        %p555 = pneg %p249
        %p556 = pneg %p273
        %p557 = pneg %p270
        %p558 = pneg %p294
        %p559 = pneg %p291
        %p560 = pneg %p315
        %p561 = pneg %p312
        %p562 = pneg %p336
        %p563 = pneg %p333
        %p564 = pneg %p357
        %p565 = pneg %p354
        %p566 = pneg %p378
        %p567 = pneg %p375
        %p568 = pneg %p399
        %p569 = pneg %p396
        %p570 = pneg %p425
        %p571 = pneg %p422
        %s572 = sand.u32 %s412, 1
        %s573 = scalar_lea.sflag [#allocation4], %s572
        %s574 = sand.u32 %s412, 1
        %s575 = smul.addr %s574, 16
        %s576 = scalar_lea.vmem [#allocation5], %s575
        %p577 = scmp.lt.s32.totalorder %s32, 1
        %s578 = scalar_select %p577, %s32, 1
        %s579 = smul.addr %s578, 8
        %s580 = scalar_lea.vmem %s0, %s579
        %p581 = scmp.lt.s32.totalorder %s32, 1
        %s582 = scalar_select %p581, %s32, 1
        %s583 = scalar_lea.vmem %s1, %s582
        %p584 = scmp.lt.s32.totalorder %s32, 1
        %s585 = scalar_select %p584, %s32, 1
        %s586 = smul.addr %s585, 8
        %s587 = scalar_lea.vmem %s2, %s586
        %v589 = vld [vmem:[%s583] sm:$0x1]
        %v590 = vld [vmem:[%s587] sm:$0xff]
        %v591 = vsub.f32 %v589, 1.0
        %v592 = vmul.f32 %v591, 1e+09
        %v594 = vlaneseq
        %v595 = vshrl.u32 %v594, 7
        %v596 = vsub.s32 0, %v595
        %v597 = vrot.slane %v589, %v596
        %600 = vset.pattern.permute.xlu0 0
        %601 = vperm.xlu0 %600, %v590
        %v602 = vpop.permute.xlu0 %601
        %v604 = vmul.f32 %v597, %v602
        %v605 = vld [vmem:[%s580] sm:$0xff]
        %v606 = vld [vmem:[%s3] sm:$0x1]
        %v607 = vld [vmem:[#allocation2] sm:$0x1]
        %vm608 = vcmask 261120
        %v609 = vsel %vm608, %v605, 0.0
        %610 = vadd.xlane.f32.xlu0 %v609
        %v611 = vpop.xlane.xlu0 %610
        %v612 = vrcp.pop 32.0
        %v613 = vmul.f32 %v611, %v612
        %v614 = vsub.f32 %v605, %v613
        %v615 = vmul.f32 %v614, %v614
        %v616 = vsel %vm608, %v615, 0.0
        %617 = vadd.xlane.f32.xlu0 %v616
        %v618 = vpop.xlane.xlu0 %617
        %v619 = vmul.f32 %v618, %v612
        %v620 = vadd.f32 %v619, 1e-07
        %v621 = vrsqrt.pop %v620
        %v622 = vmul.f32 %v614, %v621
        %v624 = vlaneseq
        %v625 = vshrl.u32 %v624, 7
        %v626 = vsub.s32 0, %v625
        %v627 = vrot.slane %v606, %v626
        %v629 = vmul.f32 %v622, %v627
        %v631 = vlaneseq
        %v632 = vshrl.u32 %v631, 7
        %v633 = vsub.s32 0, %v632
        %v634 = vrot.slane %v607, %v633
        %v636 = vadd.f32 %v629, %v634
        %v637 = vmul.f32 %v636, %v602
        %v638 = vld [vmem:[%s5] sm:$0xf]
        %v639 = vld [vmem:[%s5 + $0x4] sm:$0xf]
        %v640 = vld [vmem:[%s5 + $0x8] sm:$0xf]
        %v641 = vld [vmem:[%s5 + $0xc] sm:$0xf]
        %v642 = vld [vmem:[%s6] sm:$0x1]
        %v643 = vld [vmem:[%s8] sm:$0x1]
        %v644 = vld [vmem:[%s11] sm:$0xf]
        %v645 = vld [vmem:[%s11 + $0x4] sm:$0xf]
        %v646 = vld [vmem:[%s11 + $0x8] sm:$0xf]
        %v647 = vld [vmem:[%s11 + $0xc] sm:$0xf]
        %v648 = vld [vmem:[%s12] sm:$0x1]
        %v649 = vld [vmem:[%s13] sm:$0xf]
        %v650 = vld [vmem:[%s13 + $0x4] sm:$0xf]
        %v651 = vld [vmem:[%s13 + $0x8] sm:$0xf]
        %v652 = vld [vmem:[%s13 + $0xc] sm:$0xf]
        %v653 = vld [vmem:[%s13 + $0x10] sm:$0xf]
        %v654 = vld [vmem:[%s13 + $0x14] sm:$0xf]
        %v655 = vld [vmem:[%s13 + $0x18] sm:$0xf]
        %v656 = vld [vmem:[%s13 + $0x1c] sm:$0xf]
        %v657 = vld [vmem:[%s14] sm:$0x1]
        %v658 = vpack.c.bf16 %v637, %v637
        %v660 = vlaneseq
        %v661 = vshrl.u32 %v660, 7
        %v662 = vsub.s32 0, %v661
        %v663 = vrot.slane %v642, %v662
        %v669 = vunpack.c.l.b16 %v638
        %v670 = vunpack.c.l.b16 %v639
        %v671 = vunpack.c.l.b16 %v640
        %v672 = vunpack.c.l.b16 %v641
        %v673 = vpack.c.b16 %v670, %v669
        %v674 = vpack.c.b16 %v672, %v671
        %v678 = vsel %vm608, %v658, 0
        %680 = vmatprep.subr.bf16.mxu0 0
        %681 = vmatpush1.bf16.msra.mxu0 %v673
        %682 = vmatprep.subr.bf16.mxu0 0
        %683 = vmatpush1.bf16.msra.mxu0 %v674
        %684 = vmatprep.subr.bf16.mxu0 0
        %685 = vmatpush1.bf16.msra.mxu0 0
        %686 = vmatprep.subr.bf16.mxu0 0
        %687 = vmatpush1.bf16.msra.mxu0 0
        %688 = vmatprep.subr.bf16.mxu0 0
        %689 = vmatpush1.bf16.msra.mxu0 0
        %690 = vmatprep.subr.bf16.mxu0 0
        %691 = vmatpush1.bf16.msra.mxu0 0
        %692 = vmatprep.subr.bf16.mxu0 0
        %693 = vmatpush1.bf16.msra.mxu0 0
        %694 = vmatprep.subr.bf16.mxu0 0
        %695 = vmatpush1.bf16.msra.mxu0 0
        %696 = vmatprep.subr.bf16.mxu0 0
        %697 = vmatpush1.bf16.msra.mxu0 0
        %698 = vmatprep.subr.bf16.mxu0 0
        %699 = vmatpush1.bf16.msra.mxu0 0
        %700 = vmatprep.subr.bf16.mxu0 0
        %701 = vmatpush1.bf16.msra.mxu0 0
        %702 = vmatprep.subr.bf16.mxu0 0
        %703 = vmatpush1.bf16.msra.mxu0 0
        %704 = vmatprep.subr.bf16.mxu0 0
        %705 = vmatpush1.bf16.msra.mxu0 0
        %706 = vmatprep.subr.bf16.mxu0 0
        %707 = vmatpush1.bf16.msra.mxu0 0
        %708 = vmatprep.subr.bf16.mxu0 0
        %709 = vmatpush1.bf16.msra.mxu0 0
        %710 = vmatprep.subr.bf16.mxu0 0
        %711 = vmatpush1.bf16.msra.mxu0 0
        %712 = vmatprep.mubr.bf16.mxu0 0
        %713 = vmatmul.mubr.bf16.gmra.mrb[0].mxu0 %v678
        %v714 = vpop.f32.mrb[0].mxu0
        %v715 = vadd.f32 %v663, %v714
        %v716 = vpop.f32.mrb[0].mxu0
        %v717 = vpop.f32.mrb[0].mxu0
        %v718 = vpop.f32.mrb[0].mxu0
        %719 = vdwg.mxu0
        %v720 = vpack.c.bf16 %v715, %v715
        %v722 = vlaneseq
        %v723 = vshrl.u32 %v722, 7
        %v724 = vsub.s32 0, %v723
        %v725 = vrot.slane %v592, %v724
        %728 = vrot.lane.b32.xlu0 %v720, 96
        %v729 = vpop.permute.xlu0 %728
        %vm730 = vcmask 64512
        %v732 = vsel %vm730, %v720, 0
        %v735 = vsel %vm730, %v729, 0
        %737 = vmatprep.subr.bf16.mxu0 0
        %738 = vmatpush1.bf16.xpose.msra.mxu0 %v735
        %739 = vmatprep.subr.bf16.mxu0 0
        %740 = vmatpush1.bf16.xpose.msra.mxu0 0
        %741 = vmatprep.subr.bf16.mxu0 0
        %742 = vmatpush1.bf16.xpose.msra.mxu0 0
        %743 = vmatprep.subr.bf16.mxu0 0
        %744 = vmatpush1.bf16.xpose.msra.mxu0 0
        %745 = vmatprep.subr.bf16.mxu0 0
        %746 = vmatpush1.bf16.xpose.msra.mxu0 0
        %747 = vmatprep.subr.bf16.mxu0 0
        %748 = vmatpush1.bf16.xpose.msra.mxu0 0
        %749 = vmatprep.subr.bf16.mxu0 0
        %750 = vmatpush1.bf16.xpose.msra.mxu0 0
        %751 = vmatprep.subr.bf16.mxu0 0
        %752 = vmatpush1.bf16.xpose.msra.mxu0 0
        %753 = vmatprep.subr.bf16.mxu0 0
        %754 = vmatpush1.bf16.xpose.msra.mxu0 0
        %755 = vmatprep.subr.bf16.mxu0 0
        %756 = vmatpush1.bf16.xpose.msra.mxu0 0
        %757 = vmatprep.subr.bf16.mxu0 0
        %758 = vmatpush1.bf16.xpose.msra.mxu0 0
        %759 = vmatprep.subr.bf16.mxu0 0
        %760 = vmatpush1.bf16.xpose.msra.mxu0 0
        %761 = vmatprep.subr.bf16.mxu0 0
        %762 = vmatpush1.bf16.xpose.msra.mxu0 0
        %763 = vmatprep.subr.bf16.mxu0 0
        %764 = vmatpush1.bf16.xpose.msra.mxu0 0
        %765 = vmatprep.subr.bf16.mxu0 0
        %766 = vmatpush1.bf16.xpose.msra.mxu0 0
        %767 = vmatprep.subr.bf16.mxu0 0
        %768 = vmatpush1.bf16.xpose.msra.mxu0 0
        %769 = vmatprep.mubr.bf16.mxu0 0
        %770 = vmatmul.mubr.bf16.gmra.mrb[0].mxu0 %v732
        %v771 = vpop.f32.mrb[0].mxu0
        %v772 = vadd.f32 %v725, %v771
        %v773 = vpop.f32.mrb[0].mxu0
        %v774 = vpop.f32.mrb[0].mxu0
        %v775 = vpop.f32.mrb[0].mxu0
        %776 = vdwg.mxu0
        %v777 = vsel %vm730, %v772, -inf
        %778 = vmax.xlane.f32.xlu0 %v777
        %v779 = vpop.xlane.xlu0 %778
        %v780 = vsub.f32 %v772, %v779
        %v781 = vmul.f32 %v780, 1.442695
        %v782 = vpow.pop %v781
        %v783 = vsel %vm730, %v782, 0.0
        %784 = vadd.xlane.f32.xlu0 %v783
        %v785 = vpop.xlane.xlu0 %784
        %v786 = vrcp.pop %v785
        %v787 = vmul.f32 %v782, %v786
        %v788 = vmul.f32 %v787, %v604
        %v789 = vpack.c.bf16 %v788, %v788
        %790 = vrot.lane.b32.xlu0 %v720, 64
        %v791 = vpop.permute.xlu0 %790
        %v793 = vsel %vm730, %v789, 0
        %vm795 = vcmask 1043456
        %v797 = vsel %vm795, %v791, 0
        %799 = vmatprep.subr.bf16.mxu0 0
        %800 = vmatpush1.bf16.msra.mxu0 %v797
        %801 = vmatprep.subr.bf16.mxu0 0
        %802 = vmatpush1.bf16.msra.mxu0 0
        %803 = vmatprep.subr.bf16.mxu0 0
        %804 = vmatpush1.bf16.msra.mxu0 0
        %805 = vmatprep.subr.bf16.mxu0 0
        %806 = vmatpush1.bf16.msra.mxu0 0
        %807 = vmatprep.subr.bf16.mxu0 0
        %808 = vmatpush1.bf16.msra.mxu0 0
        %809 = vmatprep.subr.bf16.mxu0 0
        %810 = vmatpush1.bf16.msra.mxu0 0
        %811 = vmatprep.subr.bf16.mxu0 0
        %812 = vmatpush1.bf16.msra.mxu0 0
        %813 = vmatprep.subr.bf16.mxu0 0
        %814 = vmatpush1.bf16.msra.mxu0 0
        %815 = vmatprep.subr.bf16.mxu0 0
        %816 = vmatpush1.bf16.msra.mxu0 0
        %817 = vmatprep.subr.bf16.mxu0 0
        %818 = vmatpush1.bf16.msra.mxu0 0
        %819 = vmatprep.subr.bf16.mxu0 0
        %820 = vmatpush1.bf16.msra.mxu0 0
        %821 = vmatprep.subr.bf16.mxu0 0
        %822 = vmatpush1.bf16.msra.mxu0 0
        %823 = vmatprep.subr.bf16.mxu0 0
        %824 = vmatpush1.bf16.msra.mxu0 0
        %825 = vmatprep.subr.bf16.mxu0 0
        %826 = vmatpush1.bf16.msra.mxu0 0
        %827 = vmatprep.subr.bf16.mxu0 0
        %828 = vmatpush1.bf16.msra.mxu0 0
        %829 = vmatprep.subr.bf16.mxu0 0
        %830 = vmatpush1.bf16.msra.mxu0 0
        %831 = vmatprep.mubr.bf16.mxu0 0
        %832 = vmatmul.mubr.bf16.gmra.mrb[0].mxu0 %v793
        %v833 = vpop.f32.mrb[0].mxu0
        %v834 = vadd.f32 0.0, %v833
        %v835 = vpop.f32.mrb[0].mxu0
        %v836 = vpop.f32.mrb[0].mxu0
        %v837 = vpop.f32.mrb[0].mxu0
        %838 = vdwg.mxu0
        %v839 = vpack.c.bf16 %v834, %v834
        %v840 = vld [vmem:[%s7] sm:$0xf]
        %841 = vrot.lane.b32.xlu0 %v720, 120
        %v842 = vpop.permute.xlu0 %841
        %843 = vrot.lane.b32.xlu0 %v720, 88
        %v844 = vpop.permute.xlu0 %843
        %v846 = vsel %vm730, %v842, 0
        %v849 = vsel %vm730, %v844, 0
        %851 = vmatprep.subr.bf16.mxu0 0
        %852 = vmatpush1.bf16.xpose.msra.mxu0 %v849
        %853 = vmatprep.subr.bf16.mxu0 0
        %854 = vmatpush1.bf16.xpose.msra.mxu0 0
        %855 = vmatprep.subr.bf16.mxu0 0
        %856 = vmatpush1.bf16.xpose.msra.mxu0 0
        %857 = vmatprep.subr.bf16.mxu0 0
        %858 = vmatpush1.bf16.xpose.msra.mxu0 0
        %859 = vmatprep.subr.bf16.mxu0 0
        %860 = vmatpush1.bf16.xpose.msra.mxu0 0
        %861 = vmatprep.subr.bf16.mxu0 0
        %862 = vmatpush1.bf16.xpose.msra.mxu0 0
        %863 = vmatprep.subr.bf16.mxu0 0
        %864 = vmatpush1.bf16.xpose.msra.mxu0 0
        %865 = vmatprep.subr.bf16.mxu0 0
        %866 = vmatpush1.bf16.xpose.msra.mxu0 0
        %867 = vmatprep.subr.bf16.mxu0 0
        %868 = vmatpush1.bf16.xpose.msra.mxu0 0
        %869 = vmatprep.subr.bf16.mxu0 0
        %870 = vmatpush1.bf16.xpose.msra.mxu0 0
        %871 = vmatprep.subr.bf16.mxu0 0
        %872 = vmatpush1.bf16.xpose.msra.mxu0 0
        %873 = vmatprep.subr.bf16.mxu0 0
        %874 = vmatpush1.bf16.xpose.msra.mxu0 0
        %875 = vmatprep.subr.bf16.mxu0 0
        %876 = vmatpush1.bf16.xpose.msra.mxu0 0
        %877 = vmatprep.subr.bf16.mxu0 0
        %878 = vmatpush1.bf16.xpose.msra.mxu0 0
        %879 = vmatprep.subr.bf16.mxu0 0
        %880 = vmatpush1.bf16.xpose.msra.mxu0 0
        %881 = vmatprep.subr.bf16.mxu0 0
        %882 = vmatpush1.bf16.xpose.msra.mxu0 0
        %883 = vmatprep.mubr.bf16.mxu0 0
        %884 = vmatmul.mubr.bf16.gmra.mrb[0].mxu0 %v846
        %v885 = vpop.f32.mrb[0].mxu0
        %v886 = vadd.f32 %v725, %v885
        %v887 = vpop.f32.mrb[0].mxu0
        %v888 = vpop.f32.mrb[0].mxu0
        %v889 = vpop.f32.mrb[0].mxu0
        %890 = vdwg.mxu0
        %v891 = vsel %vm730, %v886, -inf
        %892 = vmax.xlane.f32.xlu0 %v891
        %v893 = vpop.xlane.xlu0 %892
        %v894 = vsub.f32 %v886, %v893
        %v895 = vmul.f32 %v894, 1.442695
        %v896 = vpow.pop %v895
        %v897 = vsel %vm730, %v896, 0.0
        %898 = vadd.xlane.f32.xlu0 %v897
        %v899 = vpop.xlane.xlu0 %898
        %v900 = vrcp.pop %v899
        %v901 = vmul.f32 %v896, %v900
        %v902 = vmul.f32 %v901, %v604
        %v903 = vpack.c.bf16 %v902, %v902
        %904 = vrot.lane.b32.xlu0 %v720, 56
        %v905 = vpop.permute.xlu0 %904
        %v907 = vsel %vm730, %v903, 0
        %v910 = vsel %vm795, %v905, 0
        %912 = vmatprep.subr.bf16.mxu0 0
        %913 = vmatpush1.bf16.msra.mxu0 %v910
        %914 = vmatprep.subr.bf16.mxu0 0
        %915 = vmatpush1.bf16.msra.mxu0 0
        %916 = vmatprep.subr.bf16.mxu0 0
        %917 = vmatpush1.bf16.msra.mxu0 0
        %918 = vmatprep.subr.bf16.mxu0 0
        %919 = vmatpush1.bf16.msra.mxu0 0
        %920 = vmatprep.subr.bf16.mxu0 0
        %921 = vmatpush1.bf16.msra.mxu0 0
        %922 = vmatprep.subr.bf16.mxu0 0
        %923 = vmatpush1.bf16.msra.mxu0 0
        %924 = vmatprep.subr.bf16.mxu0 0
        %925 = vmatpush1.bf16.msra.mxu0 0
        %926 = vmatprep.subr.bf16.mxu0 0
        %927 = vmatpush1.bf16.msra.mxu0 0
        %928 = vmatprep.subr.bf16.mxu0 0
        %929 = vmatpush1.bf16.msra.mxu0 0
        %930 = vmatprep.subr.bf16.mxu0 0
        %931 = vmatpush1.bf16.msra.mxu0 0
        %932 = vmatprep.subr.bf16.mxu0 0
        %933 = vmatpush1.bf16.msra.mxu0 0
        %934 = vmatprep.subr.bf16.mxu0 0
        %935 = vmatpush1.bf16.msra.mxu0 0
        %936 = vmatprep.subr.bf16.mxu0 0
        %937 = vmatpush1.bf16.msra.mxu0 0
        %938 = vmatprep.subr.bf16.mxu0 0
        %939 = vmatpush1.bf16.msra.mxu0 0
        %940 = vmatprep.subr.bf16.mxu0 0
        %941 = vmatpush1.bf16.msra.mxu0 0
        %942 = vmatprep.subr.bf16.mxu0 0
        %943 = vmatpush1.bf16.msra.mxu0 0
        %944 = vmatprep.mubr.bf16.mxu0 0
        %945 = vmatmul.mubr.bf16.gmra.mrb[0].mxu0 %v907
        %v946 = vpop.f32.mrb[0].mxu0
        %v947 = vadd.f32 0.0, %v946
        %v948 = vpop.f32.mrb[0].mxu0
        %v949 = vpop.f32.mrb[0].mxu0
        %v950 = vpop.f32.mrb[0].mxu0
        %951 = vdwg.mxu0
        %v952 = vpack.c.bf16 %v947, %v947
        %s953 = scalar_lea.vmem %s7, 4
        %v954 = vld [vmem:[%s953] sm:$0xf]
        %v956 = vsel %vm730, %v952, 0
        %v959 = vsel %vm795, %v954, 0
        %961 = vmatprep.subr.bf16.mxu0 0
        %962 = vmatpush1.bf16.msra.mxu0 %v959
        %963 = vmatprep.subr.bf16.mxu0 0
        %964 = vmatpush1.bf16.msra.mxu0 0
        %965 = vmatprep.subr.bf16.mxu0 0
        %966 = vmatpush1.bf16.msra.mxu0 0
        %967 = vmatprep.subr.bf16.mxu0 0
        %968 = vmatpush1.bf16.msra.mxu0 0
        %969 = vmatprep.subr.bf16.mxu0 0
        %970 = vmatpush1.bf16.msra.mxu0 0
        %971 = vmatprep.subr.bf16.mxu0 0
        %972 = vmatpush1.bf16.msra.mxu0 0
        %973 = vmatprep.subr.bf16.mxu0 0
        %974 = vmatpush1.bf16.msra.mxu0 0
        %975 = vmatprep.subr.bf16.mxu0 0
        %976 = vmatpush1.bf16.msra.mxu0 0
        %977 = vmatprep.subr.bf16.mxu0 0
        %978 = vmatpush1.bf16.msra.mxu0 0
        %979 = vmatprep.subr.bf16.mxu0 0
        %980 = vmatpush1.bf16.msra.mxu0 0
        %981 = vmatprep.subr.bf16.mxu0 0
        %982 = vmatpush1.bf16.msra.mxu0 0
        %983 = vmatprep.subr.bf16.mxu0 0
        %984 = vmatpush1.bf16.msra.mxu0 0
        %985 = vmatprep.subr.bf16.mxu0 0
        %986 = vmatpush1.bf16.msra.mxu0 0
        %987 = vmatprep.subr.bf16.mxu0 0
        %988 = vmatpush1.bf16.msra.mxu0 0
        %989 = vmatprep.subr.bf16.mxu0 0
        %990 = vmatpush1.bf16.msra.mxu0 0
        %991 = vmatprep.subr.bf16.mxu0 0
        %992 = vmatpush1.bf16.msra.mxu0 0
        %993 = vmatprep.mubr.bf16.mxu0 0
        %994 = vmatmul.mubr.bf16.gmra.mrb[0].mxu0 %v956
        %v995 = vpop.f32.mrb[0].mxu0
        %v996 = vadd.f32 0.0, %v995
        %v997 = vpop.f32.mrb[0].mxu0
        %v998 = vpop.f32.mrb[0].mxu0
        %v999 = vpop.f32.mrb[0].mxu0
        %1000 = vdwg.mxu0
        %v1002 = vsel %vm730, %v839, 0
        %v1005 = vsel %vm795, %v840, 0
        %1007 = vmatprep.subr.bf16.mxu0 0
        %1008 = vmatpush1.bf16.msra.mxu0 %v1005
        %1009 = vmatprep.subr.bf16.mxu0 0
        %1010 = vmatpush1.bf16.msra.mxu0 0
        %1011 = vmatprep.subr.bf16.mxu0 0
        %1012 = vmatpush1.bf16.msra.mxu0 0
        %1013 = vmatprep.subr.bf16.mxu0 0
        %1014 = vmatpush1.bf16.msra.mxu0 0
        %1015 = vmatprep.subr.bf16.mxu0 0
        %1016 = vmatpush1.bf16.msra.mxu0 0
        %1017 = vmatprep.subr.bf16.mxu0 0
        %1018 = vmatpush1.bf16.msra.mxu0 0
        %1019 = vmatprep.subr.bf16.mxu0 0
        %1020 = vmatpush1.bf16.msra.mxu0 0
        %1021 = vmatprep.subr.bf16.mxu0 0
        %1022 = vmatpush1.bf16.msra.mxu0 0
        %1023 = vmatprep.subr.bf16.mxu0 0
        %1024 = vmatpush1.bf16.msra.mxu0 0
        %1025 = vmatprep.subr.bf16.mxu0 0
        %1026 = vmatpush1.bf16.msra.mxu0 0
        %1027 = vmatprep.subr.bf16.mxu0 0
        %1028 = vmatpush1.bf16.msra.mxu0 0
        %1029 = vmatprep.subr.bf16.mxu0 0
        %1030 = vmatpush1.bf16.msra.mxu0 0
        %1031 = vmatprep.subr.bf16.mxu0 0
        %1032 = vmatpush1.bf16.msra.mxu0 0
        %1033 = vmatprep.subr.bf16.mxu0 0
        %1034 = vmatpush1.bf16.msra.mxu0 0
        %1035 = vmatprep.subr.bf16.mxu0 0
        %1036 = vmatpush1.bf16.msra.mxu0 0
        %1037 = vmatprep.subr.bf16.mxu0 0
        %1038 = vmatpush1.bf16.msra.mxu0 0
        %1039 = vmatprep.mubr.bf16.mxu0 0
        %1040 = vmatmul.mubr.bf16.gmra.mrb[0].mxu0 %v1002
        %v1041 = vpop.f32.mrb[0].mxu0
        %v1042 = vadd.f32 %v996, %v1041
        %v1043 = vpop.f32.mrb[0].mxu0
        %v1044 = vpop.f32.mrb[0].mxu0
        %v1045 = vpop.f32.mrb[0].mxu0
        %1046 = vdwg.mxu0
        %1047 = vrot.lane.b32.xlu0 %v720, 112
        %v1048 = vpop.permute.xlu0 %1047
        %1049 = vrot.lane.b32.xlu0 %v720, 80
        %v1050 = vpop.permute.xlu0 %1049
        %v1052 = vsel %vm730, %v1048, 0
        %v1055 = vsel %vm730, %v1050, 0
        %1057 = vmatprep.subr.bf16.mxu0 0
        %1058 = vmatpush1.bf16.xpose.msra.mxu0 %v1055
        %1059 = vmatprep.subr.bf16.mxu0 0
        %1060 = vmatpush1.bf16.xpose.msra.mxu0 0
        %1061 = vmatprep.subr.bf16.mxu0 0
        %1062 = vmatpush1.bf16.xpose.msra.mxu0 0
        %1063 = vmatprep.subr.bf16.mxu0 0
        %1064 = vmatpush1.bf16.xpose.msra.mxu0 0
        %1065 = vmatprep.subr.bf16.mxu0 0
        %1066 = vmatpush1.bf16.xpose.msra.mxu0 0
        %1067 = vmatprep.subr.bf16.mxu0 0
        %1068 = vmatpush1.bf16.xpose.msra.mxu0 0
        %1069 = vmatprep.subr.bf16.mxu0 0
        %1070 = vmatpush1.bf16.xpose.msra.mxu0 0
        %1071 = vmatprep.subr.bf16.mxu0 0
        %1072 = vmatpush1.bf16.xpose.msra.mxu0 0
        %1073 = vmatprep.subr.bf16.mxu0 0
        %1074 = vmatpush1.bf16.xpose.msra.mxu0 0
        %1075 = vmatprep.subr.bf16.mxu0 0
        %1076 = vmatpush1.bf16.xpose.msra.mxu0 0
        %1077 = vmatprep.subr.bf16.mxu0 0
        %1078 = vmatpush1.bf16.xpose.msra.mxu0 0
        %1079 = vmatprep.subr.bf16.mxu0 0
        %1080 = vmatpush1.bf16.xpose.msra.mxu0 0
        %1081 = vmatprep.subr.bf16.mxu0 0
        %1082 = vmatpush1.bf16.xpose.msra.mxu0 0
        %1083 = vmatprep.subr.bf16.mxu0 0
        %1084 = vmatpush1.bf16.xpose.msra.mxu0 0
        %1085 = vmatprep.subr.bf16.mxu0 0
        %1086 = vmatpush1.bf16.xpose.msra.mxu0 0
        %1087 = vmatprep.subr.bf16.mxu0 0
        %1088 = vmatpush1.bf16.xpose.msra.mxu0 0
        %1089 = vmatprep.mubr.bf16.mxu0 0
        %1090 = vmatmul.mubr.bf16.gmra.mrb[0].mxu0 %v1052
        %v1091 = vpop.f32.mrb[0].mxu0
        %v1092 = vadd.f32 %v725, %v1091
        %v1093 = vpop.f32.mrb[0].mxu0
        %v1094 = vpop.f32.mrb[0].mxu0
        %v1095 = vpop.f32.mrb[0].mxu0
        %1096 = vdwg.mxu0
        %v1097 = vsel %vm730, %v1092, -inf
        %1098 = vmax.xlane.f32.xlu0 %v1097
        %v1099 = vpop.xlane.xlu0 %1098
        %v1100 = vsub.f32 %v1092, %v1099
        %v1101 = vmul.f32 %v1100, 1.442695
        %v1102 = vpow.pop %v1101
        %v1103 = vsel %vm730, %v1102, 0.0
        %1104 = vadd.xlane.f32.xlu0 %v1103
        %v1105 = vpop.xlane.xlu0 %1104
        %v1106 = vrcp.pop %v1105
        %v1107 = vmul.f32 %v1102, %v1106
        %v1108 = vmul.f32 %v1107, %v604
        %v1109 = vpack.c.bf16 %v1108, %v1108
        %1110 = vrot.lane.b32.xlu0 %v720, 48
        %v1111 = vpop.permute.xlu0 %1110
        %v1113 = vsel %vm730, %v1109, 0
        %v1116 = vsel %vm795, %v1111, 0
        %1118 = vmatprep.subr.bf16.mxu0 0
        %1119 = vmatpush1.bf16.msra.mxu0 %v1116
        %1120 = vmatprep.subr.bf16.mxu0 0
        %1121 = vmatpush1.bf16.msra.mxu0 0
        %1122 = vmatprep.subr.bf16.mxu0 0
        %1123 = vmatpush1.bf16.msra.mxu0 0
        %1124 = vmatprep.subr.bf16.mxu0 0
        %1125 = vmatpush1.bf16.msra.mxu0 0
        %1126 = vmatprep.subr.bf16.mxu0 0
        %1127 = vmatpush1.bf16.msra.mxu0 0
        %1128 = vmatprep.subr.bf16.mxu0 0
        %1129 = vmatpush1.bf16.msra.mxu0 0
        %1130 = vmatprep.subr.bf16.mxu0 0
        %1131 = vmatpush1.bf16.msra.mxu0 0
        %1132 = vmatprep.subr.bf16.mxu0 0
        %1133 = vmatpush1.bf16.msra.mxu0 0
        %1134 = vmatprep.subr.bf16.mxu0 0
        %1135 = vmatpush1.bf16.msra.mxu0 0
        %1136 = vmatprep.subr.bf16.mxu0 0
        %1137 = vmatpush1.bf16.msra.mxu0 0
        %1138 = vmatprep.subr.bf16.mxu0 0
        %1139 = vmatpush1.bf16.msra.mxu0 0
        %1140 = vmatprep.subr.bf16.mxu0 0
        %1141 = vmatpush1.bf16.msra.mxu0 0
        %1142 = vmatprep.subr.bf16.mxu0 0
        %1143 = vmatpush1.bf16.msra.mxu0 0
        %1144 = vmatprep.subr.bf16.mxu0 0
        %1145 = vmatpush1.bf16.msra.mxu0 0
        %1146 = vmatprep.subr.bf16.mxu0 0
        %1147 = vmatpush1.bf16.msra.mxu0 0
        %1148 = vmatprep.subr.bf16.mxu0 0
        %1149 = vmatpush1.bf16.msra.mxu0 0
        %1150 = vmatprep.mubr.bf16.mxu0 0
        %1151 = vmatmul.mubr.bf16.gmra.mrb[0].mxu0 %v1113
        %v1152 = vpop.f32.mrb[0].mxu0
        %v1153 = vadd.f32 0.0, %v1152
        %v1154 = vpop.f32.mrb[0].mxu0
        %v1155 = vpop.f32.mrb[0].mxu0
        %v1156 = vpop.f32.mrb[0].mxu0
        %1157 = vdwg.mxu0
        %v1158 = vpack.c.bf16 %v1153, %v1153
        %s1159 = scalar_lea.vmem %s7, 8
        %v1160 = vld [vmem:[%s1159] sm:$0xf]
        %v1162 = vsel %vm730, %v1158, 0
        %v1165 = vsel %vm795, %v1160, 0
        %1167 = vmatprep.subr.bf16.mxu0 0
        %1168 = vmatpush1.bf16.msra.mxu0 %v1165
        %1169 = vmatprep.subr.bf16.mxu0 0
        %1170 = vmatpush1.bf16.msra.mxu0 0
        %1171 = vmatprep.subr.bf16.mxu0 0
        %1172 = vmatpush1.bf16.msra.mxu0 0
        %1173 = vmatprep.subr.bf16.mxu0 0
        %1174 = vmatpush1.bf16.msra.mxu0 0
        %1175 = vmatprep.subr.bf16.mxu0 0
        %1176 = vmatpush1.bf16.msra.mxu0 0
        %1177 = vmatprep.subr.bf16.mxu0 0
        %1178 = vmatpush1.bf16.msra.mxu0 0
        %1179 = vmatprep.subr.bf16.mxu0 0
        %1180 = vmatpush1.bf16.msra.mxu0 0
        %1181 = vmatprep.subr.bf16.mxu0 0
        %1182 = vmatpush1.bf16.msra.mxu0 0
        %1183 = vmatprep.subr.bf16.mxu0 0
        %1184 = vmatpush1.bf16.msra.mxu0 0
        %1185 = vmatprep.subr.bf16.mxu0 0
        %1186 = vmatpush1.bf16.msra.mxu0 0
        %1187 = vmatprep.subr.bf16.mxu0 0
        %1188 = vmatpush1.bf16.msra.mxu0 0
        %1189 = vmatprep.subr.bf16.mxu0 0
        %1190 = vmatpush1.bf16.msra.mxu0 0
        %1191 = vmatprep.subr.bf16.mxu0 0
        %1192 = vmatpush1.bf16.msra.mxu0 0
        %1193 = vmatprep.subr.bf16.mxu0 0
        %1194 = vmatpush1.bf16.msra.mxu0 0
        %1195 = vmatprep.subr.bf16.mxu0 0
        %1196 = vmatpush1.bf16.msra.mxu0 0
        %1197 = vmatprep.subr.bf16.mxu0 0
        %1198 = vmatpush1.bf16.msra.mxu0 0
        %1199 = vmatprep.mubr.bf16.mxu0 0
        %1200 = vmatmul.mubr.bf16.gmra.mrb[0].mxu0 %v1162
        %v1201 = vpop.f32.mrb[0].mxu0
        %v1202 = vadd.f32 0.0, %v1201
        %v1203 = vpop.f32.mrb[0].mxu0
        %v1204 = vpop.f32.mrb[0].mxu0
        %v1205 = vpop.f32.mrb[0].mxu0
        %1206 = vdwg.mxu0
        %v1207 = vadd.f32 %v1042, %v1202
        %1208 = vrot.lane.b32.xlu0 %v720, 104
        %v1209 = vpop.permute.xlu0 %1208
        %1210 = vrot.lane.b32.xlu0 %v720, 72
        %v1211 = vpop.permute.xlu0 %1210
        %v1213 = vsel %vm730, %v1209, 0
        %v1216 = vsel %vm730, %v1211, 0
        %1218 = vmatprep.subr.bf16.mxu0 0
        %1219 = vmatpush1.bf16.xpose.msra.mxu0 %v1216
        %1220 = vmatprep.subr.bf16.mxu0 0
        %1221 = vmatpush1.bf16.xpose.msra.mxu0 0
        %1222 = vmatprep.subr.bf16.mxu0 0
        %1223 = vmatpush1.bf16.xpose.msra.mxu0 0
        %1224 = vmatprep.subr.bf16.mxu0 0
        %1225 = vmatpush1.bf16.xpose.msra.mxu0 0
        %1226 = vmatprep.subr.bf16.mxu0 0
        %1227 = vmatpush1.bf16.xpose.msra.mxu0 0
        %1228 = vmatprep.subr.bf16.mxu0 0
        %1229 = vmatpush1.bf16.xpose.msra.mxu0 0
        %1230 = vmatprep.subr.bf16.mxu0 0
        %1231 = vmatpush1.bf16.xpose.msra.mxu0 0
        %1232 = vmatprep.subr.bf16.mxu0 0
        %1233 = vmatpush1.bf16.xpose.msra.mxu0 0
        %1234 = vmatprep.subr.bf16.mxu0 0
        %1235 = vmatpush1.bf16.xpose.msra.mxu0 0
        %1236 = vmatprep.subr.bf16.mxu0 0
        %1237 = vmatpush1.bf16.xpose.msra.mxu0 0
        %1238 = vmatprep.subr.bf16.mxu0 0
        %1239 = vmatpush1.bf16.xpose.msra.mxu0 0
        %1240 = vmatprep.subr.bf16.mxu0 0
        %1241 = vmatpush1.bf16.xpose.msra.mxu0 0
        %1242 = vmatprep.subr.bf16.mxu0 0
        %1243 = vmatpush1.bf16.xpose.msra.mxu0 0
        %1244 = vmatprep.subr.bf16.mxu0 0
        %1245 = vmatpush1.bf16.xpose.msra.mxu0 0
        %1246 = vmatprep.subr.bf16.mxu0 0
        %1247 = vmatpush1.bf16.xpose.msra.mxu0 0
        %1248 = vmatprep.subr.bf16.mxu0 0
        %1249 = vmatpush1.bf16.xpose.msra.mxu0 0
        %1250 = vmatprep.mubr.bf16.mxu0 0
        %1251 = vmatmul.mubr.bf16.gmra.mrb[0].mxu0 %v1213
        %v1252 = vpop.f32.mrb[0].mxu0
        %v1253 = vadd.f32 %v725, %v1252
        %v1254 = vpop.f32.mrb[0].mxu0
        %v1255 = vpop.f32.mrb[0].mxu0
        %v1256 = vpop.f32.mrb[0].mxu0
        %1257 = vdwg.mxu0
        %v1258 = vsel %vm730, %v1253, -inf
        %1259 = vmax.xlane.f32.xlu0 %v1258
        %v1260 = vpop.xlane.xlu0 %1259
        %v1261 = vsub.f32 %v1253, %v1260
        %v1262 = vmul.f32 %v1261, 1.442695
        %v1263 = vpow.pop %v1262
        %v1264 = vsel %vm730, %v1263, 0.0
        %1265 = vadd.xlane.f32.xlu0 %v1264
        %v1266 = vpop.xlane.xlu0 %1265
        %v1267 = vrcp.pop %v1266
        %v1268 = vmul.f32 %v1263, %v1267
        %v1269 = vmul.f32 %v1268, %v604
        %v1270 = vpack.c.bf16 %v1269, %v1269
        %1271 = vrot.lane.b32.xlu0 %v720, 40
        %v1272 = vpop.permute.xlu0 %1271
        %v1274 = vsel %vm730, %v1270, 0
        %v1277 = vsel %vm795, %v1272, 0
        %1279 = vmatprep.subr.bf16.mxu0 0
        %1280 = vmatpush1.bf16.msra.mxu0 %v1277
        %1281 = vmatprep.subr.bf16.mxu0 0
        %1282 = vmatpush1.bf16.msra.mxu0 0
        %1283 = vmatprep.subr.bf16.mxu0 0
        %1284 = vmatpush1.bf16.msra.mxu0 0
        %1285 = vmatprep.subr.bf16.mxu0 0
        %1286 = vmatpush1.bf16.msra.mxu0 0
        %1287 = vmatprep.subr.bf16.mxu0 0
        %1288 = vmatpush1.bf16.msra.mxu0 0
        %1289 = vmatprep.subr.bf16.mxu0 0
        %1290 = vmatpush1.bf16.msra.mxu0 0
        %1291 = vmatprep.subr.bf16.mxu0 0
        %1292 = vmatpush1.bf16.msra.mxu0 0
        %1293 = vmatprep.subr.bf16.mxu0 0
        %1294 = vmatpush1.bf16.msra.mxu0 0
        %1295 = vmatprep.subr.bf16.mxu0 0
        %1296 = vmatpush1.bf16.msra.mxu0 0
        %1297 = vmatprep.subr.bf16.mxu0 0
        %1298 = vmatpush1.bf16.msra.mxu0 0
        %1299 = vmatprep.subr.bf16.mxu0 0
        %1300 = vmatpush1.bf16.msra.mxu0 0
        %1301 = vmatprep.subr.bf16.mxu0 0
        %1302 = vmatpush1.bf16.msra.mxu0 0
        %1303 = vmatprep.subr.bf16.mxu0 0
        %1304 = vmatpush1.bf16.msra.mxu0 0
        %1305 = vmatprep.subr.bf16.mxu0 0
        %1306 = vmatpush1.bf16.msra.mxu0 0
        %1307 = vmatprep.subr.bf16.mxu0 0
        %1308 = vmatpush1.bf16.msra.mxu0 0
        %1309 = vmatprep.subr.bf16.mxu0 0
        %1310 = vmatpush1.bf16.msra.mxu0 0
        %1311 = vmatprep.mubr.bf16.mxu0 0
        %1312 = vmatmul.mubr.bf16.gmra.mrb[0].mxu0 %v1274
        %v1313 = vpop.f32.mrb[0].mxu0
        %v1314 = vadd.f32 0.0, %v1313
        %v1315 = vpop.f32.mrb[0].mxu0
        %v1316 = vpop.f32.mrb[0].mxu0
        %v1317 = vpop.f32.mrb[0].mxu0
        %1318 = vdwg.mxu0
        %v1319 = vpack.c.bf16 %v1314, %v1314
        %s1320 = scalar_lea.vmem %s7, 12
        %v1321 = vld [vmem:[%s1320] sm:$0xf]
        %v1323 = vsel %vm730, %v1319, 0
        %v1326 = vsel %vm795, %v1321, 0
        %1328 = vmatprep.subr.bf16.mxu0 0
        %1329 = vmatpush1.bf16.msra.mxu0 %v1326
        %1330 = vmatprep.subr.bf16.mxu0 0
        %1331 = vmatpush1.bf16.msra.mxu0 0
        %1332 = vmatprep.subr.bf16.mxu0 0
        %1333 = vmatpush1.bf16.msra.mxu0 0
        %1334 = vmatprep.subr.bf16.mxu0 0
        %1335 = vmatpush1.bf16.msra.mxu0 0
        %1336 = vmatprep.subr.bf16.mxu0 0
        %1337 = vmatpush1.bf16.msra.mxu0 0
        %1338 = vmatprep.subr.bf16.mxu0 0
        %1339 = vmatpush1.bf16.msra.mxu0 0
        %1340 = vmatprep.subr.bf16.mxu0 0
        %1341 = vmatpush1.bf16.msra.mxu0 0
        %1342 = vmatprep.subr.bf16.mxu0 0
        %1343 = vmatpush1.bf16.msra.mxu0 0
        %1344 = vmatprep.subr.bf16.mxu0 0
        %1345 = vmatpush1.bf16.msra.mxu0 0
        %1346 = vmatprep.subr.bf16.mxu0 0
        %1347 = vmatpush1.bf16.msra.mxu0 0
        %1348 = vmatprep.subr.bf16.mxu0 0
        %1349 = vmatpush1.bf16.msra.mxu0 0
        %1350 = vmatprep.subr.bf16.mxu0 0
        %1351 = vmatpush1.bf16.msra.mxu0 0
        %1352 = vmatprep.subr.bf16.mxu0 0
        %1353 = vmatpush1.bf16.msra.mxu0 0
        %1354 = vmatprep.subr.bf16.mxu0 0
        %1355 = vmatpush1.bf16.msra.mxu0 0
        %1356 = vmatprep.subr.bf16.mxu0 0
        %1357 = vmatpush1.bf16.msra.mxu0 0
        %1358 = vmatprep.subr.bf16.mxu0 0
        %1359 = vmatpush1.bf16.msra.mxu0 0
        %1360 = vmatprep.mubr.bf16.mxu0 0
        %1361 = vmatmul.mubr.bf16.gmra.mrb[0].mxu0 %v1323
        %v1362 = vpop.f32.mrb[0].mxu0
        %v1363 = vadd.f32 0.0, %v1362
        %v1364 = vpop.f32.mrb[0].mxu0
        %v1365 = vpop.f32.mrb[0].mxu0
        %v1366 = vpop.f32.mrb[0].mxu0
        %1367 = vdwg.mxu0
        %v1368 = vadd.f32 %v1207, %v1363
        %v1370 = vlaneseq
        %v1371 = vshrl.u32 %v1370, 7
        %v1372 = vsub.s32 0, %v1371
        %v1373 = vrot.slane %v643, %v1372
        %v1375 = vadd.f32 %v1368, %v1373
        %v1376 = vadd.f32 %v637, %v1375
        %v1377 = vld [vmem:[%s9] sm:$0x1]
        %v1378 = vld [vmem:[%s10] sm:$0x1]
        %v1379 = vsel %vm608, %v1376, 0.0
        %1380 = vadd.xlane.f32.xlu0 %v1379
        %v1381 = vpop.xlane.xlu0 %1380
        %v1382 = vmul.f32 %v1381, %v612
        %v1383 = vsub.f32 %v1376, %v1382
        %v1384 = vmul.f32 %v1383, %v1383
        %v1385 = vsel %vm608, %v1384, 0.0
        %1386 = vadd.xlane.f32.xlu0 %v1385
        %v1387 = vpop.xlane.xlu0 %1386
        %v1388 = vmul.f32 %v1387, %v612
        %v1389 = vadd.f32 %v1388, 1e-07
        %v1390 = vrsqrt.pop %v1389
        %v1391 = vmul.f32 %v1383, %v1390
        %v1393 = vlaneseq
        %v1394 = vshrl.u32 %v1393, 7
        %v1395 = vsub.s32 0, %v1394
        %v1396 = vrot.slane %v1377, %v1395
        %v1398 = vmul.f32 %v1391, %v1396
        %v1400 = vlaneseq
        %v1401 = vshrl.u32 %v1400, 7
        %v1402 = vsub.s32 0, %v1401
        %v1403 = vrot.slane %v1378, %v1402
        %v1405 = vadd.f32 %v1398, %v1403
        %v1406 = vpack.c.bf16 %v1405, %v1405
        %v1408 = vlaneseq
        %v1409 = vshrl.u32 %v1408, 7
        %v1410 = vsub.s32 0, %v1409
        %v1411 = vrot.slane %v648, %v1410
        %v1417 = vunpack.c.l.b16 %v644
        %v1418 = vunpack.c.l.b16 %v645
        %v1419 = vunpack.c.l.b16 %v646
        %v1420 = vunpack.c.l.b16 %v647
        %v1421 = vpack.c.b16 %v1418, %v1417
        %v1422 = vpack.c.b16 %v1420, %v1419
        %v1426 = vsel %vm608, %v1406, 0
        %1428 = vmatprep.subr.bf16.mxu0 0
        %1429 = vmatpush1.bf16.msra.mxu0 %v1421
        %1430 = vmatprep.subr.bf16.mxu0 0
        %1431 = vmatpush1.bf16.msra.mxu0 %v1422
        %1432 = vmatprep.subr.bf16.mxu0 0
        %1433 = vmatpush1.bf16.msra.mxu0 0
        %1434 = vmatprep.subr.bf16.mxu0 0
        %1435 = vmatpush1.bf16.msra.mxu0 0
        %1436 = vmatprep.subr.bf16.mxu0 0
        %1437 = vmatpush1.bf16.msra.mxu0 0
        %1438 = vmatprep.subr.bf16.mxu0 0
        %1439 = vmatpush1.bf16.msra.mxu0 0
        %1440 = vmatprep.subr.bf16.mxu0 0
        %1441 = vmatpush1.bf16.msra.mxu0 0
        %1442 = vmatprep.subr.bf16.mxu0 0
        %1443 = vmatpush1.bf16.msra.mxu0 0
        %1444 = vmatprep.subr.bf16.mxu0 0
        %1445 = vmatpush1.bf16.msra.mxu0 0
        %1446 = vmatprep.subr.bf16.mxu0 0
        %1447 = vmatpush1.bf16.msra.mxu0 0
        %1448 = vmatprep.subr.bf16.mxu0 0
        %1449 = vmatpush1.bf16.msra.mxu0 0
        %1450 = vmatprep.subr.bf16.mxu0 0
        %1451 = vmatpush1.bf16.msra.mxu0 0
        %1452 = vmatprep.subr.bf16.mxu0 0
        %1453 = vmatpush1.bf16.msra.mxu0 0
        %1454 = vmatprep.subr.bf16.mxu0 0
        %1455 = vmatpush1.bf16.msra.mxu0 0
        %1456 = vmatprep.subr.bf16.mxu0 0
        %1457 = vmatpush1.bf16.msra.mxu0 0
        %1458 = vmatprep.subr.bf16.mxu0 0
        %1459 = vmatpush1.bf16.msra.mxu0 0
        %1460 = vmatprep.mubr.bf16.mxu0 0
        %1461 = vmatmul.mubr.bf16.gmra.mrb[0].mxu0 %v1426
        %v1462 = vpop.f32.mrb[0].mxu0
        %v1463 = vadd.f32 %v1411, %v1462
        %v1464 = vpop.f32.mrb[0].mxu0
        %v1465 = vpop.f32.mrb[0].mxu0
        %v1466 = vpop.f32.mrb[0].mxu0
        %1467 = vdwg.mxu0
        %v1468 = vmul.f32 %v1463, 0.5
        %v1469 = vmul.f32 %v1463, 0.70710677
        %vm1470 = vcmp.ge.f32.partialorder %v1469, 0.0
        %v1471 = vsel %vm1470, 1.0, -1.0
        %v1472 = vand.u32 2147483647, %v1469
        %v1473 = vmul.f32 %v1472, 0.3275911
        %v1474 = vadd.f32 %v1473, 1.0
        %v1475 = vrcp.pop %v1474
        %v1476 = vmul.f32 1.0, %v1475
        %v1477 = vmul.f32 %v1476, 1.0614054
        %v1478 = vadd.f32 %v1477, -1.4531521
        %v1479 = vmul.f32 %v1478, %v1476
        %v1480 = vadd.f32 %v1479, 1.4214138
        %v1481 = vmul.f32 %v1480, %v1476
        %v1482 = vadd.f32 %v1481, -0.28449672
        %v1483 = vmul.f32 %v1482, %v1476
        %v1484 = vadd.f32 %v1483, 0.2548296
        %v1485 = vmul.f32 %v1484, %v1476
        %v1486 = vsub.f32 0.0, %v1472
        %v1487 = vmul.f32 %v1486, %v1472
        %v1488 = vmul.f32 %v1487, 1.442695
        %v1489 = vpow.pop %v1488
        %v1490 = vmul.f32 %v1485, %v1489
        %v1491 = vsub.f32 1.0, %v1490
        %v1492 = vmul.f32 %v1471, %v1491
        %v1493 = vadd.f32 %v1492, 1.0
        %v1494 = vmul.f32 %v1468, %v1493
        %v1495 = vpack.c.bf16 %v1494, %v1494
        %v1497 = vlaneseq
        %v1498 = vshrl.u32 %v1497, 7
        %v1499 = vsub.s32 0, %v1498
        %v1500 = vrot.slane %v657, %v1499
        %v1510 = vunpack.c.l.b16 %v649
        %v1511 = vunpack.c.l.b16 %v650
        %v1512 = vunpack.c.l.b16 %v651
        %v1513 = vunpack.c.l.b16 %v652
        %v1514 = vunpack.c.l.b16 %v653
        %v1515 = vunpack.c.l.b16 %v654
        %v1516 = vunpack.c.l.b16 %v655
        %v1517 = vunpack.c.l.b16 %v656
        %v1518 = vpack.c.b16 %v1511, %v1510
        %v1519 = vpack.c.b16 %v1513, %v1512
        %v1520 = vpack.c.b16 %v1515, %v1514
        %v1521 = vpack.c.b16 %v1517, %v1516
        %vm1526 = vcmask 523264
        %v1528 = vsel %vm1526, %v1495, 0
        %1530 = vmatprep.subr.bf16.mxu0 0
        %1531 = vmatpush1.bf16.msra.mxu0 %v1518
        %1532 = vmatprep.subr.bf16.mxu0 0
        %1533 = vmatpush1.bf16.msra.mxu0 %v1519
        %1534 = vmatprep.subr.bf16.mxu0 0
        %1535 = vmatpush1.bf16.msra.mxu0 %v1520
        %1536 = vmatprep.subr.bf16.mxu0 0
        %1537 = vmatpush1.bf16.msra.mxu0 %v1521
        %1538 = vmatprep.subr.bf16.mxu0 0
        %1539 = vmatpush1.bf16.msra.mxu0 0
        %1540 = vmatprep.subr.bf16.mxu0 0
        %1541 = vmatpush1.bf16.msra.mxu0 0
        %1542 = vmatprep.subr.bf16.mxu0 0
        %1543 = vmatpush1.bf16.msra.mxu0 0
        %1544 = vmatprep.subr.bf16.mxu0 0
        %1545 = vmatpush1.bf16.msra.mxu0 0
        %1546 = vmatprep.subr.bf16.mxu0 0
        %1547 = vmatpush1.bf16.msra.mxu0 0
        %1548 = vmatprep.subr.bf16.mxu0 0
        %1549 = vmatpush1.bf16.msra.mxu0 0
        %1550 = vmatprep.subr.bf16.mxu0 0
        %1551 = vmatpush1.bf16.msra.mxu0 0
        %1552 = vmatprep.subr.bf16.mxu0 0
        %1553 = vmatpush1.bf16.msra.mxu0 0
        %1554 = vmatprep.subr.bf16.mxu0 0
        %1555 = vmatpush1.bf16.msra.mxu0 0
        %1556 = vmatprep.subr.bf16.mxu0 0
        %1557 = vmatpush1.bf16.msra.mxu0 0
        %1558 = vmatprep.subr.bf16.mxu0 0
        %1559 = vmatpush1.bf16.msra.mxu0 0
        %1560 = vmatprep.subr.bf16.mxu0 0
        %1561 = vmatpush1.bf16.msra.mxu0 0
        %1562 = vmatprep.mubr.bf16.mxu0 0
        %1563 = vmatmul.mubr.bf16.gmra.mrb[0].mxu0 %v1528
        %v1564 = vpop.f32.mrb[0].mxu0
        %v1565 = vadd.f32 %v1500, %v1564
        %v1566 = vpop.f32.mrb[0].mxu0
        %v1567 = vpop.f32.mrb[0].mxu0
        %v1568 = vpop.f32.mrb[0].mxu0
        %1569 = vdwg.mxu0
        %v1570 = vadd.f32 %v1405, %v1565
        %v1571 = vld [vmem:[%s15] sm:$0x1]
        %v1572 = vld [vmem:[%s16] sm:$0x1]
        %v1573 = vsel %vm608, %v1570, 0.0
        %1574 = vadd.xlane.f32.xlu0 %v1573
        %v1575 = vpop.xlane.xlu0 %1574
        %v1576 = vmul.f32 %v1575, %v612
        %v1577 = vsub.f32 %v1570, %v1576
        %v1578 = vmul.f32 %v1577, %v1577
        %v1579 = vsel %vm608, %v1578, 0.0
        %1580 = vadd.xlane.f32.xlu0 %v1579
        %v1581 = vpop.xlane.xlu0 %1580
        %v1582 = vmul.f32 %v1581, %v612
        %v1583 = vadd.f32 %v1582, 1e-07
        %v1584 = vrsqrt.pop %v1583
        %v1585 = vmul.f32 %v1577, %v1584
        %v1587 = vlaneseq
        %v1588 = vshrl.u32 %v1587, 7
        %v1589 = vsub.s32 0, %v1588
        %v1590 = vrot.slane %v1571, %v1589
        %v1592 = vmul.f32 %v1585, %v1590
        %v1594 = vlaneseq
        %v1595 = vshrl.u32 %v1594, 7
        %v1596 = vsub.s32 0, %v1595
        %v1597 = vrot.slane %v1572, %v1596
        %v1599 = vadd.f32 %v1592, %v1597
        %1600 = vst.msk [vmem:[%s576] sm:$0xff] %vm608, %v1599
        %s1601 = scalar_lea.vmem %s5, 16
        %v1602 = vld [vmem:[%s1601] sm:$0xf]
        %v1603 = vld [vmem:[%s1601 + $0x4] sm:$0xf]
        %v1604 = vld [vmem:[%s1601 + $0x8] sm:$0xf]
        %v1605 = vld [vmem:[%s1601 + $0xc] sm:$0xf]
        %s1606 = scalar_lea.vmem %s6, 1
        %v1607 = vld [vmem:[%s1606] sm:$0x1]
        %s1608 = scalar_lea.vmem %s8, 1
        %v1609 = vld [vmem:[%s1608] sm:$0x1]
        %s1610 = scalar_lea.vmem %s11, 16
        %v1611 = vld [vmem:[%s1610] sm:$0xf]
        %v1612 = vld [vmem:[%s1610 + $0x4] sm:$0xf]
        %v1613 = vld [vmem:[%s1610 + $0x8] sm:$0xf]
        %v1614 = vld [vmem:[%s1610 + $0xc] sm:$0xf]
        %s1615 = scalar_lea.vmem %s12, 1
        %v1616 = vld [vmem:[%s1615] sm:$0x1]
        %s1617 = scalar_lea.vmem %s13, 32
        %v1618 = vld [vmem:[%s1617] sm:$0xf]
        %v1619 = vld [vmem:[%s1617 + $0x4] sm:$0xf]
        %v1620 = vld [vmem:[%s1617 + $0x8] sm:$0xf]
        %v1621 = vld [vmem:[%s1617 + $0xc] sm:$0xf]
        %v1622 = vld [vmem:[%s1617 + $0x10] sm:$0xf]
        %v1623 = vld [vmem:[%s1617 + $0x14] sm:$0xf]
        %v1624 = vld [vmem:[%s1617 + $0x18] sm:$0xf]
        %v1625 = vld [vmem:[%s1617 + $0x1c] sm:$0xf]
        %s1626 = scalar_lea.vmem %s14, 1
        %v1627 = vld [vmem:[%s1626] sm:$0x1]
        %v1628 = vpack.c.bf16 %v1599, %v1599
        %v1630 = vlaneseq
        %v1631 = vshrl.u32 %v1630, 7
        %v1632 = vsub.s32 0, %v1631
        %v1633 = vrot.slane %v1607, %v1632
        %v1639 = vunpack.c.l.b16 %v1602
        %v1640 = vunpack.c.l.b16 %v1603
        %v1641 = vunpack.c.l.b16 %v1604
        %v1642 = vunpack.c.l.b16 %v1605
        %v1643 = vpack.c.b16 %v1640, %v1639
        %v1644 = vpack.c.b16 %v1642, %v1641
        %v1648 = vsel %vm608, %v1628, 0
        %1650 = vmatprep.subr.bf16.mxu0 0
        %1651 = vmatpush1.bf16.msra.mxu0 %v1643
        %1652 = vmatprep.subr.bf16.mxu0 0
        %1653 = vmatpush1.bf16.msra.mxu0 %v1644
        %1654 = vmatprep.subr.bf16.mxu0 0
        %1655 = vmatpush1.bf16.msra.mxu0 0
        %1656 = vmatprep.subr.bf16.mxu0 0
        %1657 = vmatpush1.bf16.msra.mxu0 0
        %1658 = vmatprep.subr.bf16.mxu0 0
        %1659 = vmatpush1.bf16.msra.mxu0 0
        %1660 = vmatprep.subr.bf16.mxu0 0
        %1661 = vmatpush1.bf16.msra.mxu0 0
        %1662 = vmatprep.subr.bf16.mxu0 0
        %1663 = vmatpush1.bf16.msra.mxu0 0
        %1664 = vmatprep.subr.bf16.mxu0 0
        %1665 = vmatpush1.bf16.msra.mxu0 0
        %1666 = vmatprep.subr.bf16.mxu0 0
        %1667 = vmatpush1.bf16.msra.mxu0 0
        %1668 = vmatprep.subr.bf16.mxu0 0
        %1669 = vmatpush1.bf16.msra.mxu0 0
        %1670 = vmatprep.subr.bf16.mxu0 0
        %1671 = vmatpush1.bf16.msra.mxu0 0
        %1672 = vmatprep.subr.bf16.mxu0 0
        %1673 = vmatpush1.bf16.msra.mxu0 0
        %1674 = vmatprep.subr.bf16.mxu0 0
        %1675 = vmatpush1.bf16.msra.mxu0 0
        %1676 = vmatprep.subr.bf16.mxu0 0
        %1677 = vmatpush1.bf16.msra.mxu0 0
        %1678 = vmatprep.subr.bf16.mxu0 0
        %1679 = vmatpush1.bf16.msra.mxu0 0
        %1680 = vmatprep.subr.bf16.mxu0 0
        %1681 = vmatpush1.bf16.msra.mxu0 0
        %1682 = vmatprep.mubr.bf16.mxu0 0
        %1683 = vmatmul.mubr.bf16.gmra.mrb[0].mxu0 %v1648
        %v1684 = vpop.f32.mrb[0].mxu0
        %v1685 = vadd.f32 %v1633, %v1684
        %v1686 = vpop.f32.mrb[0].mxu0
        %v1687 = vpop.f32.mrb[0].mxu0
        %v1688 = vpop.f32.mrb[0].mxu0
        %1689 = vdwg.mxu0
        %v1690 = vpack.c.bf16 %v1685, %v1685
        %1692 = vrot.lane.b32.xlu0 %v1690, 96
        %v1693 = vpop.permute.xlu0 %1692
        %v1695 = vsel %vm730, %v1690, 0
        %v1698 = vsel %vm730, %v1693, 0
        %1700 = vmatprep.subr.bf16.mxu0 0
        %1701 = vmatpush1.bf16.xpose.msra.mxu0 %v1698
        %1702 = vmatprep.subr.bf16.mxu0 0
        %1703 = vmatpush1.bf16.xpose.msra.mxu0 0
        %1704 = vmatprep.subr.bf16.mxu0 0
        %1705 = vmatpush1.bf16.xpose.msra.mxu0 0
        %1706 = vmatprep.subr.bf16.mxu0 0
        %1707 = vmatpush1.bf16.xpose.msra.mxu0 0
        %1708 = vmatprep.subr.bf16.mxu0 0
        %1709 = vmatpush1.bf16.xpose.msra.mxu0 0
        %1710 = vmatprep.subr.bf16.mxu0 0
        %1711 = vmatpush1.bf16.xpose.msra.mxu0 0
        %1712 = vmatprep.subr.bf16.mxu0 0
        %1713 = vmatpush1.bf16.xpose.msra.mxu0 0
        %1714 = vmatprep.subr.bf16.mxu0 0
        %1715 = vmatpush1.bf16.xpose.msra.mxu0 0
        %1716 = vmatprep.subr.bf16.mxu0 0
        %1717 = vmatpush1.bf16.xpose.msra.mxu0 0
        %1718 = vmatprep.subr.bf16.mxu0 0
        %1719 = vmatpush1.bf16.xpose.msra.mxu0 0
        %1720 = vmatprep.subr.bf16.mxu0 0
        %1721 = vmatpush1.bf16.xpose.msra.mxu0 0
        %1722 = vmatprep.subr.bf16.mxu0 0
        %1723 = vmatpush1.bf16.xpose.msra.mxu0 0
        %1724 = vmatprep.subr.bf16.mxu0 0
        %1725 = vmatpush1.bf16.xpose.msra.mxu0 0
        %1726 = vmatprep.subr.bf16.mxu0 0
        %1727 = vmatpush1.bf16.xpose.msra.mxu0 0
        %1728 = vmatprep.subr.bf16.mxu0 0
        %1729 = vmatpush1.bf16.xpose.msra.mxu0 0
        %1730 = vmatprep.subr.bf16.mxu0 0
        %1731 = vmatpush1.bf16.xpose.msra.mxu0 0
        %1732 = vmatprep.mubr.bf16.mxu0 0
        %1733 = vmatmul.mubr.bf16.gmra.mrb[0].mxu0 %v1695
        %v1734 = vpop.f32.mrb[0].mxu0
        %v1735 = vadd.f32 %v725, %v1734
        %v1736 = vpop.f32.mrb[0].mxu0
        %v1737 = vpop.f32.mrb[0].mxu0
        %v1738 = vpop.f32.mrb[0].mxu0
        %1739 = vdwg.mxu0
        %v1740 = vsel %vm730, %v1735, -inf
        %1741 = vmax.xlane.f32.xlu0 %v1740
        %v1742 = vpop.xlane.xlu0 %1741
        %v1743 = vsub.f32 %v1735, %v1742
        %v1744 = vmul.f32 %v1743, 1.442695
        %v1745 = vpow.pop %v1744
        %v1746 = vsel %vm730, %v1745, 0.0
        %1747 = vadd.xlane.f32.xlu0 %v1746
        %v1748 = vpop.xlane.xlu0 %1747
        %v1749 = vrcp.pop %v1748
        %v1750 = vmul.f32 %v1745, %v1749
        %v1751 = vmul.f32 %v1750, %v604
        %v1752 = vpack.c.bf16 %v1751, %v1751
        %1753 = vrot.lane.b32.xlu0 %v1690, 64
        %v1754 = vpop.permute.xlu0 %1753
        %v1756 = vsel %vm730, %v1752, 0
        %v1759 = vsel %vm795, %v1754, 0
        %1761 = vmatprep.subr.bf16.mxu0 0
        %1762 = vmatpush1.bf16.msra.mxu0 %v1759
        %1763 = vmatprep.subr.bf16.mxu0 0
        %1764 = vmatpush1.bf16.msra.mxu0 0
        %1765 = vmatprep.subr.bf16.mxu0 0
        %1766 = vmatpush1.bf16.msra.mxu0 0
        %1767 = vmatprep.subr.bf16.mxu0 0
        %1768 = vmatpush1.bf16.msra.mxu0 0
        %1769 = vmatprep.subr.bf16.mxu0 0
        %1770 = vmatpush1.bf16.msra.mxu0 0
        %1771 = vmatprep.subr.bf16.mxu0 0
        %1772 = vmatpush1.bf16.msra.mxu0 0
        %1773 = vmatprep.subr.bf16.mxu0 0
        %1774 = vmatpush1.bf16.msra.mxu0 0
        %1775 = vmatprep.subr.bf16.mxu0 0
        %1776 = vmatpush1.bf16.msra.mxu0 0
        %1777 = vmatprep.subr.bf16.mxu0 0
        %1778 = vmatpush1.bf16.msra.mxu0 0
        %1779 = vmatprep.subr.bf16.mxu0 0
        %1780 = vmatpush1.bf16.msra.mxu0 0
        %1781 = vmatprep.subr.bf16.mxu0 0
        %1782 = vmatpush1.bf16.msra.mxu0 0
        %1783 = vmatprep.subr.bf16.mxu0 0
        %1784 = vmatpush1.bf16.msra.mxu0 0
        %1785 = vmatprep.subr.bf16.mxu0 0
        %1786 = vmatpush1.bf16.msra.mxu0 0
        %1787 = vmatprep.subr.bf16.mxu0 0
        %1788 = vmatpush1.bf16.msra.mxu0 0
        %1789 = vmatprep.subr.bf16.mxu0 0
        %1790 = vmatpush1.bf16.msra.mxu0 0
        %1791 = vmatprep.subr.bf16.mxu0 0
        %1792 = vmatpush1.bf16.msra.mxu0 0
        %1793 = vmatprep.mubr.bf16.mxu0 0
        %1794 = vmatmul.mubr.bf16.gmra.mrb[0].mxu0 %v1756
        %v1795 = vpop.f32.mrb[0].mxu0
        %v1796 = vadd.f32 0.0, %v1795
        %v1797 = vpop.f32.mrb[0].mxu0
        %v1798 = vpop.f32.mrb[0].mxu0
        %v1799 = vpop.f32.mrb[0].mxu0
        %1800 = vdwg.mxu0
        %v1801 = vpack.c.bf16 %v1796, %v1796
        %s1802 = scalar_lea.vmem %s7, 16
        %v1803 = vld [vmem:[%s1802] sm:$0xf]
        %1804 = vrot.lane.b32.xlu0 %v1690, 120
        %v1805 = vpop.permute.xlu0 %1804
        %1806 = vrot.lane.b32.xlu0 %v1690, 88
        %v1807 = vpop.permute.xlu0 %1806
        %v1809 = vsel %vm730, %v1805, 0
        %v1812 = vsel %vm730, %v1807, 0
        %1814 = vmatprep.subr.bf16.mxu0 0
        %1815 = vmatpush1.bf16.xpose.msra.mxu0 %v1812
        %1816 = vmatprep.subr.bf16.mxu0 0
        %1817 = vmatpush1.bf16.xpose.msra.mxu0 0
        %1818 = vmatprep.subr.bf16.mxu0 0
        %1819 = vmatpush1.bf16.xpose.msra.mxu0 0
        %1820 = vmatprep.subr.bf16.mxu0 0
        %1821 = vmatpush1.bf16.xpose.msra.mxu0 0
        %1822 = vmatprep.subr.bf16.mxu0 0
        %1823 = vmatpush1.bf16.xpose.msra.mxu0 0
        %1824 = vmatprep.subr.bf16.mxu0 0
        %1825 = vmatpush1.bf16.xpose.msra.mxu0 0
        %1826 = vmatprep.subr.bf16.mxu0 0
        %1827 = vmatpush1.bf16.xpose.msra.mxu0 0
        %1828 = vmatprep.subr.bf16.mxu0 0
        %1829 = vmatpush1.bf16.xpose.msra.mxu0 0
        %1830 = vmatprep.subr.bf16.mxu0 0
        %1831 = vmatpush1.bf16.xpose.msra.mxu0 0
        %1832 = vmatprep.subr.bf16.mxu0 0
        %1833 = vmatpush1.bf16.xpose.msra.mxu0 0
        %1834 = vmatprep.subr.bf16.mxu0 0
        %1835 = vmatpush1.bf16.xpose.msra.mxu0 0
        %1836 = vmatprep.subr.bf16.mxu0 0
        %1837 = vmatpush1.bf16.xpose.msra.mxu0 0
        %1838 = vmatprep.subr.bf16.mxu0 0
        %1839 = vmatpush1.bf16.xpose.msra.mxu0 0
        %1840 = vmatprep.subr.bf16.mxu0 0
        %1841 = vmatpush1.bf16.xpose.msra.mxu0 0
        %1842 = vmatprep.subr.bf16.mxu0 0
        %1843 = vmatpush1.bf16.xpose.msra.mxu0 0
        %1844 = vmatprep.subr.bf16.mxu0 0
        %1845 = vmatpush1.bf16.xpose.msra.mxu0 0
        %1846 = vmatprep.mubr.bf16.mxu0 0
        %1847 = vmatmul.mubr.bf16.gmra.mrb[0].mxu0 %v1809
        %v1848 = vpop.f32.mrb[0].mxu0
        %v1849 = vadd.f32 %v725, %v1848
        %v1850 = vpop.f32.mrb[0].mxu0
        %v1851 = vpop.f32.mrb[0].mxu0
        %v1852 = vpop.f32.mrb[0].mxu0
        %1853 = vdwg.mxu0
        %v1854 = vsel %vm730, %v1849, -inf
        %1855 = vmax.xlane.f32.xlu0 %v1854
        %v1856 = vpop.xlane.xlu0 %1855
        %v1857 = vsub.f32 %v1849, %v1856
        %v1858 = vmul.f32 %v1857, 1.442695
        %v1859 = vpow.pop %v1858
        %v1860 = vsel %vm730, %v1859, 0.0
        %1861 = vadd.xlane.f32.xlu0 %v1860
        %v1862 = vpop.xlane.xlu0 %1861
        %v1863 = vrcp.pop %v1862
        %v1864 = vmul.f32 %v1859, %v1863
        %v1865 = vmul.f32 %v1864, %v604
        %v1866 = vpack.c.bf16 %v1865, %v1865
        %1867 = vrot.lane.b32.xlu0 %v1690, 56
        %v1868 = vpop.permute.xlu0 %1867
        %v1870 = vsel %vm730, %v1866, 0
        %v1873 = vsel %vm795, %v1868, 0
        %1875 = vmatprep.subr.bf16.mxu0 0
        %1876 = vmatpush1.bf16.msra.mxu0 %v1873
        %1877 = vmatprep.subr.bf16.mxu0 0
        %1878 = vmatpush1.bf16.msra.mxu0 0
        %1879 = vmatprep.subr.bf16.mxu0 0
        %1880 = vmatpush1.bf16.msra.mxu0 0
        %1881 = vmatprep.subr.bf16.mxu0 0
        %1882 = vmatpush1.bf16.msra.mxu0 0
        %1883 = vmatprep.subr.bf16.mxu0 0
        %1884 = vmatpush1.bf16.msra.mxu0 0
        %1885 = vmatprep.subr.bf16.mxu0 0
        %1886 = vmatpush1.bf16.msra.mxu0 0
        %1887 = vmatprep.subr.bf16.mxu0 0
        %1888 = vmatpush1.bf16.msra.mxu0 0
        %1889 = vmatprep.subr.bf16.mxu0 0
        %1890 = vmatpush1.bf16.msra.mxu0 0
        %1891 = vmatprep.subr.bf16.mxu0 0
        %1892 = vmatpush1.bf16.msra.mxu0 0
        %1893 = vmatprep.subr.bf16.mxu0 0
        %1894 = vmatpush1.bf16.msra.mxu0 0
        %1895 = vmatprep.subr.bf16.mxu0 0
        %1896 = vmatpush1.bf16.msra.mxu0 0
        %1897 = vmatprep.subr.bf16.mxu0 0
        %1898 = vmatpush1.bf16.msra.mxu0 0
        %1899 = vmatprep.subr.bf16.mxu0 0
        %1900 = vmatpush1.bf16.msra.mxu0 0
        %1901 = vmatprep.subr.bf16.mxu0 0
        %1902 = vmatpush1.bf16.msra.mxu0 0
        %1903 = vmatprep.subr.bf16.mxu0 0
        %1904 = vmatpush1.bf16.msra.mxu0 0
        %1905 = vmatprep.subr.bf16.mxu0 0
        %1906 = vmatpush1.bf16.msra.mxu0 0
        %1907 = vmatprep.mubr.bf16.mxu0 0
        %1908 = vmatmul.mubr.bf16.gmra.mrb[0].mxu0 %v1870
        %v1909 = vpop.f32.mrb[0].mxu0
        %v1910 = vadd.f32 0.0, %v1909
        %v1911 = vpop.f32.mrb[0].mxu0
        %v1912 = vpop.f32.mrb[0].mxu0
        %v1913 = vpop.f32.mrb[0].mxu0
        %1914 = vdwg.mxu0
        %v1915 = vpack.c.bf16 %v1910, %v1910
        %s1916 = scalar_lea.vmem %s7, 20
        %v1917 = vld [vmem:[%s1916] sm:$0xf]
        %v1919 = vsel %vm730, %v1915, 0
        %v1922 = vsel %vm795, %v1917, 0
        %1924 = vmatprep.subr.bf16.mxu0 0
        %1925 = vmatpush1.bf16.msra.mxu0 %v1922
        %1926 = vmatprep.subr.bf16.mxu0 0
        %1927 = vmatpush1.bf16.msra.mxu0 0
        %1928 = vmatprep.subr.bf16.mxu0 0
        %1929 = vmatpush1.bf16.msra.mxu0 0
        %1930 = vmatprep.subr.bf16.mxu0 0
        %1931 = vmatpush1.bf16.msra.mxu0 0
        %1932 = vmatprep.subr.bf16.mxu0 0
        %1933 = vmatpush1.bf16.msra.mxu0 0
        %1934 = vmatprep.subr.bf16.mxu0 0
        %1935 = vmatpush1.bf16.msra.mxu0 0
        %1936 = vmatprep.subr.bf16.mxu0 0
        %1937 = vmatpush1.bf16.msra.mxu0 0
        %1938 = vmatprep.subr.bf16.mxu0 0
        %1939 = vmatpush1.bf16.msra.mxu0 0
        %1940 = vmatprep.subr.bf16.mxu0 0
        %1941 = vmatpush1.bf16.msra.mxu0 0
        %1942 = vmatprep.subr.bf16.mxu0 0
        %1943 = vmatpush1.bf16.msra.mxu0 0
        %1944 = vmatprep.subr.bf16.mxu0 0
        %1945 = vmatpush1.bf16.msra.mxu0 0
        %1946 = vmatprep.subr.bf16.mxu0 0
        %1947 = vmatpush1.bf16.msra.mxu0 0
        %1948 = vmatprep.subr.bf16.mxu0 0
        %1949 = vmatpush1.bf16.msra.mxu0 0
        %1950 = vmatprep.subr.bf16.mxu0 0
        %1951 = vmatpush1.bf16.msra.mxu0 0
        %1952 = vmatprep.subr.bf16.mxu0 0
        %1953 = vmatpush1.bf16.msra.mxu0 0
        %1954 = vmatprep.subr.bf16.mxu0 0
        %1955 = vmatpush1.bf16.msra.mxu0 0
        %1956 = vmatprep.mubr.bf16.mxu0 0
        %1957 = vmatmul.mubr.bf16.gmra.mrb[0].mxu0 %v1919
        %v1958 = vpop.f32.mrb[0].mxu0
        %v1959 = vadd.f32 0.0, %v1958
        %v1960 = vpop.f32.mrb[0].mxu0
        %v1961 = vpop.f32.mrb[0].mxu0
        %v1962 = vpop.f32.mrb[0].mxu0
        %1963 = vdwg.mxu0
        %v1965 = vsel %vm730, %v1801, 0
        %v1968 = vsel %vm795, %v1803, 0
        %1970 = vmatprep.subr.bf16.mxu0 0
        %1971 = vmatpush1.bf16.msra.mxu0 %v1968
        %1972 = vmatprep.subr.bf16.mxu0 0
        %1973 = vmatpush1.bf16.msra.mxu0 0
        %1974 = vmatprep.subr.bf16.mxu0 0
        %1975 = vmatpush1.bf16.msra.mxu0 0
        %1976 = vmatprep.subr.bf16.mxu0 0
        %1977 = vmatpush1.bf16.msra.mxu0 0
        %1978 = vmatprep.subr.bf16.mxu0 0
        %1979 = vmatpush1.bf16.msra.mxu0 0
        %1980 = vmatprep.subr.bf16.mxu0 0
        %1981 = vmatpush1.bf16.msra.mxu0 0
        %1982 = vmatprep.subr.bf16.mxu0 0
        %1983 = vmatpush1.bf16.msra.mxu0 0
        %1984 = vmatprep.subr.bf16.mxu0 0
        %1985 = vmatpush1.bf16.msra.mxu0 0
        %1986 = vmatprep.subr.bf16.mxu0 0
        %1987 = vmatpush1.bf16.msra.mxu0 0
        %1988 = vmatprep.subr.bf16.mxu0 0
        %1989 = vmatpush1.bf16.msra.mxu0 0
        %1990 = vmatprep.subr.bf16.mxu0 0
        %1991 = vmatpush1.bf16.msra.mxu0 0
        %1992 = vmatprep.subr.bf16.mxu0 0
        %1993 = vmatpush1.bf16.msra.mxu0 0
        %1994 = vmatprep.subr.bf16.mxu0 0
        %1995 = vmatpush1.bf16.msra.mxu0 0
        %1996 = vmatprep.subr.bf16.mxu0 0
        %1997 = vmatpush1.bf16.msra.mxu0 0
        %1998 = vmatprep.subr.bf16.mxu0 0
        %1999 = vmatpush1.bf16.msra.mxu0 0
        %2000 = vmatprep.subr.bf16.mxu0 0
        %2001 = vmatpush1.bf16.msra.mxu0 0
        %2002 = vmatprep.mubr.bf16.mxu0 0
        %2003 = vmatmul.mubr.bf16.gmra.mrb[0].mxu0 %v1965
        %v2004 = vpop.f32.mrb[0].mxu0
        %v2005 = vadd.f32 %v1959, %v2004
        %v2006 = vpop.f32.mrb[0].mxu0
        %v2007 = vpop.f32.mrb[0].mxu0
        %v2008 = vpop.f32.mrb[0].mxu0
        %2009 = vdwg.mxu0
        %2010 = vrot.lane.b32.xlu0 %v1690, 112
        %v2011 = vpop.permute.xlu0 %2010
        %2012 = vrot.lane.b32.xlu0 %v1690, 80
        %v2013 = vpop.permute.xlu0 %2012
        %v2015 = vsel %vm730, %v2011, 0
        %v2018 = vsel %vm730, %v2013, 0
        %2020 = vmatprep.subr.bf16.mxu0 0
        %2021 = vmatpush1.bf16.xpose.msra.mxu0 %v2018
        %2022 = vmatprep.subr.bf16.mxu0 0
        %2023 = vmatpush1.bf16.xpose.msra.mxu0 0
        %2024 = vmatprep.subr.bf16.mxu0 0
        %2025 = vmatpush1.bf16.xpose.msra.mxu0 0
        %2026 = vmatprep.subr.bf16.mxu0 0
        %2027 = vmatpush1.bf16.xpose.msra.mxu0 0
        %2028 = vmatprep.subr.bf16.mxu0 0
        %2029 = vmatpush1.bf16.xpose.msra.mxu0 0
        %2030 = vmatprep.subr.bf16.mxu0 0
        %2031 = vmatpush1.bf16.xpose.msra.mxu0 0
        %2032 = vmatprep.subr.bf16.mxu0 0
        %2033 = vmatpush1.bf16.xpose.msra.mxu0 0
        %2034 = vmatprep.subr.bf16.mxu0 0
        %2035 = vmatpush1.bf16.xpose.msra.mxu0 0
        %2036 = vmatprep.subr.bf16.mxu0 0
        %2037 = vmatpush1.bf16.xpose.msra.mxu0 0
        %2038 = vmatprep.subr.bf16.mxu0 0
        %2039 = vmatpush1.bf16.xpose.msra.mxu0 0
        %2040 = vmatprep.subr.bf16.mxu0 0
        %2041 = vmatpush1.bf16.xpose.msra.mxu0 0
        %2042 = vmatprep.subr.bf16.mxu0 0
        %2043 = vmatpush1.bf16.xpose.msra.mxu0 0
        %2044 = vmatprep.subr.bf16.mxu0 0
        %2045 = vmatpush1.bf16.xpose.msra.mxu0 0
        %2046 = vmatprep.subr.bf16.mxu0 0
        %2047 = vmatpush1.bf16.xpose.msra.mxu0 0
        %2048 = vmatprep.subr.bf16.mxu0 0
        %2049 = vmatpush1.bf16.xpose.msra.mxu0 0
        %2050 = vmatprep.subr.bf16.mxu0 0
        %2051 = vmatpush1.bf16.xpose.msra.mxu0 0
        %2052 = vmatprep.mubr.bf16.mxu0 0
        %2053 = vmatmul.mubr.bf16.gmra.mrb[0].mxu0 %v2015
        %v2054 = vpop.f32.mrb[0].mxu0
        %v2055 = vadd.f32 %v725, %v2054
        %v2056 = vpop.f32.mrb[0].mxu0
        %v2057 = vpop.f32.mrb[0].mxu0
        %v2058 = vpop.f32.mrb[0].mxu0
        %2059 = vdwg.mxu0
        %v2060 = vsel %vm730, %v2055, -inf
        %2061 = vmax.xlane.f32.xlu0 %v2060
        %v2062 = vpop.xlane.xlu0 %2061
        %v2063 = vsub.f32 %v2055, %v2062
        %v2064 = vmul.f32 %v2063, 1.442695
        %v2065 = vpow.pop %v2064
        %v2066 = vsel %vm730, %v2065, 0.0
        %2067 = vadd.xlane.f32.xlu0 %v2066
        %v2068 = vpop.xlane.xlu0 %2067
        %v2069 = vrcp.pop %v2068
        %v2070 = vmul.f32 %v2065, %v2069
        %v2071 = vmul.f32 %v2070, %v604
        %v2072 = vpack.c.bf16 %v2071, %v2071
        %2073 = vrot.lane.b32.xlu0 %v1690, 48
        %v2074 = vpop.permute.xlu0 %2073
        %v2076 = vsel %vm730, %v2072, 0
        %v2079 = vsel %vm795, %v2074, 0
        %2081 = vmatprep.subr.bf16.mxu0 0
        %2082 = vmatpush1.bf16.msra.mxu0 %v2079
        %2083 = vmatprep.subr.bf16.mxu0 0
        %2084 = vmatpush1.bf16.msra.mxu0 0
        %2085 = vmatprep.subr.bf16.mxu0 0
        %2086 = vmatpush1.bf16.msra.mxu0 0
        %2087 = vmatprep.subr.bf16.mxu0 0
        %2088 = vmatpush1.bf16.msra.mxu0 0
        %2089 = vmatprep.subr.bf16.mxu0 0
        %2090 = vmatpush1.bf16.msra.mxu0 0
        %2091 = vmatprep.subr.bf16.mxu0 0
        %2092 = vmatpush1.bf16.msra.mxu0 0
        %2093 = vmatprep.subr.bf16.mxu0 0
        %2094 = vmatpush1.bf16.msra.mxu0 0
        %2095 = vmatprep.subr.bf16.mxu0 0
        %2096 = vmatpush1.bf16.msra.mxu0 0
        %2097 = vmatprep.subr.bf16.mxu0 0
        %2098 = vmatpush1.bf16.msra.mxu0 0
        %2099 = vmatprep.subr.bf16.mxu0 0
        %2100 = vmatpush1.bf16.msra.mxu0 0
        %2101 = vmatprep.subr.bf16.mxu0 0
        %2102 = vmatpush1.bf16.msra.mxu0 0
        %2103 = vmatprep.subr.bf16.mxu0 0
        %2104 = vmatpush1.bf16.msra.mxu0 0
        %2105 = vmatprep.subr.bf16.mxu0 0
        %2106 = vmatpush1.bf16.msra.mxu0 0
        %2107 = vmatprep.subr.bf16.mxu0 0
        %2108 = vmatpush1.bf16.msra.mxu0 0
        %2109 = vmatprep.subr.bf16.mxu0 0
        %2110 = vmatpush1.bf16.msra.mxu0 0
        %2111 = vmatprep.subr.bf16.mxu0 0
        %2112 = vmatpush1.bf16.msra.mxu0 0
        %2113 = vmatprep.mubr.bf16.mxu0 0
        %2114 = vmatmul.mubr.bf16.gmra.mrb[0].mxu0 %v2076
        %v2115 = vpop.f32.mrb[0].mxu0
        %v2116 = vadd.f32 0.0, %v2115
        %v2117 = vpop.f32.mrb[0].mxu0
        %v2118 = vpop.f32.mrb[0].mxu0
        %v2119 = vpop.f32.mrb[0].mxu0
        %2120 = vdwg.mxu0
        %v2121 = vpack.c.bf16 %v2116, %v2116
        %s2122 = scalar_lea.vmem %s7, 24
        %v2123 = vld [vmem:[%s2122] sm:$0xf]
        %v2125 = vsel %vm730, %v2121, 0
        %v2128 = vsel %vm795, %v2123, 0
        %2130 = vmatprep.subr.bf16.mxu0 0
        %2131 = vmatpush1.bf16.msra.mxu0 %v2128
        %2132 = vmatprep.subr.bf16.mxu0 0
        %2133 = vmatpush1.bf16.msra.mxu0 0
        %2134 = vmatprep.subr.bf16.mxu0 0
        %2135 = vmatpush1.bf16.msra.mxu0 0
        %2136 = vmatprep.subr.bf16.mxu0 0
        %2137 = vmatpush1.bf16.msra.mxu0 0
        %2138 = vmatprep.subr.bf16.mxu0 0
        %2139 = vmatpush1.bf16.msra.mxu0 0
        %2140 = vmatprep.subr.bf16.mxu0 0
        %2141 = vmatpush1.bf16.msra.mxu0 0
        %2142 = vmatprep.subr.bf16.mxu0 0
        %2143 = vmatpush1.bf16.msra.mxu0 0
        %2144 = vmatprep.subr.bf16.mxu0 0
        %2145 = vmatpush1.bf16.msra.mxu0 0
        %2146 = vmatprep.subr.bf16.mxu0 0
        %2147 = vmatpush1.bf16.msra.mxu0 0
        %2148 = vmatprep.subr.bf16.mxu0 0
        %2149 = vmatpush1.bf16.msra.mxu0 0
        %2150 = vmatprep.subr.bf16.mxu0 0
        %2151 = vmatpush1.bf16.msra.mxu0 0
        %2152 = vmatprep.subr.bf16.mxu0 0
        %2153 = vmatpush1.bf16.msra.mxu0 0
        %2154 = vmatprep.subr.bf16.mxu0 0
        %2155 = vmatpush1.bf16.msra.mxu0 0
        %2156 = vmatprep.subr.bf16.mxu0 0
        %2157 = vmatpush1.bf16.msra.mxu0 0
        %2158 = vmatprep.subr.bf16.mxu0 0
        %2159 = vmatpush1.bf16.msra.mxu0 0
        %2160 = vmatprep.subr.bf16.mxu0 0
        %2161 = vmatpush1.bf16.msra.mxu0 0
        %2162 = vmatprep.mubr.bf16.mxu0 0
        %2163 = vmatmul.mubr.bf16.gmra.mrb[0].mxu0 %v2125
        %v2164 = vpop.f32.mrb[0].mxu0
        %v2165 = vadd.f32 0.0, %v2164
        %v2166 = vpop.f32.mrb[0].mxu0
        %v2167 = vpop.f32.mrb[0].mxu0
        %v2168 = vpop.f32.mrb[0].mxu0
        %2169 = vdwg.mxu0
        %v2170 = vadd.f32 %v2005, %v2165
        %2171 = vrot.lane.b32.xlu0 %v1690, 104
        %v2172 = vpop.permute.xlu0 %2171
        %2173 = vrot.lane.b32.xlu0 %v1690, 72
        %v2174 = vpop.permute.xlu0 %2173
        %v2176 = vsel %vm730, %v2172, 0
        %v2179 = vsel %vm730, %v2174, 0
        %2181 = vmatprep.subr.bf16.mxu0 0
        %2182 = vmatpush1.bf16.xpose.msra.mxu0 %v2179
        %2183 = vmatprep.subr.bf16.mxu0 0
        %2184 = vmatpush1.bf16.xpose.msra.mxu0 0
        %2185 = vmatprep.subr.bf16.mxu0 0
        %2186 = vmatpush1.bf16.xpose.msra.mxu0 0
        %2187 = vmatprep.subr.bf16.mxu0 0
        %2188 = vmatpush1.bf16.xpose.msra.mxu0 0
        %2189 = vmatprep.subr.bf16.mxu0 0
        %2190 = vmatpush1.bf16.xpose.msra.mxu0 0
        %2191 = vmatprep.subr.bf16.mxu0 0
        %2192 = vmatpush1.bf16.xpose.msra.mxu0 0
        %2193 = vmatprep.subr.bf16.mxu0 0
        %2194 = vmatpush1.bf16.xpose.msra.mxu0 0
        %2195 = vmatprep.subr.bf16.mxu0 0
        %2196 = vmatpush1.bf16.xpose.msra.mxu0 0
        %2197 = vmatprep.subr.bf16.mxu0 0
        %2198 = vmatpush1.bf16.xpose.msra.mxu0 0
        %2199 = vmatprep.subr.bf16.mxu0 0
        %2200 = vmatpush1.bf16.xpose.msra.mxu0 0
        %2201 = vmatprep.subr.bf16.mxu0 0
        %2202 = vmatpush1.bf16.xpose.msra.mxu0 0
        %2203 = vmatprep.subr.bf16.mxu0 0
        %2204 = vmatpush1.bf16.xpose.msra.mxu0 0
        %2205 = vmatprep.subr.bf16.mxu0 0
        %2206 = vmatpush1.bf16.xpose.msra.mxu0 0
        %2207 = vmatprep.subr.bf16.mxu0 0
        %2208 = vmatpush1.bf16.xpose.msra.mxu0 0
        %2209 = vmatprep.subr.bf16.mxu0 0
        %2210 = vmatpush1.bf16.xpose.msra.mxu0 0
        %2211 = vmatprep.subr.bf16.mxu0 0
        %2212 = vmatpush1.bf16.xpose.msra.mxu0 0
        %2213 = vmatprep.mubr.bf16.mxu0 0
        %2214 = vmatmul.mubr.bf16.gmra.mrb[0].mxu0 %v2176
        %v2215 = vpop.f32.mrb[0].mxu0
        %v2216 = vadd.f32 %v725, %v2215
        %v2217 = vpop.f32.mrb[0].mxu0
        %v2218 = vpop.f32.mrb[0].mxu0
        %v2219 = vpop.f32.mrb[0].mxu0
        %2220 = vdwg.mxu0
        %v2221 = vsel %vm730, %v2216, -inf
        %2222 = vmax.xlane.f32.xlu0 %v2221
        %v2223 = vpop.xlane.xlu0 %2222
        %v2224 = vsub.f32 %v2216, %v2223
        %v2225 = vmul.f32 %v2224, 1.442695
        %v2226 = vpow.pop %v2225
        %v2227 = vsel %vm730, %v2226, 0.0
        %2228 = vadd.xlane.f32.xlu0 %v2227
        %v2229 = vpop.xlane.xlu0 %2228
        %v2230 = vrcp.pop %v2229
        %v2231 = vmul.f32 %v2226, %v2230
        %v2232 = vmul.f32 %v2231, %v604
        %v2233 = vpack.c.bf16 %v2232, %v2232
        %2234 = vrot.lane.b32.xlu0 %v1690, 40
        %v2235 = vpop.permute.xlu0 %2234
        %v2237 = vsel %vm730, %v2233, 0
        %v2240 = vsel %vm795, %v2235, 0
        %2242 = vmatprep.subr.bf16.mxu0 0
        %2243 = vmatpush1.bf16.msra.mxu0 %v2240
        %2244 = vmatprep.subr.bf16.mxu0 0
        %2245 = vmatpush1.bf16.msra.mxu0 0
        %2246 = vmatprep.subr.bf16.mxu0 0
        %2247 = vmatpush1.bf16.msra.mxu0 0
        %2248 = vmatprep.subr.bf16.mxu0 0
        %2249 = vmatpush1.bf16.msra.mxu0 0
        %2250 = vmatprep.subr.bf16.mxu0 0
        %2251 = vmatpush1.bf16.msra.mxu0 0
        %2252 = vmatprep.subr.bf16.mxu0 0
        %2253 = vmatpush1.bf16.msra.mxu0 0
        %2254 = vmatprep.subr.bf16.mxu0 0
        %2255 = vmatpush1.bf16.msra.mxu0 0
        %2256 = vmatprep.subr.bf16.mxu0 0
        %2257 = vmatpush1.bf16.msra.mxu0 0
        %2258 = vmatprep.subr.bf16.mxu0 0
        %2259 = vmatpush1.bf16.msra.mxu0 0
        %2260 = vmatprep.subr.bf16.mxu0 0
        %2261 = vmatpush1.bf16.msra.mxu0 0
        %2262 = vmatprep.subr.bf16.mxu0 0
        %2263 = vmatpush1.bf16.msra.mxu0 0
        %2264 = vmatprep.subr.bf16.mxu0 0
        %2265 = vmatpush1.bf16.msra.mxu0 0
        %2266 = vmatprep.subr.bf16.mxu0 0
        %2267 = vmatpush1.bf16.msra.mxu0 0
        %2268 = vmatprep.subr.bf16.mxu0 0
        %2269 = vmatpush1.bf16.msra.mxu0 0
        %2270 = vmatprep.subr.bf16.mxu0 0
        %2271 = vmatpush1.bf16.msra.mxu0 0
        %2272 = vmatprep.subr.bf16.mxu0 0
        %2273 = vmatpush1.bf16.msra.mxu0 0
        %2274 = vmatprep.mubr.bf16.mxu0 0
        %2275 = vmatmul.mubr.bf16.gmra.mrb[0].mxu0 %v2237
        %v2276 = vpop.f32.mrb[0].mxu0
        %v2277 = vadd.f32 0.0, %v2276
        %v2278 = vpop.f32.mrb[0].mxu0
        %v2279 = vpop.f32.mrb[0].mxu0
        %v2280 = vpop.f32.mrb[0].mxu0
        %2281 = vdwg.mxu0
        %v2282 = vpack.c.bf16 %v2277, %v2277
        %s2283 = scalar_lea.vmem %s7, 28
        %v2284 = vld [vmem:[%s2283] sm:$0xf]
        %v2286 = vsel %vm730, %v2282, 0
        %v2289 = vsel %vm795, %v2284, 0
        %2291 = vmatprep.subr.bf16.mxu0 0
        %2292 = vmatpush1.bf16.msra.mxu0 %v2289
        %2293 = vmatprep.subr.bf16.mxu0 0
        %2294 = vmatpush1.bf16.msra.mxu0 0
        %2295 = vmatprep.subr.bf16.mxu0 0
        %2296 = vmatpush1.bf16.msra.mxu0 0
        %2297 = vmatprep.subr.bf16.mxu0 0
        %2298 = vmatpush1.bf16.msra.mxu0 0
        %2299 = vmatprep.subr.bf16.mxu0 0
        %2300 = vmatpush1.bf16.msra.mxu0 0
        %2301 = vmatprep.subr.bf16.mxu0 0
        %2302 = vmatpush1.bf16.msra.mxu0 0
        %2303 = vmatprep.subr.bf16.mxu0 0
        %2304 = vmatpush1.bf16.msra.mxu0 0
        %2305 = vmatprep.subr.bf16.mxu0 0
        %2306 = vmatpush1.bf16.msra.mxu0 0
        %2307 = vmatprep.subr.bf16.mxu0 0
        %2308 = vmatpush1.bf16.msra.mxu0 0
        %2309 = vmatprep.subr.bf16.mxu0 0
        %2310 = vmatpush1.bf16.msra.mxu0 0
        %2311 = vmatprep.subr.bf16.mxu0 0
        %2312 = vmatpush1.bf16.msra.mxu0 0
        %2313 = vmatprep.subr.bf16.mxu0 0
        %2314 = vmatpush1.bf16.msra.mxu0 0
        %2315 = vmatprep.subr.bf16.mxu0 0
        %2316 = vmatpush1.bf16.msra.mxu0 0
        %2317 = vmatprep.subr.bf16.mxu0 0
        %2318 = vmatpush1.bf16.msra.mxu0 0
        %2319 = vmatprep.subr.bf16.mxu0 0
        %2320 = vmatpush1.bf16.msra.mxu0 0
        %2321 = vmatprep.subr.bf16.mxu0 0
        %2322 = vmatpush1.bf16.msra.mxu0 0
        %2323 = vmatprep.mubr.bf16.mxu0 0
        %2324 = vmatmul.mubr.bf16.gmra.mrb[0].mxu0 %v2286
        %v2325 = vpop.f32.mrb[0].mxu0
        %v2326 = vadd.f32 0.0, %v2325
        %v2327 = vpop.f32.mrb[0].mxu0
        %v2328 = vpop.f32.mrb[0].mxu0
        %v2329 = vpop.f32.mrb[0].mxu0
        %2330 = vdwg.mxu0
        %v2331 = vadd.f32 %v2170, %v2326
        %v2333 = vlaneseq
        %v2334 = vshrl.u32 %v2333, 7
        %v2335 = vsub.s32 0, %v2334
        %v2336 = vrot.slane %v1609, %v2335
        %v2338 = vadd.f32 %v2331, %v2336
        %v2339 = vadd.f32 %v1599, %v2338
        %s2340 = scalar_lea.vmem %s9, 1
        %v2341 = vld [vmem:[%s2340] sm:$0x1]
        %s2342 = scalar_lea.vmem %s10, 1
        %v2343 = vld [vmem:[%s2342] sm:$0x1]
        %v2344 = vsel %vm608, %v2339, 0.0
        %2345 = vadd.xlane.f32.xlu0 %v2344
        %v2346 = vpop.xlane.xlu0 %2345
        %v2347 = vmul.f32 %v2346, %v612
        %v2348 = vsub.f32 %v2339, %v2347
        %v2349 = vmul.f32 %v2348, %v2348
        %v2350 = vsel %vm608, %v2349, 0.0
        %2351 = vadd.xlane.f32.xlu0 %v2350
        %v2352 = vpop.xlane.xlu0 %2351
        %v2353 = vmul.f32 %v2352, %v612
        %v2354 = vadd.f32 %v2353, 1e-07
        %v2355 = vrsqrt.pop %v2354
        %v2356 = vmul.f32 %v2348, %v2355
        %v2358 = vlaneseq
        %v2359 = vshrl.u32 %v2358, 7
        %v2360 = vsub.s32 0, %v2359
        %v2361 = vrot.slane %v2341, %v2360
        %v2363 = vmul.f32 %v2356, %v2361
        %v2365 = vlaneseq
        %v2366 = vshrl.u32 %v2365, 7
        %v2367 = vsub.s32 0, %v2366
        %v2368 = vrot.slane %v2343, %v2367
        %v2370 = vadd.f32 %v2363, %v2368
        %v2371 = vpack.c.bf16 %v2370, %v2370
        %v2373 = vlaneseq
        %v2374 = vshrl.u32 %v2373, 7
        %v2375 = vsub.s32 0, %v2374
        %v2376 = vrot.slane %v1616, %v2375
        %v2382 = vunpack.c.l.b16 %v1611
        %v2383 = vunpack.c.l.b16 %v1612
        %v2384 = vunpack.c.l.b16 %v1613
        %v2385 = vunpack.c.l.b16 %v1614
        %v2386 = vpack.c.b16 %v2383, %v2382
        %v2387 = vpack.c.b16 %v2385, %v2384
        %v2391 = vsel %vm608, %v2371, 0
        %2393 = vmatprep.subr.bf16.mxu0 0
        %2394 = vmatpush1.bf16.msra.mxu0 %v2386
        %2395 = vmatprep.subr.bf16.mxu0 0
        %2396 = vmatpush1.bf16.msra.mxu0 %v2387
        %2397 = vmatprep.subr.bf16.mxu0 0
        %2398 = vmatpush1.bf16.msra.mxu0 0
        %2399 = vmatprep.subr.bf16.mxu0 0
        %2400 = vmatpush1.bf16.msra.mxu0 0
        %2401 = vmatprep.subr.bf16.mxu0 0
        %2402 = vmatpush1.bf16.msra.mxu0 0
        %2403 = vmatprep.subr.bf16.mxu0 0
        %2404 = vmatpush1.bf16.msra.mxu0 0
        %2405 = vmatprep.subr.bf16.mxu0 0
        %2406 = vmatpush1.bf16.msra.mxu0 0
        %2407 = vmatprep.subr.bf16.mxu0 0
        %2408 = vmatpush1.bf16.msra.mxu0 0
        %2409 = vmatprep.subr.bf16.mxu0 0
        %2410 = vmatpush1.bf16.msra.mxu0 0
        %2411 = vmatprep.subr.bf16.mxu0 0
        %2412 = vmatpush1.bf16.msra.mxu0 0
        %2413 = vmatprep.subr.bf16.mxu0 0
        %2414 = vmatpush1.bf16.msra.mxu0 0
        %2415 = vmatprep.subr.bf16.mxu0 0
        %2416 = vmatpush1.bf16.msra.mxu0 0
        %2417 = vmatprep.subr.bf16.mxu0 0
        %2418 = vmatpush1.bf16.msra.mxu0 0
        %2419 = vmatprep.subr.bf16.mxu0 0
        %2420 = vmatpush1.bf16.msra.mxu0 0
        %2421 = vmatprep.subr.bf16.mxu0 0
        %2422 = vmatpush1.bf16.msra.mxu0 0
        %2423 = vmatprep.subr.bf16.mxu0 0
        %2424 = vmatpush1.bf16.msra.mxu0 0
        %2425 = vmatprep.mubr.bf16.mxu0 0
        %2426 = vmatmul.mubr.bf16.gmra.mrb[0].mxu0 %v2391
        %v2427 = vpop.f32.mrb[0].mxu0
        %v2428 = vadd.f32 %v2376, %v2427
        %v2429 = vpop.f32.mrb[0].mxu0
        %v2430 = vpop.f32.mrb[0].mxu0
        %v2431 = vpop.f32.mrb[0].mxu0
        %2432 = vdwg.mxu0
        %v2433 = vmul.f32 %v2428, 0.5
        %v2434 = vmul.f32 %v2428, 0.70710677
        %vm2435 = vcmp.ge.f32.partialorder %v2434, 0.0
        %v2436 = vsel %vm2435, 1.0, -1.0
        %v2437 = vand.u32 2147483647, %v2434
        %v2438 = vmul.f32 %v2437, 0.3275911
        %v2439 = vadd.f32 %v2438, 1.0
        %v2440 = vrcp.pop %v2439
        %v2441 = vmul.f32 1.0, %v2440
        %v2442 = vmul.f32 %v2441, 1.0614054
        %v2443 = vadd.f32 %v2442, -1.4531521
        %v2444 = vmul.f32 %v2443, %v2441
        %v2445 = vadd.f32 %v2444, 1.4214138
        %v2446 = vmul.f32 %v2445, %v2441
        %v2447 = vadd.f32 %v2446, -0.28449672
        %v2448 = vmul.f32 %v2447, %v2441
        %v2449 = vadd.f32 %v2448, 0.2548296
        %v2450 = vmul.f32 %v2449, %v2441
        %v2451 = vsub.f32 0.0, %v2437
        %v2452 = vmul.f32 %v2451, %v2437
        %v2453 = vmul.f32 %v2452, 1.442695
        %v2454 = vpow.pop %v2453
        %v2455 = vmul.f32 %v2450, %v2454
        %v2456 = vsub.f32 1.0, %v2455
        %v2457 = vmul.f32 %v2436, %v2456
        %v2458 = vadd.f32 %v2457, 1.0
        %v2459 = vmul.f32 %v2433, %v2458
        %v2460 = vpack.c.bf16 %v2459, %v2459
        %v2462 = vlaneseq
        %v2463 = vshrl.u32 %v2462, 7
        %v2464 = vsub.s32 0, %v2463
        %v2465 = vrot.slane %v1627, %v2464
        %v2475 = vunpack.c.l.b16 %v1618
        %v2476 = vunpack.c.l.b16 %v1619
        %v2477 = vunpack.c.l.b16 %v1620
        %v2478 = vunpack.c.l.b16 %v1621
        %v2479 = vunpack.c.l.b16 %v1622
        %v2480 = vunpack.c.l.b16 %v1623
        %v2481 = vunpack.c.l.b16 %v1624
        %v2482 = vunpack.c.l.b16 %v1625
        %v2483 = vpack.c.b16 %v2476, %v2475
        %v2484 = vpack.c.b16 %v2478, %v2477
        %v2485 = vpack.c.b16 %v2480, %v2479
        %v2486 = vpack.c.b16 %v2482, %v2481
        %v2492 = vsel %vm1526, %v2460, 0
        %2494 = vmatprep.subr.bf16.mxu0 0
        %2495 = vmatpush1.bf16.msra.mxu0 %v2483
        %2496 = vmatprep.subr.bf16.mxu0 0
        %2497 = vmatpush1.bf16.msra.mxu0 %v2484
        %2498 = vmatprep.subr.bf16.mxu0 0
        %2499 = vmatpush1.bf16.msra.mxu0 %v2485
        %2500 = vmatprep.subr.bf16.mxu0 0
        %2501 = vmatpush1.bf16.msra.mxu0 %v2486
        %2502 = vmatprep.subr.bf16.mxu0 0
        %2503 = vmatpush1.bf16.msra.mxu0 0
        %2504 = vmatprep.subr.bf16.mxu0 0
        %2505 = vmatpush1.bf16.msra.mxu0 0
        %2506 = vmatprep.subr.bf16.mxu0 0
        %2507 = vmatpush1.bf16.msra.mxu0 0
        %2508 = vmatprep.subr.bf16.mxu0 0
        %2509 = vmatpush1.bf16.msra.mxu0 0
        %2510 = vmatprep.subr.bf16.mxu0 0
        %2511 = vmatpush1.bf16.msra.mxu0 0
        %2512 = vmatprep.subr.bf16.mxu0 0
        %2513 = vmatpush1.bf16.msra.mxu0 0
        %2514 = vmatprep.subr.bf16.mxu0 0
        %2515 = vmatpush1.bf16.msra.mxu0 0
        %2516 = vmatprep.subr.bf16.mxu0 0
        %2517 = vmatpush1.bf16.msra.mxu0 0
        %2518 = vmatprep.subr.bf16.mxu0 0
        %2519 = vmatpush1.bf16.msra.mxu0 0
        %2520 = vmatprep.subr.bf16.mxu0 0
        %2521 = vmatpush1.bf16.msra.mxu0 0
        %2522 = vmatprep.subr.bf16.mxu0 0
        %2523 = vmatpush1.bf16.msra.mxu0 0
        %2524 = vmatprep.subr.bf16.mxu0 0
        %2525 = vmatpush1.bf16.msra.mxu0 0
        %2526 = vmatprep.mubr.bf16.mxu0 0
        %2527 = vmatmul.mubr.bf16.gmra.mrb[0].mxu0 %v2492
        %v2528 = vpop.f32.mrb[0].mxu0
        %v2529 = vadd.f32 %v2465, %v2528
        %v2530 = vpop.f32.mrb[0].mxu0
        %v2531 = vpop.f32.mrb[0].mxu0
        %v2532 = vpop.f32.mrb[0].mxu0
        %2533 = vdwg.mxu0
        %v2534 = vadd.f32 %v2370, %v2529
        %s2535 = scalar_lea.vmem %s15, 1
        %v2536 = vld [vmem:[%s2535] sm:$0x1]
        %s2537 = scalar_lea.vmem %s16, 1
        %v2538 = vld [vmem:[%s2537] sm:$0x1]
        %v2539 = vsel %vm608, %v2534, 0.0
        %2540 = vadd.xlane.f32.xlu0 %v2539
        %v2541 = vpop.xlane.xlu0 %2540
        %v2542 = vmul.f32 %v2541, %v612
        %v2543 = vsub.f32 %v2534, %v2542
        %v2544 = vmul.f32 %v2543, %v2543
        %v2545 = vsel %vm608, %v2544, 0.0
        %2546 = vadd.xlane.f32.xlu0 %v2545
        %v2547 = vpop.xlane.xlu0 %2546
        %v2548 = vmul.f32 %v2547, %v612
        %v2549 = vadd.f32 %v2548, 1e-07
        %v2550 = vrsqrt.pop %v2549
        %v2551 = vmul.f32 %v2543, %v2550
        %v2553 = vlaneseq
        %v2554 = vshrl.u32 %v2553, 7
        %v2555 = vsub.s32 0, %v2554
        %v2556 = vrot.slane %v2536, %v2555
        %v2558 = vmul.f32 %v2551, %v2556
        %v2560 = vlaneseq
        %v2561 = vshrl.u32 %v2560, 7
        %v2562 = vsub.s32 0, %v2561
        %v2563 = vrot.slane %v2538, %v2562
        %v2565 = vadd.f32 %v2558, %v2563
        %s2566 = scalar_lea.vmem %s576, 8 [#allocation5]
        %2567 = vst.msk [vmem:[%s2566] sm:$0xff] %vm608, %v2565
        %s2568 = sand.u32 %s412, 1
        %s2569 = scalar_lea.sflag [#allocation4], %s2568
        %s2570 = sand.u32 %s412, 1
        %s2571 = smul.addr %s2570, 16
        %s2572 = scalar_lea.vmem [#allocation5], %s2571
        // Predicated region
        $region93: #{tpu_custom_call.1} parent=87 // pred_check
          %p2573 = pneg %p422
        $region94: #{tpu_custom_call.1} parent=87 // pred_check_branch
          %2575 = sbr.rel (%p2573) target = $region96
        $region95: #{tpu_custom_call.1} parent=87 // pred_region
          %s2577 = ssub.s32 256, 256
          %2578 = vsyncadd %s2569, %s2577
          %s2579 = smul.addr %s32, 128
          %s2580 = scalar_lea.hbm %s17, %s2579
          %s2581 = sshll.u32 %s2572, 4
          %s2582 = int_to_ptr.vmem [resolvable:$true] %s2581
          %2587 = dma.vmem_to_hbm [thread:$0]  %s2582, 256, %s2580, %s2569, 128, 256, 8
        $region96: #{tpu_custom_call.1} parent=87 // pred_fallthru
          _
      $region88: #{tpu_custom_call.1} parent=5 // pred_fallthru
        _
      %p2588 = scmp.le.s32.totalorder 2, %s27
      // Predicated region
      $region97: #{tpu_custom_call.1} parent=5 // pred_check
        %p2589 = pneg %p2588
      $region98: #{tpu_custom_call.1} parent=5 // pred_check_branch
        %2591 = sbr.rel (%p2589) target = $region100
      $region99: #{tpu_custom_call.1} parent=5 // pred_region
        %s2592 = ssub.s32 %s27, 2
        // Predicated region
        $region101: #{tpu_custom_call.1} parent=99 // pred_check
          %p2593 = pneg %p428
        $region102: #{tpu_custom_call.1} parent=99 // pred_check_branch
          %2595 = sbr.rel (%p2593) target = $region104
        $region103: #{tpu_custom_call.1} parent=99 // pred_region
          %s2596 = sand.u32 %s413, 1
          %s2597 = scalar_lea.sflag [#allocation4], %s2596
          %s2598 = sand.u32 %s413, 1
          %s2599 = smul.addr %s2598, 16
          %s2600 = scalar_lea.vmem [#allocation5], %s2599
          %2601 = dma.done %s2597, 256
        $region104: #{tpu_custom_call.1} parent=99 // pred_fallthru
          _
      $region100: #{tpu_custom_call.1} parent=5 // pred_fallthru
        _
    $region6: #{tpu_custom_call.1} parent=1 // loop_footer
      %s31 = sadd.s32 1, %s27
    $region7: #{tpu_custom_call.1} parent=1 // loop_footer_branch
      %26 = sbr.rel target = $region3
    $region8: #{tpu_custom_call.1} parent=1 // loop_exit
      _
    %2602 = vsyncpa [#allocation3], 1
    %s2603 = scalar_lea.sflag [#allocation3], 1
    %2604 = vsyncpa %s2603, 1
    %2605 = vsyncpa [#allocation4], 1
    %s2606 = scalar_lea.sflag [#allocation4], 1
    %2607 = vsyncpa %s2606, 1

</llo_original>
